<compile_context>
chip_gen: v5e
topology: v5e:2x2
jax: 0.10.0
libtpu: 0.0.40
codegen_flags: <defaults>
</compile_context>

<pallas_src>
import math
import numpy as np
import jax
import jax.numpy as jnp
from jax import lax
from jax.experimental import pallas as pl
from jax.experimental.pallas import tpu as pltpu

BF16 = jnp.bfloat16
F32 = jnp.float32

_VMEM_LIMIT = 48 * 1024 * 1024  # explicit scoped-VMEM limit (re-derive for production tiles)


# ----------------------------- in-kernel helpers -----------------------------

def _dot(a, b):
    # bf16 operands into the MXU, f32 accumulation.
    return jnp.dot(a, b, preferred_element_type=jnp.float32)


def _l2norm(x):
    # F.normalize(p=2, dim=1, eps=1e-12) == x / max(||x||, eps); one exact EUP rsqrt.
    ss = jnp.sum(x * x, axis=-1, keepdims=True)
    return x * lax.rsqrt(jnp.maximum(ss, 1e-24))


def _gru(gi, gh, h_prev):
    # PyTorch nn.GRUCell semantics, gate chunk order (r, z, n); gate math kept in f32 (VPU).
    H = h_prev.shape[-1]
    r = jax.nn.sigmoid(gi[:, 0:H] + gh[:, 0:H])
    z = jax.nn.sigmoid(gi[:, H:2 * H] + gh[:, H:2 * H])
    n = jnp.tanh(gi[:, 2 * H:3 * H] + r * gh[:, 2 * H:3 * H])
    return (1.0 - z) * n + z * h_prev


# ----------------------------- fused per-direction kernels -----------------------------

def _reverse_step_kernel(q_ref, a_ref, tm_ref, dyn_ref, rel_ref,
                         rc_wa, rc_wb, rc_whh, rc_bih, rc_bhh,   # relation_cell_2 (split W_ih)
                         rn_wih, rn_whh, rn_bih, rn_bhh,         # rnn_cell2
                         wstk,                                   # burgcn stacked [Wn; Ws]
                         revhist_ref,                            # bf16 output (graph-order)
                         cat_scr,                                # (N, 2H) bf16: [agg | h1_bf16]
                         hrel_scr, hrelb_scr,                    # evolving h_1 (f32 + bf16 copy)
                         hbase_scr,                              # frozen normalized base h (f32)
                         gi_rel_scr, gh2_scr):                   # hoisted loop-invariant matmuls
    t = pl.program_id(0)
    H = hbase_scr.shape[-1]

    @pl.when(t == 0)
    def _():
        hbn = _l2norm(dyn_ref[...])                 # self.h = F.normalize(dynamic_emb)
        hbase_scr[...] = hbn
        cat_scr[:, H:] = hbn.astype(BF16)           # self.h1 = self.h (bf16 MXU copy)
        hrel_scr[...] = rel_ref[...]                # GRU hidden init = reverse_emb_rel
        hrelb_scr[...] = rel_ref[...].astype(BF16)
        # loop-invariant: reverse_emb_rel @ W_ih_a + b_ih (input emb_rel never changes)
        gi_rel_scr[...] = _dot(rel_ref[...].astype(BF16), rc_wa[...]) + rc_bih[...]
        # loop-invariant: rnn_cell2 hidden is the frozen base h -> gh2 never changes
        gh2_scr[...] = _dot(hbn.astype(BF16), rn_whh[...]) + rn_bhh[...]

    h1_b = cat_scr[:, H:]            # bf16 evolving h1 (MXU operand only; never hits gate math)
    hrel_prev = hrel_scr[...]
    hrel_b = hrelb_scr[...]
    hbase = hbase_scr[...]

    # per-relation segment mean over r_to_e nodes
    x_input = _dot(q_ref[...], h1_b)

    # relation_cell_2 on concat(reverse_emb_rel, x_input) — concat folded into split W_ih
    gi = gi_rel_scr[...] + _dot(x_input.astype(BF16), rc_wb[...])
    gh = _dot(hrel_b, rc_whh[...]) + rc_bhh[...]
    hrel = _l2norm(_gru(gi, gh, hrel_prev))          # F.normalize fused into GRU epilogue
    hrel_scr[...] = hrel
    hrel_b_new = hrel.astype(BF16)
    hrelb_scr[...] = hrel_b_new

    # RE-GCN-style stand-in layer: mean over in-edges of (h[src] + r_emb[etype]); single K=2H dot
    agg = _dot(a_ref[...], h1_b) + _dot(tm_ref[...], hrel_b_new)
    cat_scr[:, :H] = agg.astype(BF16)
    cur = jnp.tanh(_dot(cat_scr[...], wstk[...]))

    # rnn_cell2, hidden = frozen base self.h (gh2 hoisted to t==0)
    gi2 = _dot(cur.astype(BF16), rn_wih[...]) + rn_bih[...]
    h1_new = _gru(gi2, gh2_scr[...], hbase)

    cat_scr[:, H:] = h1_new.astype(BF16)
    revhist_ref[...] = h1_new.astype(BF16)


def _forward_step_kernel(q_ref, a_ref, tm_ref, rev_ref, dyn_ref, rel_ref,
                         rc_wa, rc_wb, rc_whh, rc_bih, rc_bhh,   # relation_cell_1 (split W_ih)
                         rn_wih, rn_whh, rn_bih, rn_bhh,         # rnn_cell
                         wstk,                                   # rgcn stacked [Wn; Ws]
                         hist_ref, h0_ref,
                         h_scr,                                  # evolving h (f32, GRU hidden)
                         cat_scr,                                # (N, 2H) bf16: [agg | h_bf16]
                         hrel_scr, hrelb_scr,                    # evolving h_0 (f32 + bf16 copy)
                         gi_rel_scr):                            # hoisted rel @ W_ih_a + b_ih
    t = pl.program_id(0)
    H = h_scr.shape[-1]

    @pl.when(t == 0)
    def _():
        h_init = _l2norm(dyn_ref[...])              # self.h = F.normalize(dynamic_emb)
        h_scr[...] = h_init
        cat_scr[:, H:] = h_init.astype(BF16)
        hrel_scr[...] = rel_ref[...]                # GRU hidden init = emb_rel
        hrelb_scr[...] = rel_ref[...].astype(BF16)
        gi_rel_scr[...] = _dot(rel_ref[...].astype(BF16), rc_wa[...]) + rc_bih[...]

    h = h_scr[...]
    h_b = cat_scr[:, H:]
    hrel_prev = hrel_scr[...]
    hrel_b = hrelb_scr[...]

    x_input = _dot(q_ref[...], h_b)

    gi = gi_rel_scr[...] + _dot(x_input.astype(BF16), rc_wb[...])
    gh = _dot(hrel_b, rc_whh[...]) + rc_bhh[...]
    hrel = _l2norm(_gru(gi, gh, hrel_prev))
    hrel_scr[...] = hrel
    hrel_b_new = hrel.astype(BF16)
    hrelb_scr[...] = hrel_b_new

    @pl.when(t == pl.num_programs(0) - 1)
    def _():
        h0_ref[...] = hrel                          # returned self.h_0 (last timestep only)

    agg = _dot(a_ref[...], h_b) + _dot(tm_ref[...], hrel_b_new)
    cat_scr[:, :H] = agg.astype(BF16)
    cur = jnp.tanh(_dot(cat_scr[...], wstk[...]))

    # rnn_cell (hidden = evolving self.h) with the reverse-history add fused into the epilogue
    gi2 = _dot(cur.astype(BF16), rn_wih[...]) + rn_bih[...]
    gh2 = _dot(h_b, rn_whh[...]) + rn_bhh[...]
    h_new = _gru(gi2, gh2, h) + rev_ref[...].astype(F32)

    h_scr[...] = h_new
    cat_scr[:, H:] = h_new.astype(BF16)
    hist_ref[...] = h_new


# ----------------------------- pallas_call wrappers -----------------------------

def _const2(t):
    return (0, 0)


def _run_reverse(params, Q, A, Tm, seq_len, n_pad, H, r2p):
    rc_wa, rc_wb, rc_whh, rc_bih, rc_bhh = params["relation_cell_2"]
    rn_wih, rn_whh, rn_bih, rn_bhh = params["rnn_cell2"]
    rev_map = lambda t: (seq_len - 1 - t, 0, 0)     # process graphs in reversed order
    wspec = lambda shp: pl.BlockSpec(shp, _const2)
    return pl.pallas_call(
        _reverse_step_kernel,
        out_shape=jax.ShapeDtypeStruct((seq_len, n_pad, H), BF16),
        grid=(seq_len,),
        in_specs=[
            pl.BlockSpec((None, r2p, n_pad), rev_map),       # Q_t (bf16)
            pl.BlockSpec((None, n_pad, n_pad), rev_map),     # A_t (bf16)
            pl.BlockSpec((None, n_pad, r2p), rev_map),       # T_t (bf16)
            wspec((n_pad, H)),                               # dynamic_emb (f32)
            wspec((r2p, H)),                                 # reverse_emb_rel (f32, padded)
            wspec((H, 3 * H)), wspec((H, 3 * H)), wspec((H, 3 * H)),   # relation_cell_2 weights
            wspec((1, 3 * H)), wspec((1, 3 * H)),
            wspec((H, 3 * H)), wspec((H, 3 * H)),                      # rnn_cell2 weights
            wspec((1, 3 * H)), wspec((1, 3 * H)),
            wspec((2 * H, H)),                               # burgcn [Wn; Ws]
        ],
        out_specs=pl.BlockSpec((None, n_pad, H), rev_map),   # stored in graph order, bf16
        scratch_shapes=[
            pltpu.VMEM((n_pad, 2 * H), BF16),   # [agg | evolving bf16 h1] staging for K=2H dot
            pltpu.VMEM((r2p, H), F32),          # evolving relation state h_1 (f32)
            pltpu.VMEM((r2p, H), BF16),         # bf16 sibling of h_1
            pltpu.VMEM((n_pad, H), F32),        # frozen normalized base h (rnn_cell2 hidden)
            pltpu.VMEM((r2p, 3 * H), F32),      # hoisted rel @ W_ih_a + b_ih
            pltpu.VMEM((n_pad, 3 * H), F32),    # hoisted hbase @ W_hh + b_hh
        ],
        compiler_params=pltpu.CompilerParams(
            dimension_semantics=("arbitrary",), vmem_limit_bytes=_VMEM_LIMIT),
    )(Q, A, Tm, params["dynamic_emb"], params["reverse_emb_rel"],
      rc_wa, rc_wb, rc_whh, rc_bih, rc_bhh,
      rn_wih, rn_whh, rn_bih, rn_bhh, params["burgcn"])


def _run_forward(params, Q, A, Tm, rev_hist, seq_len, n_pad, H, r2p):
    rc_wa, rc_wb, rc_whh, rc_bih, rc_bhh = params["relation_cell_1"]
    rn_wih, rn_whh, rn_bih, rn_bhh = params["rnn_cell"]
    fwd_map = lambda t: (t, 0, 0)
    wspec = lambda shp: pl.BlockSpec(shp, _const2)
    return pl.pallas_call(
        _forward_step_kernel,
        out_shape=(jax.ShapeDtypeStruct((seq_len, n_pad, H), F32),
                   jax.ShapeDtypeStruct((r2p, H), F32)),
        grid=(seq_len,),
        in_specs=[
            pl.BlockSpec((None, r2p, n_pad), fwd_map),       # Q_t (bf16)
            pl.BlockSpec((None, n_pad, n_pad), fwd_map),     # A_t (bf16)
            pl.BlockSpec((None, n_pad, r2p), fwd_map),       # T_t (bf16)
            pl.BlockSpec((None, n_pad, H), fwd_map),         # reverse history (bf16, graph order)
            wspec((n_pad, H)),                               # dynamic_emb (f32)
            wspec((r2p, H)),                                 # emb_rel (f32, padded)
            wspec((H, 3 * H)), wspec((H, 3 * H)), wspec((H, 3 * H)),   # relation_cell_1 weights
            wspec((1, 3 * H)), wspec((1, 3 * H)),
            wspec((H, 3 * H)), wspec((H, 3 * H)),                      # rnn_cell weights
            wspec((1, 3 * H)), wspec((1, 3 * H)),
            wspec((2 * H, H)),                               # rgcn [Wn; Ws]
        ],
        out_specs=(pl.BlockSpec((None, n_pad, H), fwd_map),
                   pl.BlockSpec((r2p, H), _const2)),
        scratch_shapes=[
            pltpu.VMEM((n_pad, H), F32),        # evolving h (f32, GRU hidden)
            pltpu.VMEM((n_pad, 2 * H), BF16),   # [agg | evolving bf16 h]
            pltpu.VMEM((r2p, H), F32),          # evolving relation state h_0 (f32)
            pltpu.VMEM((r2p, H), BF16),         # bf16 sibling of h_0
            pltpu.VMEM((r2p, 3 * H), F32),      # hoisted rel @ W_ih_a + b_ih
        ],
        compiler_params=pltpu.CompilerParams(
            dimension_semantics=("arbitrary",), vmem_limit_bytes=_VMEM_LIMIT),
    )(Q, A, Tm, rev_hist, params["dynamic_emb"], params["emb_rel"],
      rc_wa, rc_wb, rc_whh, rc_bih, rc_bhh,
      rn_wih, rn_whh, rn_bih, rn_bhh, params["rgcn"])


def bi_recurrent_rgcn_forward(params, Q, A, Tm, num_rels, num_ents):
    # layer_norm=True, use_static=False, sequence='rnn', gnn='regcn'
    seq_len, r2p, n_pad = Q.shape
    h_dim = params["dynamic_emb"].shape[1]

    rev_hist = _run_reverse(params, Q, A, Tm, seq_len, n_pad, h_dim, r2p)
    hist, h0 = _run_forward(params, Q, A, Tm, rev_hist, seq_len, n_pad, h_dim, r2p)

    # Padded entity / relation rows (n_pad > num_ents, r2p > 2*num_rels) acquire nonzero values
    # through GRU biases, but Q/A/T padded columns are zero so they never leak into real rows;
    # they are sliced off here and from h_0 below.
    history_embs = [hist[i, :num_ents] for i in range(seq_len)]
    return history_embs, None, h0[:2 * num_rels], [], []


# ----------------------------- deterministic setup -----------------------------

def init_params(key, num_ents, num_rels, h_dim, r2p, n_pad):
    keys = jax.random.split(key, 11)

    def xavier(k, shape):
        std = math.sqrt(2.0 / (shape[0] + shape[1]))
        return std * jax.random.normal(k, shape, F32)

    def gru_params(k, input_size, hidden, split_input=False):
        k1, k2, k3, k4 = jax.random.split(k, 4)
        bound = 1.0 / math.sqrt(hidden)
        u = lambda kk, shp: jax.random.uniform(kk, shp, F32, -bound, bound)
        wih_t = u(k1, (3 * hidden, input_size)).T   # stored transposed: kernel does x @ W^T
        whh_t = u(k2, (3 * hidden, hidden)).T
        bih = u(k3, (1, 3 * hidden))
        bhh = u(k4, (1, 3 * hidden))
        if split_input:   # concat(emb_rel, x_input) eliminated via split W_ih
            return (wih_t[:hidden].astype(BF16), wih_t[hidden:].astype(BF16),
                    whh_t.astype(BF16), bih, bhh)
        return (wih_t.astype(BF16), whh_t.astype(BF16), bih, bhh)

    def rgcn_weights(ka, kb):
        # TODO(synk): self.rgcn / self.burgcn are assigned outside __init__ (None in the
        # reference module); deterministic RE-GCN-style stand-in weights [W_neigh; W_self].
        return jnp.concatenate([xavier(ka, (h_dim, h_dim)),
                                xavier(kb, (h_dim, h_dim))], axis=0).astype(BF16)

    def pad_rows(x, rows):
        return jnp.concatenate([x, jnp.zeros((rows - x.shape[0], h_dim), F32)], axis=0)

    return {
        "dynamic_emb": pad_rows(xavier(keys[0], (num_ents, h_dim)), n_pad),
        "emb_rel": pad_rows(xavier(keys[1], (2 * num_rels, h_dim)), r2p),
        "reverse_emb_rel": pad_rows(xavier(keys[2], (2 * num_rels, h_dim)), r2p),
        "relation_cell_1": gru_params(keys[3], 2 * h_dim, h_dim, split_input=True),
        "relation_cell_2": gru_params(keys[4], 2 * h_dim, h_dim, split_input=True),
        "rnn_cell": gru_params(keys[5], h_dim, h_dim),
        "rnn_cell2": gru_params(keys[6], h_dim, h_dim),
        "rgcn": rgcn_weights(keys[7], keys[8]),
        "burgcn": rgcn_weights(keys[9], keys[10]),
    }


def make_graph_mats(key, num_ents, num_rels, num_edges, r2p, n_pad):
    # Fold RE-GCN graph bookkeeping into dense operators (host-side, numpy):
    #   Q: per-relation mean over the unique nodes touched by that relation (r_to_e spans)
    #   A: in-neighborhood scatter-mean over edge sources
    #   T: in-neighborhood scatter-mean over edge relation types
    k1, k2, k3 = jax.random.split(key, 3)
    src = np.asarray(jax.random.randint(k1, (num_edges,), 0, num_ents))
    dst = np.asarray(jax.random.randint(k2, (num_edges,), 0, num_ents))
    et = np.asarray(jax.random.randint(k3, (num_edges,), 0, 2 * num_rels))

    Q = np.zeros((r2p, n_pad), np.float32)
    for r in np.unique(et):
        nodes = np.unique(np.concatenate([src[et == r], dst[et == r]]))
        Q[int(r), nodes] = 1.0 / len(nodes)

    indeg = np.bincount(dst, minlength=num_ents).astype(np.float32)
    A = np.zeros((n_pad, n_pad), np.float32)
    Tm = np.zeros((n_pad, r2p), np.float32)
    for j in range(num_edges):
        w = 1.0 / indeg[dst[j]]
        A[dst[j], src[j]] += w
        Tm[dst[j], et[j]] += w
    return Q, A, Tm


if __name__ == "__main__":
    num_ents, num_rels, h_dim, seq_len, num_edges = 64, 5, 128, 3, 40
    n_pad = 128    # entity axis padded to a full 128-lane tile (lane-dense stores / full MXU cols)
    r2p = 128      # relation axis padded to 128 lanes (>= 2*num_rels)

    key = jax.random.PRNGKey(0)
    pkey, gkey = jax.random.split(key)
    params = init_params(pkey, num_ents, num_rels, h_dim, r2p, n_pad)
    gkeys = jax.random.split(gkey, seq_len)
    mats = [make_graph_mats(gkeys[t], num_ents, num_rels, num_edges, r2p, n_pad)
            for t in range(seq_len)]
    # Per-step streamed graph operators are the dominant memory-bound HBM traffic -> bf16.
    Q = jnp.asarray(np.stack([m[0] for m in mats]), dtype=BF16)    # (seq, r2p, n_pad)
    A = jnp.asarray(np.stack([m[1] for m in mats]), dtype=BF16)    # (seq, n_pad, n_pad)
    Tm = jnp.asarray(np.stack([m[2] for m in mats]), dtype=BF16)   # (seq, n_pad, r2p)

    history_embs, static_emb, h_0, gate_list, degree_list = bi_recurrent_rgcn_forward(
        params, Q, A, Tm, num_rels, num_ents)
    jax.block_until_ready(history_embs[-1])
    jax.block_until_ready(h_0)

    assert history_embs[-1].shape == (num_ents, h_dim)
    assert h_0.shape == (2 * num_rels, h_dim)
    assert all(e.shape == (num_ents, h_dim) for e in history_embs)
    assert static_emb is None
    print("KERNEL_OK")
</pallas_src>

<mosaic_0001>
module attributes {stable_mosaic.version = 11 : i64} {
  func.func @_reverse_step_kernel(%arg0: i32, %arg1: memref<1x128x128xbf16, #tpu.memory_space<vmem>>, %arg2: memref<1x128x128xbf16, #tpu.memory_space<vmem>>, %arg3: memref<1x128x128xbf16, #tpu.memory_space<vmem>>, %arg4: memref<128x128xf32, #tpu.memory_space<vmem>>, %arg5: memref<128x128xf32, #tpu.memory_space<vmem>>, %arg6: memref<128x384xbf16, #tpu.memory_space<vmem>>, %arg7: memref<128x384xbf16, #tpu.memory_space<vmem>>, %arg8: memref<128x384xbf16, #tpu.memory_space<vmem>>, %arg9: memref<1x384xf32, #tpu.memory_space<vmem>>, %arg10: memref<1x384xf32, #tpu.memory_space<vmem>>, %arg11: memref<128x384xbf16, #tpu.memory_space<vmem>>, %arg12: memref<128x384xbf16, #tpu.memory_space<vmem>>, %arg13: memref<1x384xf32, #tpu.memory_space<vmem>>, %arg14: memref<1x384xf32, #tpu.memory_space<vmem>>, %arg15: memref<256x128xbf16, #tpu.memory_space<vmem>>, %arg16: memref<1x128x128xbf16, #tpu.memory_space<vmem>>, %arg17: memref<128x256xbf16, #tpu.memory_space<vmem>>, %arg18: memref<128x128xf32, #tpu.memory_space<vmem>>, %arg19: memref<128x128xbf16, #tpu.memory_space<vmem>>, %arg20: memref<128x128xf32, #tpu.memory_space<vmem>>, %arg21: memref<128x384xf32, #tpu.memory_space<vmem>>, %arg22: memref<128x384xf32, #tpu.memory_space<vmem>>) attributes {dimension_semantics = [#tpu.dimension_semantics<arbitrary>], iteration_bounds = array<i64: 3>, scalar_prefetch = 0 : i64, scratch_operands = 6 : i64, tpu.core_type = #tpu.core_type<tc>, window_params = [{transform_indices = @transform_0, window_bounds = array<i64: 1, 128, 128>}, {transform_indices = @transform_1, window_bounds = array<i64: 1, 128, 128>}, {transform_indices = @transform_2, window_bounds = array<i64: 1, 128, 128>}, {pipeline_mode = #tpu.pipeline_mode<synchronous>, transform_indices = @transform_3, window_bounds = array<i64: 128, 128>}, {pipeline_mode = #tpu.pipeline_mode<synchronous>, transform_indices = @transform_4, window_bounds = array<i64: 128, 128>}, {pipeline_mode = #tpu.pipeline_mode<synchronous>, transform_indices = @transform_5, window_bounds = array<i64: 128, 384>}, {pipeline_mode = #tpu.pipeline_mode<synchronous>, transform_indices = @transform_6, window_bounds = array<i64: 128, 384>}, {pipeline_mode = #tpu.pipeline_mode<synchronous>, transform_indices = @transform_7, window_bounds = array<i64: 128, 384>}, {pipeline_mode = #tpu.pipeline_mode<synchronous>, transform_indices = @transform_8, window_bounds = array<i64: 1, 384>}, {pipeline_mode = #tpu.pipeline_mode<synchronous>, transform_indices = @transform_9, window_bounds = array<i64: 1, 384>}, {pipeline_mode = #tpu.pipeline_mode<synchronous>, transform_indices = @transform_10, window_bounds = array<i64: 128, 384>}, {pipeline_mode = #tpu.pipeline_mode<synchronous>, transform_indices = @transform_11, window_bounds = array<i64: 128, 384>}, {pipeline_mode = #tpu.pipeline_mode<synchronous>, transform_indices = @transform_12, window_bounds = array<i64: 1, 384>}, {pipeline_mode = #tpu.pipeline_mode<synchronous>, transform_indices = @transform_13, window_bounds = array<i64: 1, 384>}, {pipeline_mode = #tpu.pipeline_mode<synchronous>, transform_indices = @transform_14, window_bounds = array<i64: 256, 128>}, {transform_indices = @transform_15, window_bounds = array<i64: 1, 128, 128>}]} {
    %c0_i32 = arith.constant 0 : i32
    %0 = arith.cmpi eq, %arg0, %c0_i32 : i32
    %1 = arith.extui %0 : i1 to i32
    %c0_i32_0 = arith.constant 0 : i32
    %2 = arith.cmpi ne, %1, %c0_i32_0 : i32
    scf.if %2 {
      %c0_59 = arith.constant 0 : index
      %c0_60 = arith.constant 0 : index
      %109 = vector.load %arg4[%c0_59, %c0_60] : memref<128x128xf32, #tpu.memory_space<vmem>>, vector<128x128xf32>
      %110 = arith.mulf %109, %109 : vector<128x128xf32>
      %cst_61 = arith.constant dense<0.000000e+00> : vector<128xf32>
      %111 = vector.multi_reduction <add>, %110, %cst_61 [1] : vector<128x128xf32> to vector<128xf32>
      %112 = vector.shape_cast %111 : vector<128xf32> to vector<128x1xf32>
      %cst_62 = arith.constant 1.000000e-24 : f32
      %113 = vector.broadcast %cst_62 : f32 to vector<128x1xf32>
      %114 = arith.maximumf %112, %113 : vector<128x1xf32>
      %115 = math.rsqrt %114 : vector<128x1xf32>
      %116 = vector.broadcast %115 : vector<128x1xf32> to vector<128x128xf32>
      %117 = arith.mulf %109, %116 : vector<128x128xf32>
      %c0_63 = arith.constant 0 : index
      %c0_64 = arith.constant 0 : index
      %118 = vector.load %arg20[%c0_63, %c0_64] : memref<128x128xf32, #tpu.memory_space<vmem>>, vector<128x128xf32>
      tpu.vector_store %arg20[%c0_63, %c0_64], %117 {strides = array<i32>} : memref<128x128xf32, #tpu.memory_space<vmem>>, vector<128x128xf32>,
      %119 = arith.truncf %117 : vector<128x128xf32> to vector<128x128xbf16>
      %c0_65 = arith.constant 0 : index
      %c128_66 = arith.constant 128 : index
      %120 = vector.load %arg17[%c0_65, %c128_66] : memref<128x256xbf16, #tpu.memory_space<vmem>>, vector<128x128xbf16>
      tpu.vector_store %arg17[%c0_65, %c128_66], %119 {strides = array<i32>} : memref<128x256xbf16, #tpu.memory_space<vmem>>, vector<128x128xbf16>,
      %c0_67 = arith.constant 0 : index
      %c0_68 = arith.constant 0 : index
      %121 = vector.load %arg5[%c0_67, %c0_68] : memref<128x128xf32, #tpu.memory_space<vmem>>, vector<128x128xf32>
      %c0_69 = arith.constant 0 : index
      %c0_70 = arith.constant 0 : index
      %122 = vector.load %arg18[%c0_69, %c0_70] : memref<128x128xf32, #tpu.memory_space<vmem>>, vector<128x128xf32>
      tpu.vector_store %arg18[%c0_69, %c0_70], %121 {strides = array<i32>} : memref<128x128xf32, #tpu.memory_space<vmem>>, vector<128x128xf32>,
      %c0_71 = arith.constant 0 : index
      %c0_72 = arith.constant 0 : index
      %123 = vector.load %arg5[%c0_71, %c0_72] : memref<128x128xf32, #tpu.memory_space<vmem>>, vector<128x128xf32>
      %124 = arith.truncf %123 : vector<128x128xf32> to vector<128x128xbf16>
      %c0_73 = arith.constant 0 : index
      %c0_74 = arith.constant 0 : index
      %125 = vector.load %arg19[%c0_73, %c0_74] : memref<128x128xbf16, #tpu.memory_space<vmem>>, vector<128x128xbf16>
      tpu.vector_store %arg19[%c0_73, %c0_74], %124 {strides = array<i32>} : memref<128x128xbf16, #tpu.memory_space<vmem>>, vector<128x128xbf16>,
      %c0_75 = arith.constant 0 : index
      %c0_76 = arith.constant 0 : index
      %126 = vector.load %arg5[%c0_75, %c0_76] : memref<128x128xf32, #tpu.memory_space<vmem>>, vector<128x128xf32>
      %127 = arith.truncf %126 : vector<128x128xf32> to vector<128x128xbf16>
      %c0_77 = arith.constant 0 : index
      %c0_78 = arith.constant 0 : index
      %128 = vector.load %arg6[%c0_77, %c0_78] : memref<128x384xbf16, #tpu.memory_space<vmem>>, vector<128x384xbf16>
      %cst_79 = arith.constant dense<0.000000e+00> : vector<128x384xf32>
      %129 = tpu.matmul %127, %128, %cst_79 {dimension_numbers = #tpu.dot_dimension_numbers<[1], [0], [0], [1], [0, 0, 1, 1], [], []>} : vector<128x128xbf16>, vector<128x384xbf16>, vector<128x384xf32> -> vector<128x384xf32>
      %c0_80 = arith.constant 0 : index
      %c0_81 = arith.constant 0 : index
      %130 = vector.load %arg9[%c0_80, %c0_81] : memref<1x384xf32, #tpu.memory_space<vmem>>, vector<1x384xf32>
      %131 = vector.broadcast %130 : vector<1x384xf32> to vector<128x384xf32>
      %132 = arith.addf %129, %131 : vector<128x384xf32>
      %c0_82 = arith.constant 0 : index
      %c0_83 = arith.constant 0 : index
      %133 = vector.load %arg21[%c0_82, %c0_83] : memref<128x384xf32, #tpu.memory_space<vmem>>, vector<128x384xf32>
      tpu.vector_store %arg21[%c0_82, %c0_83], %132 {strides = array<i32>} : memref<128x384xf32, #tpu.memory_space<vmem>>, vector<128x384xf32>,
      %134 = arith.truncf %117 : vector<128x128xf32> to vector<128x128xbf16>
      %c0_84 = arith.constant 0 : index
      %c0_85 = arith.constant 0 : index
      %135 = vector.load %arg12[%c0_84, %c0_85] : memref<128x384xbf16, #tpu.memory_space<vmem>>, vector<128x384xbf16>
      %cst_86 = arith.constant dense<0.000000e+00> : vector<128x384xf32>
      %136 = tpu.matmul %134, %135, %cst_86 {dimension_numbers = #tpu.dot_dimension_numbers<[1], [0], [0], [1], [0, 0, 1, 1], [], []>} : vector<128x128xbf16>, vector<128x384xbf16>, vector<128x384xf32> -> vector<128x384xf32>
      %c0_87 = arith.constant 0 : index
      %c0_88 = arith.constant 0 : index
      %137 = vector.load %arg14[%c0_87, %c0_88] : memref<1x384xf32, #tpu.memory_space<vmem>>, vector<1x384xf32>
      %138 = vector.broadcast %137 : vector<1x384xf32> to vector<128x384xf32>
      %139 = arith.addf %136, %138 : vector<128x384xf32>
      %c0_89 = arith.constant 0 : index
      %c0_90 = arith.constant 0 : index
      %140 = vector.load %arg22[%c0_89, %c0_90] : memref<128x384xf32, #tpu.memory_space<vmem>>, vector<128x384xf32>
      tpu.vector_store %arg22[%c0_89, %c0_90], %139 {strides = array<i32>} : memref<128x384xf32, #tpu.memory_space<vmem>>, vector<128x384xf32>,
    } else {
    }
    %c0 = arith.constant 0 : index
    %c128 = arith.constant 128 : index
    %3 = vector.load %arg17[%c0, %c128] : memref<128x256xbf16, #tpu.memory_space<vmem>>, vector<128x128xbf16>
    %c0_1 = arith.constant 0 : index
    %c0_2 = arith.constant 0 : index
    %4 = vector.load %arg18[%c0_1, %c0_2] : memref<128x128xf32, #tpu.memory_space<vmem>>, vector<128x128xf32>
    %c0_3 = arith.constant 0 : index
    %c0_4 = arith.constant 0 : index
    %5 = vector.load %arg19[%c0_3, %c0_4] : memref<128x128xbf16, #tpu.memory_space<vmem>>, vector<128x128xbf16>
    %c0_5 = arith.constant 0 : index
    %c0_6 = arith.constant 0 : index
    %6 = vector.load %arg20[%c0_5, %c0_6] : memref<128x128xf32, #tpu.memory_space<vmem>>, vector<128x128xf32>
    %c0_7 = arith.constant 0 : index
    %c0_8 = arith.constant 0 : index
    %c0_9 = arith.constant 0 : index
    %7 = vector.load %arg1[%c0_7, %c0_8, %c0_9] : memref<1x128x128xbf16, #tpu.memory_space<vmem>>, vector<1x128x128xbf16>
    %8 = vector.shape_cast %7 : vector<1x128x128xbf16> to vector<128x128xbf16>
    %cst = arith.constant dense<0.000000e+00> : vector<128x128xf32>
    %9 = tpu.matmul %8, %3, %cst {dimension_numbers = #tpu.dot_dimension_numbers<[1], [0], [0], [1], [0, 0, 1, 1], [], []>} : vector<128x128xbf16>, vector<128x128xbf16>, vector<128x128xf32> -> vector<128x128xf32>
    %c0_10 = arith.constant 0 : index
    %c0_11 = arith.constant 0 : index
    %10 = vector.load %arg21[%c0_10, %c0_11] : memref<128x384xf32, #tpu.memory_space<vmem>>, vector<128x384xf32>
    %11 = arith.truncf %9 : vector<128x128xf32> to vector<128x128xbf16>
    %c0_12 = arith.constant 0 : index
    %c0_13 = arith.constant 0 : index
    %12 = vector.load %arg7[%c0_12, %c0_13] : memref<128x384xbf16, #tpu.memory_space<vmem>>, vector<128x384xbf16>
    %cst_14 = arith.constant dense<0.000000e+00> : vector<128x384xf32>
    %13 = tpu.matmul %11, %12, %cst_14 {dimension_numbers = #tpu.dot_dimension_numbers<[1], [0], [0], [1], [0, 0, 1, 1], [], []>} : vector<128x128xbf16>, vector<128x384xbf16>, vector<128x384xf32> -> vector<128x384xf32>
    %14 = arith.addf %10, %13 : vector<128x384xf32>
    %c0_15 = arith.constant 0 : index
    %c0_16 = arith.constant 0 : index
    %15 = vector.load %arg8[%c0_15, %c0_16] : memref<128x384xbf16, #tpu.memory_space<vmem>>, vector<128x384xbf16>
    %cst_17 = arith.constant dense<0.000000e+00> : vector<128x384xf32>
    %16 = tpu.matmul %5, %15, %cst_17 {dimension_numbers = #tpu.dot_dimension_numbers<[1], [0], [0], [1], [0, 0, 1, 1], [], []>} : vector<128x128xbf16>, vector<128x384xbf16>, vector<128x384xf32> -> vector<128x384xf32>
    %c0_18 = arith.constant 0 : index
    %c0_19 = arith.constant 0 : index
    %17 = vector.load %arg10[%c0_18, %c0_19] : memref<1x384xf32, #tpu.memory_space<vmem>>, vector<1x384xf32>
    %18 = vector.broadcast %17 : vector<1x384xf32> to vector<128x384xf32>
    %19 = arith.addf %16, %18 : vector<128x384xf32>
    %20 = vector.extract_strided_slice %14 {offsets = [0, 0], sizes = [128, 128], strides = [1, 1]} : vector<128x384xf32> to vector<128x128xf32>
    %21 = vector.extract_strided_slice %19 {offsets = [0, 0], sizes = [128, 128], strides = [1, 1]} : vector<128x384xf32> to vector<128x128xf32>
    %22 = arith.addf %20, %21 : vector<128x128xf32>
    %23 = arith.negf %22 : vector<128x128xf32>
    %24 = math.exp %23 : vector<128x128xf32>
    %cst_20 = arith.constant 1.000000e+00 : f32
    %25 = vector.broadcast %cst_20 : f32 to vector<128x128xf32>
    %26 = arith.addf %25, %24 : vector<128x128xf32>
    %27 = arith.divf %25, %26 : vector<128x128xf32>
    %28 = vector.extract_strided_slice %14 {offsets = [0, 128], sizes = [128, 128], strides = [1, 1]} : vector<128x384xf32> to vector<128x128xf32>
    %29 = vector.extract_strided_slice %19 {offsets = [0, 128], sizes = [128, 128], strides = [1, 1]} : vector<128x384xf32> to vector<128x128xf32>
    %30 = arith.addf %28, %29 : vector<128x128xf32>
    %31 = arith.negf %30 : vector<128x128xf32>
    %32 = math.exp %31 : vector<128x128xf32>
    %cst_21 = arith.constant 1.000000e+00 : f32
    %33 = vector.broadcast %cst_21 : f32 to vector<128x128xf32>
    %34 = arith.addf %33, %32 : vector<128x128xf32>
    %35 = arith.divf %33, %34 : vector<128x128xf32>
    %36 = vector.extract_strided_slice %14 {offsets = [0, 256], sizes = [128, 128], strides = [1, 1]} : vector<128x384xf32> to vector<128x128xf32>
    %37 = vector.extract_strided_slice %19 {offsets = [0, 256], sizes = [128, 128], strides = [1, 1]} : vector<128x384xf32> to vector<128x128xf32>
    %38 = arith.mulf %27, %37 : vector<128x128xf32>
    %39 = arith.addf %36, %38 : vector<128x128xf32>
    %40 = math.tanh %39 : vector<128x128xf32>
    %cst_22 = arith.constant 1.000000e+00 : f32
    %41 = vector.broadcast %cst_22 : f32 to vector<128x128xf32>
    %42 = arith.subf %41, %35 : vector<128x128xf32>
    %43 = arith.mulf %42, %40 : vector<128x128xf32>
    %44 = arith.mulf %35, %4 : vector<128x128xf32>
    %45 = arith.addf %43, %44 : vector<128x128xf32>
    %46 = arith.mulf %45, %45 : vector<128x128xf32>
    %cst_23 = arith.constant dense<0.000000e+00> : vector<128xf32>
    %47 = vector.multi_reduction <add>, %46, %cst_23 [1] : vector<128x128xf32> to vector<128xf32>
    %48 = vector.shape_cast %47 : vector<128xf32> to vector<128x1xf32>
    %cst_24 = arith.constant 1.000000e-24 : f32
    %49 = vector.broadcast %cst_24 : f32 to vector<128x1xf32>
    %50 = arith.maximumf %48, %49 : vector<128x1xf32>
    %51 = math.rsqrt %50 : vector<128x1xf32>
    %52 = vector.broadcast %51 : vector<128x1xf32> to vector<128x128xf32>
    %53 = arith.mulf %45, %52 : vector<128x128xf32>
    %c0_25 = arith.constant 0 : index
    %c0_26 = arith.constant 0 : index
    %54 = vector.load %arg18[%c0_25, %c0_26] : memref<128x128xf32, #tpu.memory_space<vmem>>, vector<128x128xf32>
    tpu.vector_store %arg18[%c0_25, %c0_26], %53 {strides = array<i32>} : memref<128x128xf32, #tpu.memory_space<vmem>>, vector<128x128xf32>,
    %55 = arith.truncf %53 : vector<128x128xf32> to vector<128x128xbf16>
    %c0_27 = arith.constant 0 : index
    %c0_28 = arith.constant 0 : index
    %56 = vector.load %arg19[%c0_27, %c0_28] : memref<128x128xbf16, #tpu.memory_space<vmem>>, vector<128x128xbf16>
    tpu.vector_store %arg19[%c0_27, %c0_28], %55 {strides = array<i32>} : memref<128x128xbf16, #tpu.memory_space<vmem>>, vector<128x128xbf16>,
    %c0_29 = arith.constant 0 : index
    %c0_30 = arith.constant 0 : index
    %c0_31 = arith.constant 0 : index
    %57 = vector.load %arg2[%c0_29, %c0_30, %c0_31] : memref<1x128x128xbf16, #tpu.memory_space<vmem>>, vector<1x128x128xbf16>
    %58 = vector.shape_cast %57 : vector<1x128x128xbf16> to vector<128x128xbf16>
    %cst_32 = arith.constant dense<0.000000e+00> : vector<128x128xf32>
    %59 = tpu.matmul %58, %3, %cst_32 {dimension_numbers = #tpu.dot_dimension_numbers<[1], [0], [0], [1], [0, 0, 1, 1], [], []>} : vector<128x128xbf16>, vector<128x128xbf16>, vector<128x128xf32> -> vector<128x128xf32>
    %c0_33 = arith.constant 0 : index
    %c0_34 = arith.constant 0 : index
    %c0_35 = arith.constant 0 : index
    %60 = vector.load %arg3[%c0_33, %c0_34, %c0_35] : memref<1x128x128xbf16, #tpu.memory_space<vmem>>, vector<1x128x128xbf16>
    %61 = vector.shape_cast %60 : vector<1x128x128xbf16> to vector<128x128xbf16>
    %cst_36 = arith.constant dense<0.000000e+00> : vector<128x128xf32>
    %62 = tpu.matmul %61, %55, %cst_36 {dimension_numbers = #tpu.dot_dimension_numbers<[1], [0], [0], [1], [0, 0, 1, 1], [], []>} : vector<128x128xbf16>, vector<128x128xbf16>, vector<128x128xf32> -> vector<128x128xf32>
    %63 = arith.addf %59, %62 : vector<128x128xf32>
    %64 = arith.truncf %63 : vector<128x128xf32> to vector<128x128xbf16>
    %c0_37 = arith.constant 0 : index
    %c0_38 = arith.constant 0 : index
    %65 = vector.load %arg17[%c0_37, %c0_38] : memref<128x256xbf16, #tpu.memory_space<vmem>>, vector<128x128xbf16>
    tpu.vector_store %arg17[%c0_37, %c0_38], %64 {strides = array<i32>} : memref<128x256xbf16, #tpu.memory_space<vmem>>, vector<128x128xbf16>,
    %c0_39 = arith.constant 0 : index
    %c0_40 = arith.constant 0 : index
    %66 = vector.load %arg17[%c0_39, %c0_40] : memref<128x256xbf16, #tpu.memory_space<vmem>>, vector<128x256xbf16>
    %c0_41 = arith.constant 0 : index
    %c0_42 = arith.constant 0 : index
    %67 = vector.load %arg15[%c0_41, %c0_42] : memref<256x128xbf16, #tpu.memory_space<vmem>>, vector<256x128xbf16>
    %cst_43 = arith.constant dense<0.000000e+00> : vector<128x128xf32>
    %68 = tpu.matmul %66, %67, %cst_43 {dimension_numbers = #tpu.dot_dimension_numbers<[1], [0], [0], [1], [0, 0, 1, 1], [], []>} : vector<128x256xbf16>, vector<256x128xbf16>, vector<128x128xf32> -> vector<128x128xf32>
    %69 = math.tanh %68 : vector<128x128xf32>
    %70 = arith.truncf %69 : vector<128x128xf32> to vector<128x128xbf16>
    %c0_44 = arith.constant 0 : index
    %c0_45 = arith.constant 0 : index
    %71 = vector.load %arg11[%c0_44, %c0_45] : memref<128x384xbf16, #tpu.memory_space<vmem>>, vector<128x384xbf16>
    %cst_46 = arith.constant dense<0.000000e+00> : vector<128x384xf32>
    %72 = tpu.matmul %70, %71, %cst_46 {dimension_numbers = #tpu.dot_dimension_numbers<[1], [0], [0], [1], [0, 0, 1, 1], [], []>} : vector<128x128xbf16>, vector<128x384xbf16>, vector<128x384xf32> -> vector<128x384xf32>
    %c0_47 = arith.constant 0 : index
    %c0_48 = arith.constant 0 : index
    %73 = vector.load %arg13[%c0_47, %c0_48] : memref<1x384xf32, #tpu.memory_space<vmem>>, vector<1x384xf32>
    %74 = vector.broadcast %73 : vector<1x384xf32> to vector<128x384xf32>
    %75 = arith.addf %72, %74 : vector<128x384xf32>
    %c0_49 = arith.constant 0 : index
    %c0_50 = arith.constant 0 : index
    %76 = vector.load %arg22[%c0_49, %c0_50] : memref<128x384xf32, #tpu.memory_space<vmem>>, vector<128x384xf32>
    %77 = vector.extract_strided_slice %75 {offsets = [0, 0], sizes = [128, 128], strides = [1, 1]} : vector<128x384xf32> to vector<128x128xf32>
    %78 = vector.extract_strided_slice %76 {offsets = [0, 0], sizes = [128, 128], strides = [1, 1]} : vector<128x384xf32> to vector<128x128xf32>
    %79 = arith.addf %77, %78 : vector<128x128xf32>
    %80 = arith.negf %79 : vector<128x128xf32>
    %81 = math.exp %80 : vector<128x128xf32>
    %cst_51 = arith.constant 1.000000e+00 : f32
    %82 = vector.broadcast %cst_51 : f32 to vector<128x128xf32>
    %83 = arith.addf %82, %81 : vector<128x128xf32>
    %84 = arith.divf %82, %83 : vector<128x128xf32>
    %85 = vector.extract_strided_slice %75 {offsets = [0, 128], sizes = [128, 128], strides = [1, 1]} : vector<128x384xf32> to vector<128x128xf32>
    %86 = vector.extract_strided_slice %76 {offsets = [0, 128], sizes = [128, 128], strides = [1, 1]} : vector<128x384xf32> to vector<128x128xf32>
    %87 = arith.addf %85, %86 : vector<128x128xf32>
    %88 = arith.negf %87 : vector<128x128xf32>
    %89 = math.exp %88 : vector<128x128xf32>
    %cst_52 = arith.constant 1.000000e+00 : f32
    %90 = vector.broadcast %cst_52 : f32 to vector<128x128xf32>
    %91 = arith.addf %90, %89 : vector<128x128xf32>
    %92 = arith.divf %90, %91 : vector<128x128xf32>
    %93 = vector.extract_strided_slice %75 {offsets = [0, 256], sizes = [128, 128], strides = [1, 1]} : vector<128x384xf32> to vector<128x128xf32>
    %94 = vector.extract_strided_slice %76 {offsets = [0, 256], sizes = [128, 128], strides = [1, 1]} : vector<128x384xf32> to vector<128x128xf32>
    %95 = arith.mulf %84, %94 : vector<128x128xf32>
    %96 = arith.addf %93, %95 : vector<128x128xf32>
    %97 = math.tanh %96 : vector<128x128xf32>
    %cst_53 = arith.constant 1.000000e+00 : f32
    %98 = vector.broadcast %cst_53 : f32 to vector<128x128xf32>
    %99 = arith.subf %98, %92 : vector<128x128xf32>
    %100 = arith.mulf %99, %97 : vector<128x128xf32>
    %101 = arith.mulf %92, %6 : vector<128x128xf32>
    %102 = arith.addf %100, %101 : vector<128x128xf32>
    %103 = arith.truncf %102 : vector<128x128xf32> to vector<128x128xbf16>
    %c0_54 = arith.constant 0 : index
    %c128_55 = arith.constant 128 : index
    %104 = vector.load %arg17[%c0_54, %c128_55] : memref<128x256xbf16, #tpu.memory_space<vmem>>, vector<128x128xbf16>
    tpu.vector_store %arg17[%c0_54, %c128_55], %103 {strides = array<i32>} : memref<128x256xbf16, #tpu.memory_space<vmem>>, vector<128x128xbf16>,
    %105 = arith.truncf %102 : vector<128x128xf32> to vector<128x128xbf16>
    %c0_56 = arith.constant 0 : index
    %c0_57 = arith.constant 0 : index
    %c0_58 = arith.constant 0 : index
    %106 = vector.load %arg16[%c0_56, %c0_57, %c0_58] : memref<1x128x128xbf16, #tpu.memory_space<vmem>>, vector<1x128x128xbf16>
    %107 = vector.shape_cast %106 : vector<1x128x128xbf16> to vector<128x128xbf16>
    %108 = vector.shape_cast %105 : vector<128x128xbf16> to vector<1x128x128xbf16>
    tpu.vector_store %arg16[%c0_56, %c0_57, %c0_58], %108 {strides = array<i32>} : memref<1x128x128xbf16, #tpu.memory_space<vmem>>, vector<1x128x128xbf16>,
    return
  }
  func.func @transform_0(%arg0: i32) -> (i32, i32, i32) {
    %c2_i32 = arith.constant 2 : i32
    %0 = arith.subi %c2_i32, %arg0 : i32
    %c0_i32 = arith.constant 0 : i32
    %c0_i32_0 = arith.constant 0 : i32
    %c0_i32_1 = arith.constant 0 : i32
    return %0, %c0_i32, %c0_i32_0 : i32, i32, i32
  }
  func.func @transform_1(%arg0: i32) -> (i32, i32, i32) {
    %c2_i32 = arith.constant 2 : i32
    %0 = arith.subi %c2_i32, %arg0 : i32
    %c0_i32 = arith.constant 0 : i32
    %c0_i32_0 = arith.constant 0 : i32
    %c0_i32_1 = arith.constant 0 : i32
    return %0, %c0_i32, %c0_i32_0 : i32, i32, i32
  }
  func.func @transform_2(%arg0: i32) -> (i32, i32, i32) {
    %c2_i32 = arith.constant 2 : i32
    %0 = arith.subi %c2_i32, %arg0 : i32
    %c0_i32 = arith.constant 0 : i32
    %c0_i32_0 = arith.constant 0 : i32
    %c0_i32_1 = arith.constant 0 : i32
    return %0, %c0_i32, %c0_i32_0 : i32, i32, i32
  }
  func.func @transform_3(%arg0: i32) -> (i32, i32) {
    %c0_i32 = arith.constant 0 : i32
    %c0_i32_0 = arith.constant 0 : i32
    %c0_i32_1 = arith.constant 0 : i32
    return %c0_i32, %c0_i32_0 : i32, i32
  }
  func.func @transform_4(%arg0: i32) -> (i32, i32) {
    %c0_i32 = arith.constant 0 : i32
    %c0_i32_0 = arith.constant 0 : i32
    %c0_i32_1 = arith.constant 0 : i32
    return %c0_i32, %c0_i32_0 : i32, i32
  }
  func.func @transform_5(%arg0: i32) -> (i32, i32) {
    %c0_i32 = arith.constant 0 : i32
    %c0_i32_0 = arith.constant 0 : i32
    %c0_i32_1 = arith.constant 0 : i32
    return %c0_i32, %c0_i32_0 : i32, i32
  }
  func.func @transform_6(%arg0: i32) -> (i32, i32) {
    %c0_i32 = arith.constant 0 : i32
    %c0_i32_0 = arith.constant 0 : i32
    %c0_i32_1 = arith.constant 0 : i32
    return %c0_i32, %c0_i32_0 : i32, i32
  }
  func.func @transform_7(%arg0: i32) -> (i32, i32) {
    %c0_i32 = arith.constant 0 : i32
    %c0_i32_0 = arith.constant 0 : i32
    %c0_i32_1 = arith.constant 0 : i32
    return %c0_i32, %c0_i32_0 : i32, i32
  }
  func.func @transform_8(%arg0: i32) -> (i32, i32) {
    %c0_i32 = arith.constant 0 : i32
    %c0_i32_0 = arith.constant 0 : i32
    %c0_i32_1 = arith.constant 0 : i32
    return %c0_i32, %c0_i32_0 : i32, i32
  }
  func.func @transform_9(%arg0: i32) -> (i32, i32) {
    %c0_i32 = arith.constant 0 : i32
    %c0_i32_0 = arith.constant 0 : i32
    %c0_i32_1 = arith.constant 0 : i32
    return %c0_i32, %c0_i32_0 : i32, i32
  }
  func.func @transform_10(%arg0: i32) -> (i32, i32) {
    %c0_i32 = arith.constant 0 : i32
    %c0_i32_0 = arith.constant 0 : i32
    %c0_i32_1 = arith.constant 0 : i32
    return %c0_i32, %c0_i32_0 : i32, i32
  }
  func.func @transform_11(%arg0: i32) -> (i32, i32) {
    %c0_i32 = arith.constant 0 : i32
    %c0_i32_0 = arith.constant 0 : i32
    %c0_i32_1 = arith.constant 0 : i32
    return %c0_i32, %c0_i32_0 : i32, i32
  }
  func.func @transform_12(%arg0: i32) -> (i32, i32) {
    %c0_i32 = arith.constant 0 : i32
    %c0_i32_0 = arith.constant 0 : i32
    %c0_i32_1 = arith.constant 0 : i32
    return %c0_i32, %c0_i32_0 : i32, i32
  }
  func.func @transform_13(%arg0: i32) -> (i32, i32) {
    %c0_i32 = arith.constant 0 : i32
    %c0_i32_0 = arith.constant 0 : i32
    %c0_i32_1 = arith.constant 0 : i32
    return %c0_i32, %c0_i32_0 : i32, i32
  }
  func.func @transform_14(%arg0: i32) -> (i32, i32) {
    %c0_i32 = arith.constant 0 : i32
    %c0_i32_0 = arith.constant 0 : i32
    %c0_i32_1 = arith.constant 0 : i32
    return %c0_i32, %c0_i32_0 : i32, i32
  }
  func.func @transform_15(%arg0: i32) -> (i32, i32, i32) {
    %c2_i32 = arith.constant 2 : i32
    %0 = arith.subi %c2_i32, %arg0 : i32
    %c0_i32 = arith.constant 0 : i32
    %c0_i32_0 = arith.constant 0 : i32
    %c0_i32_1 = arith.constant 0 : i32
    return %0, %c0_i32, %c0_i32_0 : i32, i32, i32
  }
}

</mosaic_0001>

<llo_original>
// kernel: tpu_custom_call.1
$region0: #{tpu_custom_call.1}
  #allocation0 [shape = 'u32[]', space=smem, size = 0x4, offset = 0x4, fixed_abs, tag = 'smem constant byte address 0x4 - core index']
  #allocation1 [shape = 'u32[72,128]{1,0:T(1,128)}', space=vmem, size = 0x9000, scoped, tag = 'internal scratch']
  #allocation2 [shape = 'bf16[128,256]{1,0:T(8,128)(2,1)}', space=vmem, size = 0x10000, scoped, tag = 'scratch operand']
  #allocation3 [shape = 'f32[128,128]{1,0:T(8,128)}', space=vmem, size = 0x10000, scoped, tag = 'scratch operand']
  #allocation4 [shape = 'bf16[128,128]{1,0:T(8,128)(2,1)}', space=vmem, size = 0x8000, scoped, tag = 'scratch operand']
  #allocation5 [shape = 'f32[128,128]{1,0:T(8,128)}', space=vmem, size = 0x10000, scoped, tag = 'scratch operand']
  #allocation6 [shape = 'f32[128,384]{1,0:T(8,128)}', space=vmem, size = 0x30000, scoped, tag = 'scratch operand']
  #allocation7 [shape = 'f32[128,384]{1,0:T(8,128)}', space=vmem, size = 0x30000, scoped, tag = 'scratch operand']
  %s0 = inlined_call_operand.hbm [shape: bf16[3,128,128], index: 0, kind: input, shape index: {}]
  %s1 = inlined_call_operand.hbm [shape: bf16[3,128,128], index: 1, kind: input, shape index: {}]
  %s2 = inlined_call_operand.hbm [shape: bf16[3,128,128], index: 2, kind: input, shape index: {}]
  %s3 = inlined_call_operand.hbm [shape: f32[128,128], index: 3, kind: input, shape index: {}]
  %s4 = inlined_call_operand.hbm [shape: f32[128,128], index: 4, kind: input, shape index: {}]
  %s5 = inlined_call_operand.hbm [shape: bf16[128,384], index: 5, kind: input, shape index: {}]
  %s6 = inlined_call_operand.hbm [shape: bf16[128,384], index: 6, kind: input, shape index: {}]
  %s7 = inlined_call_operand.hbm [shape: bf16[128,384], index: 7, kind: input, shape index: {}]
  %s8 = inlined_call_operand.vmem [shape: f32[1,384], index: 8, kind: input, shape index: {}]
  %s9 = inlined_call_operand.vmem [shape: f32[1,384], index: 9, kind: input, shape index: {}]
  %s10 = inlined_call_operand.hbm [shape: bf16[128,384], index: 10, kind: input, shape index: {}]
  %s11 = inlined_call_operand.hbm [shape: bf16[128,384], index: 11, kind: input, shape index: {}]
  %s12 = inlined_call_operand.vmem [shape: f32[1,384], index: 12, kind: input, shape index: {}]
  %s13 = inlined_call_operand.vmem [shape: f32[1,384], index: 13, kind: input, shape index: {}]
  %s14 = inlined_call_operand.hbm [shape: bf16[256,128], index: 14, kind: input, shape index: {}]
  %s15 = inlined_call_operand.hbm [shape: bf16[3,128,128], index: 15, kind: output, shape index: {}]
  %s16 = sld [smem:[#allocation0]]
  $region141: #{tpu_custom_call.1} parent=0
    _
  %s18 = ssub.s32 1, %s16
  %s19 = scalar_select 0, %s18, %s16
  $region1: #{tpu_custom_call.1} parent=0
    #allocation8 [shape = 'u8[65536]{0}', space=vmem, size = 0x10000, scoped, tag = 'input window, operand 0']
    #allocation9 [shape = 's32[2]{0}', space=sflag, size = 0x8, scoped, tag = 'scoped memory for tpu_custom_call.1']
    #allocation10 [shape = 's32[2]{0}', space=sflag, size = 0x8, scoped, tag = 'scoped memory for tpu_custom_call.1']
    #allocation11 [shape = 'u8[65536]{0}', space=vmem, size = 0x10000, scoped, tag = 'input window, operand 1']
    #allocation12 [shape = 's32[2]{0}', space=sflag, size = 0x8, scoped, tag = 'scoped memory for tpu_custom_call.1']
    #allocation13 [shape = 'u8[65536]{0}', space=vmem, size = 0x10000, scoped, tag = 'input window, operand 2']
    #allocation14 [shape = 'u8[65536]{0}', space=vmem, size = 0x10000, scoped, tag = 'input window, operand 3, single buffered']
    #allocation15 [shape = 's32[1]{0}', space=sflag, size = 0x4, scoped, tag = 'scoped memory for tpu_custom_call.1']
    #allocation16 [shape = 'u8[65536]{0}', space=vmem, size = 0x10000, scoped, tag = 'input window, operand 4, single buffered']
    #allocation17 [shape = 'u8[98304]{0}', space=vmem, size = 0x18000, scoped, tag = 'input window, operand 5, single buffered']
    #allocation18 [shape = 's32[1]{0}', space=sflag, size = 0x4, scoped, tag = 'scoped memory for tpu_custom_call.1']
    #allocation19 [shape = 'u8[98304]{0}', space=vmem, size = 0x18000, scoped, tag = 'input window, operand 6, single buffered']
    #allocation20 [shape = 'u8[98304]{0}', space=vmem, size = 0x18000, scoped, tag = 'input window, operand 7, single buffered']
    #allocation21 [shape = 's32[1]{0}', space=sflag, size = 0x4, scoped, tag = 'scoped memory for tpu_custom_call.1']
    #allocation22 [shape = 'u8[98304]{0}', space=vmem, size = 0x18000, scoped, tag = 'input window, operand 10, single buffered']
    #allocation23 [shape = 'u8[98304]{0}', space=vmem, size = 0x18000, scoped, tag = 'input window, operand 11, single buffered']
    #allocation24 [shape = 's32[1]{0}', space=sflag, size = 0x4, scoped, tag = 'scoped memory for tpu_custom_call.1']
    #allocation25 [shape = 'u8[65536]{0}', space=vmem, size = 0x10000, scoped, tag = 'input window, operand 14, single buffered']
    #allocation26 [shape = 'u8[65536]{0}', space=vmem, size = 0x10000, scoped, tag = 'output window, operand 0']
    %20 = vsyncpa [#allocation9], 0
    %s21 = scalar_lea.sflag [#allocation9], 1
    %22 = vsyncpa %s21, 0
    %23 = vsyncpa [#allocation12], 0
    %s24 = scalar_lea.sflag [#allocation12], 1
    %25 = vsyncpa %s24, 0
    %26 = vsyncpa [#allocation15], 0
    %27 = vsyncpa [#allocation18], 0
    %28 = vsyncpa [#allocation21], 0
    %29 = vsyncpa [#allocation24], 0
    %30 = vsyncpa [#allocation10], 0
    %s31 = scalar_lea.sflag [#allocation10], 1
    %32 = vsyncpa %s31, 0
    loop: start=0, step=1, limit=5
    $region2: #{tpu_custom_call.1} parent=1 // loop_pre_header
      _
    $region3: #{tpu_custom_call.1} parent=1 // loop_header
      %s34 = sphi 0, %s38
      %p35 = scmp.ge.s32.totalorder %s34, 5
      %s46 = sphi 0, %s48
      %s49 = sphi 0, %s46
      %s50 = sphi 0, %s49
      %s66 = sphi 0, %s50
      %s74 = sphi 0, %s76
      %s77 = sphi 0, %s74
      %s78 = sphi 0, %s77
      %s94 = sphi 0, %s78
      %s102 = sphi 0, %s104
      %s105 = sphi 0, %s102
      %s106 = sphi 0, %s105
      %s122 = sphi 0, %s106
      %s126 = sphi 0, %s126
      %s128 = sphi 0, %s126
      %s129 = sphi 0, %s128
      %s143 = sphi 0, %s129
      %s147 = sphi 0, %s147
      %s149 = sphi 0, %s147
      %s150 = sphi 0, %s149
      %s164 = sphi 0, %s150
      %s168 = sphi 0, %s168
      %s170 = sphi 0, %s168
      %s171 = sphi 0, %s170
      %s185 = sphi 0, %s171
      %s189 = sphi 0, %s189
      %s191 = sphi 0, %s189
      %s192 = sphi 0, %s191
      %s206 = sphi 0, %s192
      %s210 = sphi 0, %s210
      %s212 = sphi 0, %s210
      %s213 = sphi 0, %s212
      %s227 = sphi 0, %s213
      %s231 = sphi 0, %s231
      %s233 = sphi 0, %s231
      %s234 = sphi 0, %s233
      %s248 = sphi 0, %s234
      %s252 = sphi 0, %s252
      %s254 = sphi 0, %s252
      %s255 = sphi 0, %s254
      %s269 = sphi 0, %s255
      %s273 = sphi 0, %s273
      %s275 = sphi 0, %s273
      %s276 = sphi 0, %s275
      %s290 = sphi 0, %s276
      %s294 = sphi 0, %s294
      %s296 = sphi 0, %s294
      %s297 = sphi 0, %s296
      %s311 = sphi 0, %s297
      %s315 = sphi 0, %s315
      %s317 = sphi 0, %s315
      %s318 = sphi 0, %s317
      %s332 = sphi 0, %s318
      %s336 = sphi 0, %s336
      %s338 = sphi 0, %s336
      %s339 = sphi 0, %s338
      %s353 = sphi 0, %s339
      %s357 = sphi 0, %s357
      %s359 = sphi 0, %s357
      %s360 = sphi 0, %s359
      %s374 = sphi 0, %s360
      %s382 = sphi 0, %s384
      %s385 = sphi 0, %s382
      %s386 = sphi 0, %s385
      %s402 = sphi 0, %s386
    $region4: #{tpu_custom_call.1} parent=1 // loop_header_branch
      %37 = sbr.rel (%p35) target = $region8
    $region5: #{tpu_custom_call.1} parent=1 // loop_body
      %s39 = ssub.s32 %s34, 1
      %s40 = ssub.s32 %s34, 2
      %s41 = sadd.s32 %s34, 1
      %s42 = ssub.s32 2, %s34
      %s43 = ssub.s32 2, %s41
      %s44 = ssub.s32 %s42, %s43
      %p45 = scmp.eq.s32.totalorder %s44, 0
      %s47 = sadd.s32 %s46, 1
      %s48 = scalar_select %p45, %s46, %s47
      %p51 = pneg %p45
      %p52 = scmp.eq.s32.totalorder %s34, 2
      %p53 = por %p51, %p52
      %p54 = scmp.ne.s32.totalorder %s46, %s49
      %p55 = scmp.eq.s32.totalorder %s34, 0
      %p56 = por %p54, %p55
      %p57 = scmp.ne.s32.totalorder %s46, %s49
      %p58 = scmp.eq.s32.totalorder %s39, 2
      %p59 = por %p57, %p58
      %p60 = scmp.ne.s32.totalorder %s49, %s50
      %p61 = scmp.eq.s32.totalorder %s39, 0
      %p62 = por %p60, %p61
      %p63 = scmp.ne.s32.totalorder %s49, %s50
      %p64 = scmp.eq.s32.totalorder %s40, 2
      %p65 = por %p63, %p64
      %p67 = scmp.ne.s32.totalorder %s50, %s66
      %p68 = scmp.eq.s32.totalorder %s40, 0
      %p69 = por %p67, %p68
      %s70 = ssub.s32 2, %s34
      %s71 = ssub.s32 2, %s41
      %s72 = ssub.s32 %s70, %s71
      %p73 = scmp.eq.s32.totalorder %s72, 0
      %s75 = sadd.s32 %s74, 1
      %s76 = scalar_select %p73, %s74, %s75
      %p79 = pneg %p73
      %p80 = scmp.eq.s32.totalorder %s34, 2
      %p81 = por %p79, %p80
      %p82 = scmp.ne.s32.totalorder %s74, %s77
      %p83 = scmp.eq.s32.totalorder %s34, 0
      %p84 = por %p82, %p83
      %p85 = scmp.ne.s32.totalorder %s74, %s77
      %p86 = scmp.eq.s32.totalorder %s39, 2
      %p87 = por %p85, %p86
      %p88 = scmp.ne.s32.totalorder %s77, %s78
      %p89 = scmp.eq.s32.totalorder %s39, 0
      %p90 = por %p88, %p89
      %p91 = scmp.ne.s32.totalorder %s77, %s78
      %p92 = scmp.eq.s32.totalorder %s40, 2
      %p93 = por %p91, %p92
      %p95 = scmp.ne.s32.totalorder %s78, %s94
      %p96 = scmp.eq.s32.totalorder %s40, 0
      %p97 = por %p95, %p96
      %s98 = ssub.s32 2, %s34
      %s99 = ssub.s32 2, %s41
      %s100 = ssub.s32 %s98, %s99
      %p101 = scmp.eq.s32.totalorder %s100, 0
      %s103 = sadd.s32 %s102, 1
      %s104 = scalar_select %p101, %s102, %s103
      %p107 = pneg %p101
      %p108 = scmp.eq.s32.totalorder %s34, 2
      %p109 = por %p107, %p108
      %p110 = scmp.ne.s32.totalorder %s102, %s105
      %p111 = scmp.eq.s32.totalorder %s34, 0
      %p112 = por %p110, %p111
      %p113 = scmp.ne.s32.totalorder %s102, %s105
      %p114 = scmp.eq.s32.totalorder %s39, 2
      %p115 = por %p113, %p114
      %p116 = scmp.ne.s32.totalorder %s105, %s106
      %p117 = scmp.eq.s32.totalorder %s39, 0
      %p118 = por %p116, %p117
      %p119 = scmp.ne.s32.totalorder %s105, %s106
      %p120 = scmp.eq.s32.totalorder %s40, 2
      %p121 = por %p119, %p120
      %p123 = scmp.ne.s32.totalorder %s106, %s122
      %p124 = scmp.eq.s32.totalorder %s40, 0
      %p125 = por %p123, %p124
      %s127 = sadd.s32 %s126, 1
      %p130 = scmp.eq.s32.totalorder %s34, 2
      %p131 = scmp.ne.s32.totalorder %s126, %s128
      %p132 = scmp.eq.s32.totalorder %s34, 0
      %p133 = por %p131, %p132
      %p134 = scmp.ne.s32.totalorder %s126, %s128
      %p135 = scmp.eq.s32.totalorder %s39, 2
      %p136 = por %p134, %p135
      %p137 = scmp.ne.s32.totalorder %s128, %s129
      %p138 = scmp.eq.s32.totalorder %s39, 0
      %p139 = por %p137, %p138
      %p140 = scmp.ne.s32.totalorder %s128, %s129
      %p141 = scmp.eq.s32.totalorder %s40, 2
      %p142 = por %p140, %p141
      %p144 = scmp.ne.s32.totalorder %s129, %s143
      %p145 = scmp.eq.s32.totalorder %s40, 0
      %p146 = por %p144, %p145
      %s148 = sadd.s32 %s147, 1
      %p151 = scmp.eq.s32.totalorder %s34, 2
      %p152 = scmp.ne.s32.totalorder %s147, %s149
      %p153 = scmp.eq.s32.totalorder %s34, 0
      %p154 = por %p152, %p153
      %p155 = scmp.ne.s32.totalorder %s147, %s149
      %p156 = scmp.eq.s32.totalorder %s39, 2
      %p157 = por %p155, %p156
      %p158 = scmp.ne.s32.totalorder %s149, %s150
      %p159 = scmp.eq.s32.totalorder %s39, 0
      %p160 = por %p158, %p159
      %p161 = scmp.ne.s32.totalorder %s149, %s150
      %p162 = scmp.eq.s32.totalorder %s40, 2
      %p163 = por %p161, %p162
      %p165 = scmp.ne.s32.totalorder %s150, %s164
      %p166 = scmp.eq.s32.totalorder %s40, 0
      %p167 = por %p165, %p166
      %s169 = sadd.s32 %s168, 1
      %p172 = scmp.eq.s32.totalorder %s34, 2
      %p173 = scmp.ne.s32.totalorder %s168, %s170
      %p174 = scmp.eq.s32.totalorder %s34, 0
      %p175 = por %p173, %p174
      %p176 = scmp.ne.s32.totalorder %s168, %s170
      %p177 = scmp.eq.s32.totalorder %s39, 2
      %p178 = por %p176, %p177
      %p179 = scmp.ne.s32.totalorder %s170, %s171
      %p180 = scmp.eq.s32.totalorder %s39, 0
      %p181 = por %p179, %p180
      %p182 = scmp.ne.s32.totalorder %s170, %s171
      %p183 = scmp.eq.s32.totalorder %s40, 2
      %p184 = por %p182, %p183
      %p186 = scmp.ne.s32.totalorder %s171, %s185
      %p187 = scmp.eq.s32.totalorder %s40, 0
      %p188 = por %p186, %p187
      %s190 = sadd.s32 %s189, 1
      %p193 = scmp.eq.s32.totalorder %s34, 2
      %p194 = scmp.ne.s32.totalorder %s189, %s191
      %p195 = scmp.eq.s32.totalorder %s34, 0
      %p196 = por %p194, %p195
      %p197 = scmp.ne.s32.totalorder %s189, %s191
      %p198 = scmp.eq.s32.totalorder %s39, 2
      %p199 = por %p197, %p198
      %p200 = scmp.ne.s32.totalorder %s191, %s192
      %p201 = scmp.eq.s32.totalorder %s39, 0
      %p202 = por %p200, %p201
      %p203 = scmp.ne.s32.totalorder %s191, %s192
      %p204 = scmp.eq.s32.totalorder %s40, 2
      %p205 = por %p203, %p204
      %p207 = scmp.ne.s32.totalorder %s192, %s206
      %p208 = scmp.eq.s32.totalorder %s40, 0
      %p209 = por %p207, %p208
      %s211 = sadd.s32 %s210, 1
      %p214 = scmp.eq.s32.totalorder %s34, 2
      %p215 = scmp.ne.s32.totalorder %s210, %s212
      %p216 = scmp.eq.s32.totalorder %s34, 0
      %p217 = por %p215, %p216
      %p218 = scmp.ne.s32.totalorder %s210, %s212
      %p219 = scmp.eq.s32.totalorder %s39, 2
      %p220 = por %p218, %p219
      %p221 = scmp.ne.s32.totalorder %s212, %s213
      %p222 = scmp.eq.s32.totalorder %s39, 0
      %p223 = por %p221, %p222
      %p224 = scmp.ne.s32.totalorder %s212, %s213
      %p225 = scmp.eq.s32.totalorder %s40, 2
      %p226 = por %p224, %p225
      %p228 = scmp.ne.s32.totalorder %s213, %s227
      %p229 = scmp.eq.s32.totalorder %s40, 0
      %p230 = por %p228, %p229
      %s232 = sadd.s32 %s231, 1
      %p235 = scmp.eq.s32.totalorder %s34, 2
      %p236 = scmp.ne.s32.totalorder %s231, %s233
      %p237 = scmp.eq.s32.totalorder %s34, 0
      %p238 = por %p236, %p237
      %p239 = scmp.ne.s32.totalorder %s231, %s233
      %p240 = scmp.eq.s32.totalorder %s39, 2
      %p241 = por %p239, %p240
      %p242 = scmp.ne.s32.totalorder %s233, %s234
      %p243 = scmp.eq.s32.totalorder %s39, 0
      %p244 = por %p242, %p243
      %p245 = scmp.ne.s32.totalorder %s233, %s234
      %p246 = scmp.eq.s32.totalorder %s40, 2
      %p247 = por %p245, %p246
      %p249 = scmp.ne.s32.totalorder %s234, %s248
      %p250 = scmp.eq.s32.totalorder %s40, 0
      %p251 = por %p249, %p250
      %s253 = sadd.s32 %s252, 1
      %p256 = scmp.eq.s32.totalorder %s34, 2
      %p257 = scmp.ne.s32.totalorder %s252, %s254
      %p258 = scmp.eq.s32.totalorder %s34, 0
      %p259 = por %p257, %p258
      %p260 = scmp.ne.s32.totalorder %s252, %s254
      %p261 = scmp.eq.s32.totalorder %s39, 2
      %p262 = por %p260, %p261
      %p263 = scmp.ne.s32.totalorder %s254, %s255
      %p264 = scmp.eq.s32.totalorder %s39, 0
      %p265 = por %p263, %p264
      %p266 = scmp.ne.s32.totalorder %s254, %s255
      %p267 = scmp.eq.s32.totalorder %s40, 2
      %p268 = por %p266, %p267
      %p270 = scmp.ne.s32.totalorder %s255, %s269
      %p271 = scmp.eq.s32.totalorder %s40, 0
      %p272 = por %p270, %p271
      %s274 = sadd.s32 %s273, 1
      %p277 = scmp.eq.s32.totalorder %s34, 2
      %p278 = scmp.ne.s32.totalorder %s273, %s275
      %p279 = scmp.eq.s32.totalorder %s34, 0
      %p280 = por %p278, %p279
      %p281 = scmp.ne.s32.totalorder %s273, %s275
      %p282 = scmp.eq.s32.totalorder %s39, 2
      %p283 = por %p281, %p282
      %p284 = scmp.ne.s32.totalorder %s275, %s276
      %p285 = scmp.eq.s32.totalorder %s39, 0
      %p286 = por %p284, %p285
      %p287 = scmp.ne.s32.totalorder %s275, %s276
      %p288 = scmp.eq.s32.totalorder %s40, 2
      %p289 = por %p287, %p288
      %p291 = scmp.ne.s32.totalorder %s276, %s290
      %p292 = scmp.eq.s32.totalorder %s40, 0
      %p293 = por %p291, %p292
      %s295 = sadd.s32 %s294, 1
      %p298 = scmp.eq.s32.totalorder %s34, 2
      %p299 = scmp.ne.s32.totalorder %s294, %s296
      %p300 = scmp.eq.s32.totalorder %s34, 0
      %p301 = por %p299, %p300
      %p302 = scmp.ne.s32.totalorder %s294, %s296
      %p303 = scmp.eq.s32.totalorder %s39, 2
      %p304 = por %p302, %p303
      %p305 = scmp.ne.s32.totalorder %s296, %s297
      %p306 = scmp.eq.s32.totalorder %s39, 0
      %p307 = por %p305, %p306
      %p308 = scmp.ne.s32.totalorder %s296, %s297
      %p309 = scmp.eq.s32.totalorder %s40, 2
      %p310 = por %p308, %p309
      %p312 = scmp.ne.s32.totalorder %s297, %s311
      %p313 = scmp.eq.s32.totalorder %s40, 0
      %p314 = por %p312, %p313
      %s316 = sadd.s32 %s315, 1
      %p319 = scmp.eq.s32.totalorder %s34, 2
      %p320 = scmp.ne.s32.totalorder %s315, %s317
      %p321 = scmp.eq.s32.totalorder %s34, 0
      %p322 = por %p320, %p321
      %p323 = scmp.ne.s32.totalorder %s315, %s317
      %p324 = scmp.eq.s32.totalorder %s39, 2
      %p325 = por %p323, %p324
      %p326 = scmp.ne.s32.totalorder %s317, %s318
      %p327 = scmp.eq.s32.totalorder %s39, 0
      %p328 = por %p326, %p327
      %p329 = scmp.ne.s32.totalorder %s317, %s318
      %p330 = scmp.eq.s32.totalorder %s40, 2
      %p331 = por %p329, %p330
      %p333 = scmp.ne.s32.totalorder %s318, %s332
      %p334 = scmp.eq.s32.totalorder %s40, 0
      %p335 = por %p333, %p334
      %s337 = sadd.s32 %s336, 1
      %p340 = scmp.eq.s32.totalorder %s34, 2
      %p341 = scmp.ne.s32.totalorder %s336, %s338
      %p342 = scmp.eq.s32.totalorder %s34, 0
      %p343 = por %p341, %p342
      %p344 = scmp.ne.s32.totalorder %s336, %s338
      %p345 = scmp.eq.s32.totalorder %s39, 2
      %p346 = por %p344, %p345
      %p347 = scmp.ne.s32.totalorder %s338, %s339
      %p348 = scmp.eq.s32.totalorder %s39, 0
      %p349 = por %p347, %p348
      %p350 = scmp.ne.s32.totalorder %s338, %s339
      %p351 = scmp.eq.s32.totalorder %s40, 2
      %p352 = por %p350, %p351
      %p354 = scmp.ne.s32.totalorder %s339, %s353
      %p355 = scmp.eq.s32.totalorder %s40, 0
      %p356 = por %p354, %p355
      %s358 = sadd.s32 %s357, 1
      %p361 = scmp.eq.s32.totalorder %s34, 2
      %p362 = scmp.ne.s32.totalorder %s357, %s359
      %p363 = scmp.eq.s32.totalorder %s34, 0
      %p364 = por %p362, %p363
      %p365 = scmp.ne.s32.totalorder %s357, %s359
      %p366 = scmp.eq.s32.totalorder %s39, 2
      %p367 = por %p365, %p366
      %p368 = scmp.ne.s32.totalorder %s359, %s360
      %p369 = scmp.eq.s32.totalorder %s39, 0
      %p370 = por %p368, %p369
      %p371 = scmp.ne.s32.totalorder %s359, %s360
      %p372 = scmp.eq.s32.totalorder %s40, 2
      %p373 = por %p371, %p372
      %p375 = scmp.ne.s32.totalorder %s360, %s374
      %p376 = scmp.eq.s32.totalorder %s40, 0
      %p377 = por %p375, %p376
      %s378 = ssub.s32 2, %s34
      %s379 = ssub.s32 2, %s41
      %s380 = ssub.s32 %s378, %s379
      %p381 = scmp.eq.s32.totalorder %s380, 0
      %s383 = sadd.s32 %s382, 1
      %s384 = scalar_select %p381, %s382, %s383
      %p387 = pneg %p381
      %p388 = scmp.eq.s32.totalorder %s34, 2
      %p389 = por %p387, %p388
      %p390 = scmp.ne.s32.totalorder %s382, %s385
      %p391 = scmp.eq.s32.totalorder %s34, 0
      %p392 = por %p390, %p391
      %p393 = scmp.ne.s32.totalorder %s382, %s385
      %p394 = scmp.eq.s32.totalorder %s39, 2
      %p395 = por %p393, %p394
      %p396 = scmp.ne.s32.totalorder %s385, %s386
      %p397 = scmp.eq.s32.totalorder %s39, 0
      %p398 = por %p396, %p397
      %p399 = scmp.ne.s32.totalorder %s385, %s386
      %p400 = scmp.eq.s32.totalorder %s40, 2
      %p401 = por %p399, %p400
      %p403 = scmp.ne.s32.totalorder %s386, %s402
      %p404 = scmp.eq.s32.totalorder %s40, 0
      %p405 = por %p403, %p404
      %p406 = scmp.le.s32.totalorder 1, %s34
      %p407 = scmp.lt.s32.totalorder %s34, 4
      %p408 = pnand %p406, %p407
      %p409 = pneg %p408
      // Predicated region
      $region9: #{tpu_custom_call.1} parent=5 // pred_check
        _
      $region10: #{tpu_custom_call.1} parent=5 // pred_check_branch
        %411 = sbr.rel (%p408) target = $region12
      $region11: #{tpu_custom_call.1} parent=5 // pred_region
        %s412 = ssub.s32 %s34, 1
        // Predicated region
        $region13: #{tpu_custom_call.1} parent=11 // pred_check
          %p413 = pneg %p139
        $region14: #{tpu_custom_call.1} parent=11 // pred_check_branch
          %415 = sbr.rel (%p413) target = $region16
        $region15: #{tpu_custom_call.1} parent=11 // pred_region
          %417 = vsyncadd [#allocation15], 0
          %s418 = sshll.u32 %s3, 4
          %s419 = int_to_ptr.hbm [resolvable:$true] %s418
          %s420 = sshll.u32 [#allocation14], 4
          %s421 = int_to_ptr.vmem [resolvable:$true] %s420
          %426 = dma.hbm_to_vmem [thread:$0]  %s419, 2048, %s421, [#allocation15], 128, 128, 8
        $region16: #{tpu_custom_call.1} parent=11 // pred_fallthru
          _
        // Predicated region
        $region17: #{tpu_custom_call.1} parent=11 // pred_check
          %p427 = pneg %p160
        $region18: #{tpu_custom_call.1} parent=11 // pred_check_branch
          %429 = sbr.rel (%p427) target = $region20
        $region19: #{tpu_custom_call.1} parent=11 // pred_region
          %431 = vsyncadd [#allocation15], 0
          %s432 = sshll.u32 %s4, 4
          %s433 = int_to_ptr.hbm [resolvable:$true] %s432
          %s434 = sshll.u32 [#allocation16], 4
          %s435 = int_to_ptr.vmem [resolvable:$true] %s434
          %440 = dma.hbm_to_vmem [thread:$0]  %s433, 2048, %s435, [#allocation15], 128, 128, 8
        $region20: #{tpu_custom_call.1} parent=11 // pred_fallthru
          _
        // Predicated region
        $region21: #{tpu_custom_call.1} parent=11 // pred_check
          %p441 = pneg %p181
        $region22: #{tpu_custom_call.1} parent=11 // pred_check_branch
          %443 = sbr.rel (%p441) target = $region24
        $region23: #{tpu_custom_call.1} parent=11 // pred_region
          %445 = vsyncadd [#allocation18], 0
          %s446 = sshll.u32 %s5, 4
          %s447 = int_to_ptr.hbm [resolvable:$true] %s446
          %s448 = sshll.u32 [#allocation17], 4
          %s449 = int_to_ptr.vmem [resolvable:$true] %s448
          %454 = dma.hbm_to_vmem [thread:$0]  %s447, 3072, %s449, [#allocation18], 192, 192, 12
        $region24: #{tpu_custom_call.1} parent=11 // pred_fallthru
          _
        // Predicated region
        $region25: #{tpu_custom_call.1} parent=11 // pred_check
          %p455 = pneg %p202
        $region26: #{tpu_custom_call.1} parent=11 // pred_check_branch
          %457 = sbr.rel (%p455) target = $region28
        $region27: #{tpu_custom_call.1} parent=11 // pred_region
          %459 = vsyncadd [#allocation18], 0
          %s460 = sshll.u32 %s6, 4
          %s461 = int_to_ptr.hbm [resolvable:$true] %s460
          %s462 = sshll.u32 [#allocation19], 4
          %s463 = int_to_ptr.vmem [resolvable:$true] %s462
          %468 = dma.hbm_to_vmem [thread:$0]  %s461, 3072, %s463, [#allocation18], 192, 192, 12
        $region28: #{tpu_custom_call.1} parent=11 // pred_fallthru
          _
        // Predicated region
        $region29: #{tpu_custom_call.1} parent=11 // pred_check
          %p469 = pneg %p223
        $region30: #{tpu_custom_call.1} parent=11 // pred_check_branch
          %471 = sbr.rel (%p469) target = $region32
        $region31: #{tpu_custom_call.1} parent=11 // pred_region
          %473 = vsyncadd [#allocation21], 0
          %s474 = sshll.u32 %s7, 4
          %s475 = int_to_ptr.hbm [resolvable:$true] %s474
          %s476 = sshll.u32 [#allocation20], 4
          %s477 = int_to_ptr.vmem [resolvable:$true] %s476
          %482 = dma.hbm_to_vmem [thread:$0]  %s475, 3072, %s477, [#allocation21], 192, 192, 12
        $region32: #{tpu_custom_call.1} parent=11 // pred_fallthru
          _
        // Predicated region
        $region33: #{tpu_custom_call.1} parent=11 // pred_check
          %p483 = pneg %p244
        $region34: #{tpu_custom_call.1} parent=11 // pred_check_branch
          %485 = sbr.rel (%p483) target = $region36
        $region35: #{tpu_custom_call.1} parent=11 // pred_region
          _
        $region36: #{tpu_custom_call.1} parent=11 // pred_fallthru
          _
        // Predicated region
        $region37: #{tpu_custom_call.1} parent=11 // pred_check
          %p486 = pneg %p265
        $region38: #{tpu_custom_call.1} parent=11 // pred_check_branch
          %488 = sbr.rel (%p486) target = $region40
        $region39: #{tpu_custom_call.1} parent=11 // pred_region
          _
        $region40: #{tpu_custom_call.1} parent=11 // pred_fallthru
          _
        // Predicated region
        $region41: #{tpu_custom_call.1} parent=11 // pred_check
          %p489 = pneg %p286
        $region42: #{tpu_custom_call.1} parent=11 // pred_check_branch
          %491 = sbr.rel (%p489) target = $region44
        $region43: #{tpu_custom_call.1} parent=11 // pred_region
          %493 = vsyncadd [#allocation21], 0
          %s494 = sshll.u32 %s10, 4
          %s495 = int_to_ptr.hbm [resolvable:$true] %s494
          %s496 = sshll.u32 [#allocation22], 4
          %s497 = int_to_ptr.vmem [resolvable:$true] %s496
          %502 = dma.hbm_to_vmem [thread:$0]  %s495, 3072, %s497, [#allocation21], 192, 192, 12
        $region44: #{tpu_custom_call.1} parent=11 // pred_fallthru
          _
        // Predicated region
        $region45: #{tpu_custom_call.1} parent=11 // pred_check
          %p503 = pneg %p307
        $region46: #{tpu_custom_call.1} parent=11 // pred_check_branch
          %505 = sbr.rel (%p503) target = $region48
        $region47: #{tpu_custom_call.1} parent=11 // pred_region
          %507 = vsyncadd [#allocation24], 0
          %s508 = sshll.u32 %s11, 4
          %s509 = int_to_ptr.hbm [resolvable:$true] %s508
          %s510 = sshll.u32 [#allocation23], 4
          %s511 = int_to_ptr.vmem [resolvable:$true] %s510
          %516 = dma.hbm_to_vmem [thread:$0]  %s509, 3072, %s511, [#allocation24], 192, 192, 12
        $region48: #{tpu_custom_call.1} parent=11 // pred_fallthru
          _
        // Predicated region
        $region49: #{tpu_custom_call.1} parent=11 // pred_check
          %p517 = pneg %p328
        $region50: #{tpu_custom_call.1} parent=11 // pred_check_branch
          %519 = sbr.rel (%p517) target = $region52
        $region51: #{tpu_custom_call.1} parent=11 // pred_region
          _
        $region52: #{tpu_custom_call.1} parent=11 // pred_fallthru
          _
        // Predicated region
        $region53: #{tpu_custom_call.1} parent=11 // pred_check
          %p520 = pneg %p349
        $region54: #{tpu_custom_call.1} parent=11 // pred_check_branch
          %522 = sbr.rel (%p520) target = $region56
        $region55: #{tpu_custom_call.1} parent=11 // pred_region
          _
        $region56: #{tpu_custom_call.1} parent=11 // pred_fallthru
          _
        // Predicated region
        $region57: #{tpu_custom_call.1} parent=11 // pred_check
          %p523 = pneg %p370
        $region58: #{tpu_custom_call.1} parent=11 // pred_check_branch
          %525 = sbr.rel (%p523) target = $region60
        $region59: #{tpu_custom_call.1} parent=11 // pred_region
          %527 = vsyncadd [#allocation24], 0
          %s528 = sshll.u32 %s14, 4
          %s529 = int_to_ptr.hbm [resolvable:$true] %s528
          %s530 = sshll.u32 [#allocation25], 4
          %s531 = int_to_ptr.vmem [resolvable:$true] %s530
          %536 = dma.hbm_to_vmem [thread:$0]  %s529, 2048, %s531, [#allocation24], 64, 64, 4
        $region60: #{tpu_custom_call.1} parent=11 // pred_fallthru
          _
      $region12: #{tpu_custom_call.1} parent=5 // pred_fallthru
        _
      %p537 = scmp.lt.s32.totalorder %s34, 3
      // Predicated region
      $region61: #{tpu_custom_call.1} parent=5 // pred_check
        %p538 = pneg %p537
      $region62: #{tpu_custom_call.1} parent=5 // pred_check_branch
        %540 = sbr.rel (%p538) target = $region64
      $region63: #{tpu_custom_call.1} parent=5 // pred_region
        // Predicated region
        $region65: #{tpu_custom_call.1} parent=63 // pred_check
          %p541 = pneg %p56
        $region66: #{tpu_custom_call.1} parent=63 // pred_check_branch
          %543 = sbr.rel (%p541) target = $region68
        $region67: #{tpu_custom_call.1} parent=63 // pred_region
          %s544 = sand.u32 %s46, 1
          %s545 = scalar_lea.sflag [#allocation9], %s544
          %s546 = sand.u32 %s46, 1
          %s547 = smul.addr %s546, 64
          %s548 = scalar_lea.vmem [#allocation8], %s547
          %s549 = ssub.s32 2, %s34
          %551 = vsyncadd %s545, 0
          %s552 = smul.addr %s549, 16
          %s553 = smul.addr %s552, 4
          %s554 = scalar_lea.hbm %s0, %s553
          %s555 = sshll.u32 %s554, 4
          %s556 = int_to_ptr.hbm [resolvable:$true] %s555
          %s557 = sshll.u32 %s548, 4
          %s558 = int_to_ptr.vmem [resolvable:$true] %s557
          %563 = dma.hbm_to_vmem [thread:$0]  %s556, 1024, %s558, %s545, 64, 64, 4
        $region68: #{tpu_custom_call.1} parent=63 // pred_fallthru
          _
        // Predicated region
        $region69: #{tpu_custom_call.1} parent=63 // pred_check
          %p564 = pneg %p84
        $region70: #{tpu_custom_call.1} parent=63 // pred_check_branch
          %566 = sbr.rel (%p564) target = $region72
        $region71: #{tpu_custom_call.1} parent=63 // pred_region
          %s567 = sand.u32 %s34, 1
          %s568 = scalar_lea.sflag [#allocation12], %s567
          %s569 = sand.u32 %s74, 1
          %s570 = smul.addr %s569, 64
          %s571 = scalar_lea.vmem [#allocation11], %s570
          %s572 = ssub.s32 2, %s34
          %574 = vsyncadd %s568, 0
          %s575 = smul.addr %s572, 16
          %s576 = smul.addr %s575, 4
          %s577 = scalar_lea.hbm %s1, %s576
          %s578 = sshll.u32 %s577, 4
          %s579 = int_to_ptr.hbm [resolvable:$true] %s578
          %s580 = sshll.u32 %s571, 4
          %s581 = int_to_ptr.vmem [resolvable:$true] %s580
          %586 = dma.hbm_to_vmem [thread:$0]  %s579, 1024, %s581, %s568, 64, 64, 4
        $region72: #{tpu_custom_call.1} parent=63 // pred_fallthru
          _
        // Predicated region
        $region73: #{tpu_custom_call.1} parent=63 // pred_check
          %p587 = pneg %p112
        $region74: #{tpu_custom_call.1} parent=63 // pred_check_branch
          %589 = sbr.rel (%p587) target = $region76
        $region75: #{tpu_custom_call.1} parent=63 // pred_region
          %s590 = sand.u32 %s34, 1
          %s591 = scalar_lea.sflag [#allocation12], %s590
          %s592 = sand.u32 %s102, 1
          %s593 = smul.addr %s592, 64
          %s594 = scalar_lea.vmem [#allocation13], %s593
          %s595 = ssub.s32 2, %s34
          %597 = vsyncadd %s591, 0
          %s598 = smul.addr %s595, 16
          %s599 = smul.addr %s598, 4
          %s600 = scalar_lea.hbm %s2, %s599
          %s601 = sshll.u32 %s600, 4
          %s602 = int_to_ptr.hbm [resolvable:$true] %s601
          %s603 = sshll.u32 %s594, 4
          %s604 = int_to_ptr.vmem [resolvable:$true] %s603
          %609 = dma.hbm_to_vmem [thread:$0]  %s602, 1024, %s604, %s591, 64, 64, 4
        $region76: #{tpu_custom_call.1} parent=63 // pred_fallthru
          _
      $region64: #{tpu_custom_call.1} parent=5 // pred_fallthru
        _
      %p610 = scmp.le.s32.totalorder 1, %s34
      %p611 = scmp.lt.s32.totalorder %s34, 4
      %p612 = pnand %p610, %p611
      %p613 = pneg %p612
      // Predicated region
      $region77: #{tpu_custom_call.1} parent=5 // pred_check
        _
      $region78: #{tpu_custom_call.1} parent=5 // pred_check_branch
        %615 = sbr.rel (%p612) target = $region80
      $region79: #{tpu_custom_call.1} parent=5 // pred_region
        %s616 = ssub.s32 %s34, 1
        %s617 = sand.u32 %s49, 1
        %s618 = scalar_lea.sflag [#allocation9], %s617
        %s619 = sand.u32 %s49, 1
        %s620 = smul.addr %s619, 64
        %s621 = scalar_lea.vmem [#allocation8], %s620
        // Predicated region
        $region81: #{tpu_custom_call.1} parent=79 // pred_check
          %p622 = pneg %p62
        $region82: #{tpu_custom_call.1} parent=79 // pred_check_branch
          %624 = sbr.rel (%p622) target = $region84
        $region83: #{tpu_custom_call.1} parent=79 // pred_region
          %626 = dma.done %s618, 1024
        $region84: #{tpu_custom_call.1} parent=79 // pred_fallthru
          _
        %s627 = sand.u32 %s39, 1
        %s628 = scalar_lea.sflag [#allocation12], %s627
        %s629 = sand.u32 %s77, 1
        %s630 = smul.addr %s629, 64
        %s631 = scalar_lea.vmem [#allocation11], %s630
        // Predicated region
        $region85: #{tpu_custom_call.1} parent=79 // pred_check
          %p632 = pneg %p90
        $region86: #{tpu_custom_call.1} parent=79 // pred_check_branch
          %634 = sbr.rel (%p632) target = $region88
        $region87: #{tpu_custom_call.1} parent=79 // pred_region
          %636 = dma.done %s628, 1024
        $region88: #{tpu_custom_call.1} parent=79 // pred_fallthru
          _
        %s637 = sand.u32 %s39, 1
        %s638 = scalar_lea.sflag [#allocation12], %s637
        %s639 = sand.u32 %s105, 1
        %s640 = smul.addr %s639, 64
        %s641 = scalar_lea.vmem [#allocation13], %s640
        // Predicated region
        $region89: #{tpu_custom_call.1} parent=79 // pred_check
          %p642 = pneg %p118
        $region90: #{tpu_custom_call.1} parent=79 // pred_check_branch
          %644 = sbr.rel (%p642) target = $region92
        $region91: #{tpu_custom_call.1} parent=79 // pred_region
          %646 = dma.done %s638, 1024
        $region92: #{tpu_custom_call.1} parent=79 // pred_fallthru
          _
        // Predicated region
        $region93: #{tpu_custom_call.1} parent=79 // pred_check
          %p647 = pneg %p139
        $region94: #{tpu_custom_call.1} parent=79 // pred_check_branch
          %649 = sbr.rel (%p647) target = $region96
        $region95: #{tpu_custom_call.1} parent=79 // pred_region
          %651 = dma.done [#allocation15], 2048
        $region96: #{tpu_custom_call.1} parent=79 // pred_fallthru
          _
        // Predicated region
        $region97: #{tpu_custom_call.1} parent=79 // pred_check
          %p652 = pneg %p160
        $region98: #{tpu_custom_call.1} parent=79 // pred_check_branch
          %654 = sbr.rel (%p652) target = $region100
        $region99: #{tpu_custom_call.1} parent=79 // pred_region
          %656 = dma.done [#allocation15], 2048
        $region100: #{tpu_custom_call.1} parent=79 // pred_fallthru
          _
        // Predicated region
        $region101: #{tpu_custom_call.1} parent=79 // pred_check
          %p657 = pneg %p181
        $region102: #{tpu_custom_call.1} parent=79 // pred_check_branch
          %659 = sbr.rel (%p657) target = $region104
        $region103: #{tpu_custom_call.1} parent=79 // pred_region
          %661 = dma.done [#allocation18], 3072
        $region104: #{tpu_custom_call.1} parent=79 // pred_fallthru
          _
        // Predicated region
        $region105: #{tpu_custom_call.1} parent=79 // pred_check
          %p662 = pneg %p202
        $region106: #{tpu_custom_call.1} parent=79 // pred_check_branch
          %664 = sbr.rel (%p662) target = $region108
        $region107: #{tpu_custom_call.1} parent=79 // pred_region
          %666 = dma.done [#allocation18], 3072
        $region108: #{tpu_custom_call.1} parent=79 // pred_fallthru
          _
        // Predicated region
        $region109: #{tpu_custom_call.1} parent=79 // pred_check
          %p667 = pneg %p223
        $region110: #{tpu_custom_call.1} parent=79 // pred_check_branch
          %669 = sbr.rel (%p667) target = $region112
        $region111: #{tpu_custom_call.1} parent=79 // pred_region
          %671 = dma.done [#allocation21], 3072
        $region112: #{tpu_custom_call.1} parent=79 // pred_fallthru
          _
        // Predicated region
        $region113: #{tpu_custom_call.1} parent=79 // pred_check
          %p672 = pneg %p286
        $region114: #{tpu_custom_call.1} parent=79 // pred_check_branch
          %674 = sbr.rel (%p672) target = $region116
        $region115: #{tpu_custom_call.1} parent=79 // pred_region
          %676 = dma.done [#allocation21], 3072
        $region116: #{tpu_custom_call.1} parent=79 // pred_fallthru
          _
        // Predicated region
        $region117: #{tpu_custom_call.1} parent=79 // pred_check
          %p677 = pneg %p307
        $region118: #{tpu_custom_call.1} parent=79 // pred_check_branch
          %679 = sbr.rel (%p677) target = $region120
        $region119: #{tpu_custom_call.1} parent=79 // pred_region
          %681 = dma.done [#allocation24], 3072
        $region120: #{tpu_custom_call.1} parent=79 // pred_fallthru
          _
        // Predicated region
        $region121: #{tpu_custom_call.1} parent=79 // pred_check
          %p682 = pneg %p370
        $region122: #{tpu_custom_call.1} parent=79 // pred_check_branch
          %684 = sbr.rel (%p682) target = $region124
        $region123: #{tpu_custom_call.1} parent=79 // pred_region
          %686 = dma.done [#allocation24], 2048
        $region124: #{tpu_custom_call.1} parent=79 // pred_fallthru
          _
        %s687 = sand.u32 %s49, 1
        %s688 = scalar_lea.sflag [#allocation9], %s687
        %s689 = sand.u32 %s49, 1
        %s690 = smul.addr %s689, 64
        %s691 = scalar_lea.vmem [#allocation8], %s690
        %p692 = pneg %p62
        %p693 = pneg %p59
        %s694 = sand.u32 %s39, 1
        %s695 = scalar_lea.sflag [#allocation12], %s694
        %s696 = sand.u32 %s77, 1
        %s697 = smul.addr %s696, 64
        %s698 = scalar_lea.vmem [#allocation11], %s697
        %p699 = pneg %p90
        %p700 = pneg %p87
        %s701 = sand.u32 %s39, 1
        %s702 = scalar_lea.sflag [#allocation12], %s701
        %s703 = sand.u32 %s105, 1
        %s704 = smul.addr %s703, 64
        %s705 = scalar_lea.vmem [#allocation13], %s704
        %p706 = pneg %p118
        %p707 = pneg %p115
        %p708 = pneg %p139
        %p709 = pneg %p136
        %p710 = pneg %p160
        %p711 = pneg %p157
        %p712 = pneg %p181
        %p713 = pneg %p178
        %p714 = pneg %p202
        %p715 = pneg %p199
        %p716 = pneg %p223
        %p717 = pneg %p220
        %p718 = pneg %p244
        %p719 = pneg %p241
        %p720 = pneg %p265
        %p721 = pneg %p262
        %p722 = pneg %p286
        %p723 = pneg %p283
        %p724 = pneg %p307
        %p725 = pneg %p304
        %p726 = pneg %p328
        %p727 = pneg %p325
        %p728 = pneg %p349
        %p729 = pneg %p346
        %p730 = pneg %p370
        %p731 = pneg %p367
        %p732 = pneg %p398
        %p733 = pneg %p395
        %s734 = sand.u32 %s385, 1
        %s735 = scalar_lea.sflag [#allocation10], %s734
        %s736 = sand.u32 %s385, 1
        %s737 = smul.addr %s736, 64
        %s738 = scalar_lea.vmem [#allocation26], %s737
        %s739 = ssub.s32 2, %s39
        %s740 = ssub.s32 2, %s39
        %s741 = ssub.s32 2, %s39
        %s742 = ssub.s32 2, %s39
        %p743 = scmp.eq.s32.totalorder %s39, 0
        // Predicated region
        $region125: #{tpu_custom_call.1} parent=79 // pred_check
          %p744 = pneg %p743
        $region126: #{tpu_custom_call.1} parent=79 // pred_check_branch
          %746 = sbr.rel (%p744) target = $region128
        $region127: #{tpu_custom_call.1} parent=79 // pred_region
          %v747 = vld [vmem:[#allocation14] sm:$0xff]
          %v748 = vld [vmem:[#allocation14 + $0x8] sm:$0xff]
          %v749 = vld [vmem:[#allocation14 + $0x10] sm:$0xff]
          %v750 = vld [vmem:[#allocation14 + $0x18] sm:$0xff]
          %v751 = vld [vmem:[#allocation14 + $0x20] sm:$0xff]
          %v752 = vld [vmem:[#allocation14 + $0x28] sm:$0xff]
          %v753 = vld [vmem:[#allocation14 + $0x30] sm:$0xff]
          %v754 = vld [vmem:[#allocation14 + $0x38] sm:$0xff]
          %v755 = vld [vmem:[#allocation14 + $0x40] sm:$0xff]
          %v756 = vld [vmem:[#allocation14 + $0x48] sm:$0xff]
          %v757 = vld [vmem:[#allocation14 + $0x50] sm:$0xff]
          %v758 = vld [vmem:[#allocation14 + $0x58] sm:$0xff]
          %v759 = vld [vmem:[#allocation14 + $0x60] sm:$0xff]
          %v760 = vld [vmem:[#allocation14 + $0x68] sm:$0xff]
          %v761 = vld [vmem:[#allocation14 + $0x70] sm:$0xff]
          %v762 = vld [vmem:[#allocation14 + $0x78] sm:$0xff]
          %v763 = vmul.f32 %v747, %v747
          %v764 = vmul.f32 %v748, %v748
          %v765 = vmul.f32 %v749, %v749
          %v766 = vmul.f32 %v750, %v750
          %v767 = vmul.f32 %v751, %v751
          %v768 = vmul.f32 %v752, %v752
          %v769 = vmul.f32 %v753, %v753
          %v770 = vmul.f32 %v754, %v754
          %v771 = vmul.f32 %v755, %v755
          %v772 = vmul.f32 %v756, %v756
          %v773 = vmul.f32 %v757, %v757
          %v774 = vmul.f32 %v758, %v758
          %v775 = vmul.f32 %v759, %v759
          %v776 = vmul.f32 %v760, %v760
          %v777 = vmul.f32 %v761, %v761
          %v778 = vmul.f32 %v762, %v762
          %779 = vadd.xlane.f32.xlu0 %v763
          %v780 = vpop.xlane.xlu0 %779
          %781 = vadd.xlane.f32.xlu0 %v764
          %v782 = vpop.xlane.xlu0 %781
          %783 = vadd.xlane.f32.xlu0 %v765
          %v784 = vpop.xlane.xlu0 %783
          %785 = vadd.xlane.f32.xlu0 %v766
          %v786 = vpop.xlane.xlu0 %785
          %787 = vadd.xlane.f32.xlu0 %v767
          %v788 = vpop.xlane.xlu0 %787
          %789 = vadd.xlane.f32.xlu0 %v768
          %v790 = vpop.xlane.xlu0 %789
          %791 = vadd.xlane.f32.xlu0 %v769
          %v792 = vpop.xlane.xlu0 %791
          %793 = vadd.xlane.f32.xlu0 %v770
          %v794 = vpop.xlane.xlu0 %793
          %795 = vadd.xlane.f32.xlu0 %v771
          %v796 = vpop.xlane.xlu0 %795
          %797 = vadd.xlane.f32.xlu0 %v772
          %v798 = vpop.xlane.xlu0 %797
          %799 = vadd.xlane.f32.xlu0 %v773
          %v800 = vpop.xlane.xlu0 %799
          %801 = vadd.xlane.f32.xlu0 %v774
          %v802 = vpop.xlane.xlu0 %801
          %803 = vadd.xlane.f32.xlu0 %v775
          %v804 = vpop.xlane.xlu0 %803
          %805 = vadd.xlane.f32.xlu0 %v776
          %v806 = vpop.xlane.xlu0 %805
          %807 = vadd.xlane.f32.xlu0 %v777
          %v808 = vpop.xlane.xlu0 %807
          %809 = vadd.xlane.f32.xlu0 %v778
          %v810 = vpop.xlane.xlu0 %809
          %v811 = vmax.f32 %v780, 1e-24
          %v812 = vmax.f32 %v782, 1e-24
          %v813 = vmax.f32 %v784, 1e-24
          %v814 = vmax.f32 %v786, 1e-24
          %v815 = vmax.f32 %v788, 1e-24
          %v816 = vmax.f32 %v790, 1e-24
          %v817 = vmax.f32 %v792, 1e-24
          %v818 = vmax.f32 %v794, 1e-24
          %v819 = vmax.f32 %v796, 1e-24
          %v820 = vmax.f32 %v798, 1e-24
          %v821 = vmax.f32 %v800, 1e-24
          %v822 = vmax.f32 %v802, 1e-24
          %v823 = vmax.f32 %v804, 1e-24
          %v824 = vmax.f32 %v806, 1e-24
          %v825 = vmax.f32 %v808, 1e-24
          %v826 = vmax.f32 %v810, 1e-24
          %v827 = vrsqrt.pop %v811
          %v828 = vmul.f32 %v827, %v811
          %v829 = vmul.f32 %v828, %v827
          %v830 = vmul.f32 0.5, %v829
          %v831 = vsub.f32 1.5, %v830
          %v832 = vmul.f32 %v827, %v831
          %vm833 = vweird.f32 %v811
          %vm834 = vweird.f32 %v827
          %vm835 = vmor %vm833, %vm834
          %v836 = vsel %vm835, %v827, %v832
          %v837 = vrsqrt.pop %v812
          %v838 = vmul.f32 %v837, %v812
          %v839 = vmul.f32 %v838, %v837
          %v840 = vmul.f32 0.5, %v839
          %v841 = vsub.f32 1.5, %v840
          %v842 = vmul.f32 %v837, %v841
          %vm843 = vweird.f32 %v812
          %vm844 = vweird.f32 %v837
          %vm845 = vmor %vm843, %vm844
          %v846 = vsel %vm845, %v837, %v842
          %v847 = vrsqrt.pop %v813
          %v848 = vmul.f32 %v847, %v813
          %v849 = vmul.f32 %v848, %v847
          %v850 = vmul.f32 0.5, %v849
          %v851 = vsub.f32 1.5, %v850
          %v852 = vmul.f32 %v847, %v851
          %vm853 = vweird.f32 %v813
          %vm854 = vweird.f32 %v847
          %vm855 = vmor %vm853, %vm854
          %v856 = vsel %vm855, %v847, %v852
          %v857 = vrsqrt.pop %v814
          %v858 = vmul.f32 %v857, %v814
          %v859 = vmul.f32 %v858, %v857
          %v860 = vmul.f32 0.5, %v859
          %v861 = vsub.f32 1.5, %v860
          %v862 = vmul.f32 %v857, %v861
          %vm863 = vweird.f32 %v814
          %vm864 = vweird.f32 %v857
          %vm865 = vmor %vm863, %vm864
          %v866 = vsel %vm865, %v857, %v862
          %v867 = vrsqrt.pop %v815
          %v868 = vmul.f32 %v867, %v815
          %v869 = vmul.f32 %v868, %v867
          %v870 = vmul.f32 0.5, %v869
          %v871 = vsub.f32 1.5, %v870
          %v872 = vmul.f32 %v867, %v871
          %vm873 = vweird.f32 %v815
          %vm874 = vweird.f32 %v867
          %vm875 = vmor %vm873, %vm874
          %v876 = vsel %vm875, %v867, %v872
          %v877 = vrsqrt.pop %v816
          %v878 = vmul.f32 %v877, %v816
          %v879 = vmul.f32 %v878, %v877
          %v880 = vmul.f32 0.5, %v879
          %v881 = vsub.f32 1.5, %v880
          %v882 = vmul.f32 %v877, %v881
          %vm883 = vweird.f32 %v816
          %vm884 = vweird.f32 %v877
          %vm885 = vmor %vm883, %vm884
          %v886 = vsel %vm885, %v877, %v882
          %v887 = vrsqrt.pop %v817
          %v888 = vmul.f32 %v887, %v817
          %v889 = vmul.f32 %v888, %v887
          %v890 = vmul.f32 0.5, %v889
          %v891 = vsub.f32 1.5, %v890
          %v892 = vmul.f32 %v887, %v891
          %vm893 = vweird.f32 %v817
          %vm894 = vweird.f32 %v887
          %vm895 = vmor %vm893, %vm894
          %v896 = vsel %vm895, %v887, %v892
          %v897 = vrsqrt.pop %v818
          %v898 = vmul.f32 %v897, %v818
          %v899 = vmul.f32 %v898, %v897
          %v900 = vmul.f32 0.5, %v899
          %v901 = vsub.f32 1.5, %v900
          %v902 = vmul.f32 %v897, %v901
          %vm903 = vweird.f32 %v818
          %vm904 = vweird.f32 %v897
          %vm905 = vmor %vm903, %vm904
          %v906 = vsel %vm905, %v897, %v902
          %v907 = vrsqrt.pop %v819
          %v908 = vmul.f32 %v907, %v819
          %v909 = vmul.f32 %v908, %v907
          %v910 = vmul.f32 0.5, %v909
          %v911 = vsub.f32 1.5, %v910
          %v912 = vmul.f32 %v907, %v911
          %vm913 = vweird.f32 %v819
          %vm914 = vweird.f32 %v907
          %vm915 = vmor %vm913, %vm914
          %v916 = vsel %vm915, %v907, %v912
          %v917 = vrsqrt.pop %v820
          %v918 = vmul.f32 %v917, %v820
          %v919 = vmul.f32 %v918, %v917
          %v920 = vmul.f32 0.5, %v919
          %v921 = vsub.f32 1.5, %v920
          %v922 = vmul.f32 %v917, %v921
          %vm923 = vweird.f32 %v820
          %vm924 = vweird.f32 %v917
          %vm925 = vmor %vm923, %vm924
          %v926 = vsel %vm925, %v917, %v922
          %v927 = vrsqrt.pop %v821
          %v928 = vmul.f32 %v927, %v821
          %v929 = vmul.f32 %v928, %v927
          %v930 = vmul.f32 0.5, %v929
          %v931 = vsub.f32 1.5, %v930
          %v932 = vmul.f32 %v927, %v931
          %vm933 = vweird.f32 %v821
          %vm934 = vweird.f32 %v927
          %vm935 = vmor %vm933, %vm934
          %v936 = vsel %vm935, %v927, %v932
          %v937 = vrsqrt.pop %v822
          %v938 = vmul.f32 %v937, %v822
          %v939 = vmul.f32 %v938, %v937
          %v940 = vmul.f32 0.5, %v939
          %v941 = vsub.f32 1.5, %v940
          %v942 = vmul.f32 %v937, %v941
          %vm943 = vweird.f32 %v822
          %vm944 = vweird.f32 %v937
          %vm945 = vmor %vm943, %vm944
          %v946 = vsel %vm945, %v937, %v942
          %v947 = vrsqrt.pop %v823
          %v948 = vmul.f32 %v947, %v823
          %v949 = vmul.f32 %v948, %v947
          %v950 = vmul.f32 0.5, %v949
          %v951 = vsub.f32 1.5, %v950
          %v952 = vmul.f32 %v947, %v951
          %vm953 = vweird.f32 %v823
          %vm954 = vweird.f32 %v947
          %vm955 = vmor %vm953, %vm954
          %v956 = vsel %vm955, %v947, %v952
          %v957 = vrsqrt.pop %v824
          %v958 = vmul.f32 %v957, %v824
          %v959 = vmul.f32 %v958, %v957
          %v960 = vmul.f32 0.5, %v959
          %v961 = vsub.f32 1.5, %v960
          %v962 = vmul.f32 %v957, %v961
          %vm963 = vweird.f32 %v824
          %vm964 = vweird.f32 %v957
          %vm965 = vmor %vm963, %vm964
          %v966 = vsel %vm965, %v957, %v962
          %v967 = vrsqrt.pop %v825
          %v968 = vmul.f32 %v967, %v825
          %v969 = vmul.f32 %v968, %v967
          %v970 = vmul.f32 0.5, %v969
          %v971 = vsub.f32 1.5, %v970
          %v972 = vmul.f32 %v967, %v971
          %vm973 = vweird.f32 %v825
          %vm974 = vweird.f32 %v967
          %vm975 = vmor %vm973, %vm974
          %v976 = vsel %vm975, %v967, %v972
          %v977 = vrsqrt.pop %v826
          %v978 = vmul.f32 %v977, %v826
          %v979 = vmul.f32 %v978, %v977
          %v980 = vmul.f32 0.5, %v979
          %v981 = vsub.f32 1.5, %v980
          %v982 = vmul.f32 %v977, %v981
          %vm983 = vweird.f32 %v826
          %vm984 = vweird.f32 %v977
          %vm985 = vmor %vm983, %vm984
          %v986 = vsel %vm985, %v977, %v982
          %v987 = vmul.f32 %v747, %v836
          %v988 = vmul.f32 %v748, %v846
          %v989 = vmul.f32 %v749, %v856
          %v990 = vmul.f32 %v750, %v866
          %v991 = vmul.f32 %v751, %v876
          %v992 = vmul.f32 %v752, %v886
          %v993 = vmul.f32 %v753, %v896
          %v994 = vmul.f32 %v754, %v906
          %v995 = vmul.f32 %v755, %v916
          %v996 = vmul.f32 %v756, %v926
          %v997 = vmul.f32 %v757, %v936
          %v998 = vmul.f32 %v758, %v946
          %v999 = vmul.f32 %v759, %v956
          %v1000 = vmul.f32 %v760, %v966
          %v1001 = vmul.f32 %v761, %v976
          %v1002 = vmul.f32 %v762, %v986
          %1003 = vst [vmem:[#allocation5] sm:$0xff] %v987
          %1004 = vst [vmem:[#allocation5 + $0x8] sm:$0xff] %v988
          %1005 = vst [vmem:[#allocation5 + $0x10] sm:$0xff] %v989
          %1006 = vst [vmem:[#allocation5 + $0x18] sm:$0xff] %v990
          %1007 = vst [vmem:[#allocation5 + $0x20] sm:$0xff] %v991
          %1008 = vst [vmem:[#allocation5 + $0x28] sm:$0xff] %v992
          %1009 = vst [vmem:[#allocation5 + $0x30] sm:$0xff] %v993
          %1010 = vst [vmem:[#allocation5 + $0x38] sm:$0xff] %v994
          %1011 = vst [vmem:[#allocation5 + $0x40] sm:$0xff] %v995
          %1012 = vst [vmem:[#allocation5 + $0x48] sm:$0xff] %v996
          %1013 = vst [vmem:[#allocation5 + $0x50] sm:$0xff] %v997
          %1014 = vst [vmem:[#allocation5 + $0x58] sm:$0xff] %v998
          %1015 = vst [vmem:[#allocation5 + $0x60] sm:$0xff] %v999
          %1016 = vst [vmem:[#allocation5 + $0x68] sm:$0xff] %v1000
          %1017 = vst [vmem:[#allocation5 + $0x70] sm:$0xff] %v1001
          %1018 = vst [vmem:[#allocation5 + $0x78] sm:$0xff] %v1002
          %v1019 = vpack.c.bf16 %v987, %v987
          %v1020 = vpack.c.bf16 %v988, %v988
          %v1021 = vpack.c.bf16 %v989, %v989
          %v1022 = vpack.c.bf16 %v990, %v990
          %v1023 = vpack.c.bf16 %v991, %v991
          %v1024 = vpack.c.bf16 %v992, %v992
          %v1025 = vpack.c.bf16 %v993, %v993
          %v1026 = vpack.c.bf16 %v994, %v994
          %v1027 = vpack.c.bf16 %v995, %v995
          %v1028 = vpack.c.bf16 %v996, %v996
          %v1029 = vpack.c.bf16 %v997, %v997
          %v1030 = vpack.c.bf16 %v998, %v998
          %v1031 = vpack.c.bf16 %v999, %v999
          %v1032 = vpack.c.bf16 %v1000, %v1000
          %v1033 = vpack.c.bf16 %v1001, %v1001
          %v1034 = vpack.c.bf16 %v1002, %v1002
          %1035 = vst [vmem:[#allocation2 + $0x4] sm:$0xf] %v1019
          %1036 = vst [vmem:[#allocation2 + $0xc] sm:$0xf] %v1020
          %1037 = vst [vmem:[#allocation2 + $0x14] sm:$0xf] %v1021
          %1038 = vst [vmem:[#allocation2 + $0x1c] sm:$0xf] %v1022
          %1039 = vst [vmem:[#allocation2 + $0x24] sm:$0xf] %v1023
          %1040 = vst [vmem:[#allocation2 + $0x2c] sm:$0xf] %v1024
          %1041 = vst [vmem:[#allocation2 + $0x34] sm:$0xf] %v1025
          %1042 = vst [vmem:[#allocation2 + $0x3c] sm:$0xf] %v1026
          %1043 = vst [vmem:[#allocation2 + $0x44] sm:$0xf] %v1027
          %1044 = vst [vmem:[#allocation2 + $0x4c] sm:$0xf] %v1028
          %1045 = vst [vmem:[#allocation2 + $0x54] sm:$0xf] %v1029
          %1046 = vst [vmem:[#allocation2 + $0x5c] sm:$0xf] %v1030
          %1047 = vst [vmem:[#allocation2 + $0x64] sm:$0xf] %v1031
          %1048 = vst [vmem:[#allocation2 + $0x6c] sm:$0xf] %v1032
          %1049 = vst [vmem:[#allocation2 + $0x74] sm:$0xf] %v1033
          %1050 = vst [vmem:[#allocation2 + $0x7c] sm:$0xf] %v1034
          %v1051 = vld [vmem:[#allocation16] sm:$0xff]
          %v1052 = vld [vmem:[#allocation16 + $0x8] sm:$0xff]
          %v1053 = vld [vmem:[#allocation16 + $0x10] sm:$0xff]
          %v1054 = vld [vmem:[#allocation16 + $0x18] sm:$0xff]
          %v1055 = vld [vmem:[#allocation16 + $0x20] sm:$0xff]
          %v1056 = vld [vmem:[#allocation16 + $0x28] sm:$0xff]
          %v1057 = vld [vmem:[#allocation16 + $0x30] sm:$0xff]
          %v1058 = vld [vmem:[#allocation16 + $0x38] sm:$0xff]
          %v1059 = vld [vmem:[#allocation16 + $0x40] sm:$0xff]
          %v1060 = vld [vmem:[#allocation16 + $0x48] sm:$0xff]
          %v1061 = vld [vmem:[#allocation16 + $0x50] sm:$0xff]
          %v1062 = vld [vmem:[#allocation16 + $0x58] sm:$0xff]
          %v1063 = vld [vmem:[#allocation16 + $0x60] sm:$0xff]
          %v1064 = vld [vmem:[#allocation16 + $0x68] sm:$0xff]
          %v1065 = vld [vmem:[#allocation16 + $0x70] sm:$0xff]
          %v1066 = vld [vmem:[#allocation16 + $0x78] sm:$0xff]
          %1067 = vst [vmem:[#allocation3] sm:$0xff] %v1051
          %1068 = vst [vmem:[#allocation3 + $0x8] sm:$0xff] %v1052
          %1069 = vst [vmem:[#allocation3 + $0x10] sm:$0xff] %v1053
          %1070 = vst [vmem:[#allocation3 + $0x18] sm:$0xff] %v1054
          %1071 = vst [vmem:[#allocation3 + $0x20] sm:$0xff] %v1055
          %1072 = vst [vmem:[#allocation3 + $0x28] sm:$0xff] %v1056
          %1073 = vst [vmem:[#allocation3 + $0x30] sm:$0xff] %v1057
          %1074 = vst [vmem:[#allocation3 + $0x38] sm:$0xff] %v1058
          %1075 = vst [vmem:[#allocation3 + $0x40] sm:$0xff] %v1059
          %1076 = vst [vmem:[#allocation3 + $0x48] sm:$0xff] %v1060
          %1077 = vst [vmem:[#allocation3 + $0x50] sm:$0xff] %v1061
          %1078 = vst [vmem:[#allocation3 + $0x58] sm:$0xff] %v1062
          %1079 = vst [vmem:[#allocation3 + $0x60] sm:$0xff] %v1063
          %1080 = vst [vmem:[#allocation3 + $0x68] sm:$0xff] %v1064
          %1081 = vst [vmem:[#allocation3 + $0x70] sm:$0xff] %v1065
          %1082 = vst [vmem:[#allocation3 + $0x78] sm:$0xff] %v1066
          %v1083 = vld [vmem:[#allocation16] sm:$0xff]
          %v1084 = vld [vmem:[#allocation16 + $0x8] sm:$0xff]
          %v1085 = vld [vmem:[#allocation16 + $0x10] sm:$0xff]
          %v1086 = vld [vmem:[#allocation16 + $0x18] sm:$0xff]
          %v1087 = vld [vmem:[#allocation16 + $0x20] sm:$0xff]
          %v1088 = vld [vmem:[#allocation16 + $0x28] sm:$0xff]
          %v1089 = vld [vmem:[#allocation16 + $0x30] sm:$0xff]
          %v1090 = vld [vmem:[#allocation16 + $0x38] sm:$0xff]
          %v1091 = vld [vmem:[#allocation16 + $0x40] sm:$0xff]
          %v1092 = vld [vmem:[#allocation16 + $0x48] sm:$0xff]
          %v1093 = vld [vmem:[#allocation16 + $0x50] sm:$0xff]
          %v1094 = vld [vmem:[#allocation16 + $0x58] sm:$0xff]
          %v1095 = vld [vmem:[#allocation16 + $0x60] sm:$0xff]
          %v1096 = vld [vmem:[#allocation16 + $0x68] sm:$0xff]
          %v1097 = vld [vmem:[#allocation16 + $0x70] sm:$0xff]
          %v1098 = vld [vmem:[#allocation16 + $0x78] sm:$0xff]
          %v1099 = vpack.c.bf16 %v1083, %v1083
          %v1100 = vpack.c.bf16 %v1084, %v1084
          %v1101 = vpack.c.bf16 %v1085, %v1085
          %v1102 = vpack.c.bf16 %v1086, %v1086
          %v1103 = vpack.c.bf16 %v1087, %v1087
          %v1104 = vpack.c.bf16 %v1088, %v1088
          %v1105 = vpack.c.bf16 %v1089, %v1089
          %v1106 = vpack.c.bf16 %v1090, %v1090
          %v1107 = vpack.c.bf16 %v1091, %v1091
          %v1108 = vpack.c.bf16 %v1092, %v1092
          %v1109 = vpack.c.bf16 %v1093, %v1093
          %v1110 = vpack.c.bf16 %v1094, %v1094
          %v1111 = vpack.c.bf16 %v1095, %v1095
          %v1112 = vpack.c.bf16 %v1096, %v1096
          %v1113 = vpack.c.bf16 %v1097, %v1097
          %v1114 = vpack.c.bf16 %v1098, %v1098
          %1115 = vst [vmem:[#allocation4] sm:$0xf] %v1099
          %1116 = vst [vmem:[#allocation4 + $0x4] sm:$0xf] %v1100
          %1117 = vst [vmem:[#allocation4 + $0x8] sm:$0xf] %v1101
          %1118 = vst [vmem:[#allocation4 + $0xc] sm:$0xf] %v1102
          %1119 = vst [vmem:[#allocation4 + $0x10] sm:$0xf] %v1103
          %1120 = vst [vmem:[#allocation4 + $0x14] sm:$0xf] %v1104
          %1121 = vst [vmem:[#allocation4 + $0x18] sm:$0xf] %v1105
          %1122 = vst [vmem:[#allocation4 + $0x1c] sm:$0xf] %v1106
          %1123 = vst [vmem:[#allocation4 + $0x20] sm:$0xf] %v1107
          %1124 = vst [vmem:[#allocation4 + $0x24] sm:$0xf] %v1108
          %1125 = vst [vmem:[#allocation4 + $0x28] sm:$0xf] %v1109
          %1126 = vst [vmem:[#allocation4 + $0x2c] sm:$0xf] %v1110
          %1127 = vst [vmem:[#allocation4 + $0x30] sm:$0xf] %v1111
          %1128 = vst [vmem:[#allocation4 + $0x34] sm:$0xf] %v1112
          %1129 = vst [vmem:[#allocation4 + $0x38] sm:$0xf] %v1113
          %1130 = vst [vmem:[#allocation4 + $0x3c] sm:$0xf] %v1114
          %v1131 = vld [vmem:[#allocation16] sm:$0xff]
          %v1132 = vld [vmem:[#allocation16 + $0x8] sm:$0xff]
          %v1133 = vld [vmem:[#allocation16 + $0x10] sm:$0xff]
          %v1134 = vld [vmem:[#allocation16 + $0x18] sm:$0xff]
          %v1135 = vld [vmem:[#allocation16 + $0x20] sm:$0xff]
          %v1136 = vld [vmem:[#allocation16 + $0x28] sm:$0xff]
          %v1137 = vld [vmem:[#allocation16 + $0x30] sm:$0xff]
          %v1138 = vld [vmem:[#allocation16 + $0x38] sm:$0xff]
          %v1139 = vld [vmem:[#allocation16 + $0x40] sm:$0xff]
          %v1140 = vld [vmem:[#allocation16 + $0x48] sm:$0xff]
          %v1141 = vld [vmem:[#allocation16 + $0x50] sm:$0xff]
          %v1142 = vld [vmem:[#allocation16 + $0x58] sm:$0xff]
          %v1143 = vld [vmem:[#allocation16 + $0x60] sm:$0xff]
          %v1144 = vld [vmem:[#allocation16 + $0x68] sm:$0xff]
          %v1145 = vld [vmem:[#allocation16 + $0x70] sm:$0xff]
          %v1146 = vld [vmem:[#allocation16 + $0x78] sm:$0xff]
          %v1147 = vpack.c.bf16 %v1132, %v1131
          %v1148 = vpack.c.bf16 %v1134, %v1133
          %v1149 = vpack.c.bf16 %v1136, %v1135
          %v1150 = vpack.c.bf16 %v1138, %v1137
          %v1151 = vpack.c.bf16 %v1140, %v1139
          %v1152 = vpack.c.bf16 %v1142, %v1141
          %v1153 = vpack.c.bf16 %v1144, %v1143
          %v1154 = vpack.c.bf16 %v1146, %v1145
          %v1155 = vld [vmem:[#allocation17] sm:$0xff]
          %v1156 = vld [vmem:[#allocation17 + $0x8] sm:$0xf]
          %v1157 = vld [vmem:[#allocation17 + $0xc] sm:$0xff]
          %v1158 = vld [vmem:[#allocation17 + $0x14] sm:$0xf]
          %v1159 = vld [vmem:[#allocation17 + $0x18] sm:$0xff]
          %v1160 = vld [vmem:[#allocation17 + $0x20] sm:$0xf]
          %v1161 = vld [vmem:[#allocation17 + $0x24] sm:$0xff]
          %v1162 = vld [vmem:[#allocation17 + $0x2c] sm:$0xf]
          %v1163 = vld [vmem:[#allocation17 + $0x30] sm:$0xff]
          %v1164 = vld [vmem:[#allocation17 + $0x38] sm:$0xf]
          %v1165 = vld [vmem:[#allocation17 + $0x3c] sm:$0xff]
          %v1166 = vld [vmem:[#allocation17 + $0x44] sm:$0xf]
          %v1167 = vld [vmem:[#allocation17 + $0x48] sm:$0xff]
          %v1168 = vld [vmem:[#allocation17 + $0x50] sm:$0xf]
          %v1169 = vld [vmem:[#allocation17 + $0x54] sm:$0xff]
          %v1170 = vld [vmem:[#allocation17 + $0x5c] sm:$0xf]
          %v1171 = vld [vmem:[#allocation17 + $0x60] sm:$0xff]
          %v1172 = vld [vmem:[#allocation17 + $0x68] sm:$0xf]
          %v1173 = vld [vmem:[#allocation17 + $0x6c] sm:$0xff]
          %v1174 = vld [vmem:[#allocation17 + $0x74] sm:$0xf]
          %v1175 = vld [vmem:[#allocation17 + $0x78] sm:$0xff]
          %v1176 = vld [vmem:[#allocation17 + $0x80] sm:$0xf]
          %v1177 = vld [vmem:[#allocation17 + $0x84] sm:$0xff]
          %v1178 = vld [vmem:[#allocation17 + $0x8c] sm:$0xf]
          %v1179 = vld [vmem:[#allocation17 + $0x90] sm:$0xff]
          %v1180 = vld [vmem:[#allocation17 + $0x98] sm:$0xf]
          %v1181 = vld [vmem:[#allocation17 + $0x9c] sm:$0xff]
          %v1182 = vld [vmem:[#allocation17 + $0xa4] sm:$0xf]
          %v1183 = vld [vmem:[#allocation17 + $0xa8] sm:$0xff]
          %v1184 = vld [vmem:[#allocation17 + $0xb0] sm:$0xf]
          %v1185 = vld [vmem:[#allocation17 + $0xb4] sm:$0xff]
          %v1186 = vld [vmem:[#allocation17 + $0xbc] sm:$0xf]
          %v1187 = vld [vmem:[%s8] sm:$0x7]
          %v1189 = vperm.slane %v1187, 0
          %v1190 = vperm.slane %v1187, 1
          %v1191 = vperm.slane %v1187, 2
          %v1227 = vunpack.c.l.b16 %v1155
          %v1228 = vunpack.c.h.b16 %v1155
          %v1229 = vunpack.c.l.b16 %v1156
          %v1230 = vunpack.c.l.b16 %v1157
          %v1231 = vunpack.c.h.b16 %v1157
          %v1232 = vunpack.c.l.b16 %v1158
          %v1233 = vunpack.c.l.b16 %v1159
          %v1234 = vunpack.c.h.b16 %v1159
          %v1235 = vunpack.c.l.b16 %v1160
          %v1236 = vunpack.c.l.b16 %v1161
          %v1237 = vunpack.c.h.b16 %v1161
          %v1238 = vunpack.c.l.b16 %v1162
          %v1239 = vunpack.c.l.b16 %v1163
          %v1240 = vunpack.c.h.b16 %v1163
          %v1241 = vunpack.c.l.b16 %v1164
          %v1242 = vunpack.c.l.b16 %v1165
          %v1243 = vunpack.c.h.b16 %v1165
          %v1244 = vunpack.c.l.b16 %v1166
          %v1245 = vunpack.c.l.b16 %v1167
          %v1246 = vunpack.c.h.b16 %v1167
          %v1247 = vunpack.c.l.b16 %v1168
          %v1248 = vunpack.c.l.b16 %v1169
          %v1249 = vunpack.c.h.b16 %v1169
          %v1250 = vunpack.c.l.b16 %v1170
          %v1251 = vunpack.c.l.b16 %v1171
          %v1252 = vunpack.c.h.b16 %v1171
          %v1253 = vunpack.c.l.b16 %v1172
          %v1254 = vunpack.c.l.b16 %v1173
          %v1255 = vunpack.c.h.b16 %v1173
          %v1256 = vunpack.c.l.b16 %v1174
          %v1257 = vunpack.c.l.b16 %v1175
          %v1258 = vunpack.c.h.b16 %v1175
          %v1259 = vunpack.c.l.b16 %v1176
          %v1260 = vunpack.c.l.b16 %v1177
          %v1261 = vunpack.c.h.b16 %v1177
          %v1262 = vunpack.c.l.b16 %v1178
          %v1263 = vunpack.c.l.b16 %v1179
          %v1264 = vunpack.c.h.b16 %v1179
          %v1265 = vunpack.c.l.b16 %v1180
          %v1266 = vunpack.c.l.b16 %v1181
          %v1267 = vunpack.c.h.b16 %v1181
          %v1268 = vunpack.c.l.b16 %v1182
          %v1269 = vunpack.c.l.b16 %v1183
          %v1270 = vunpack.c.h.b16 %v1183
          %v1271 = vunpack.c.l.b16 %v1184
          %v1272 = vunpack.c.l.b16 %v1185
          %v1273 = vunpack.c.h.b16 %v1185
          %v1274 = vunpack.c.l.b16 %v1186
          %v1275 = vpack.c.b16 %v1230, %v1227
          %v1276 = vpack.c.b16 %v1231, %v1228
          %v1277 = vpack.c.b16 %v1232, %v1229
          %v1278 = vpack.c.b16 %v1236, %v1233
          %v1279 = vpack.c.b16 %v1237, %v1234
          %v1280 = vpack.c.b16 %v1238, %v1235
          %v1281 = vpack.c.b16 %v1242, %v1239
          %v1282 = vpack.c.b16 %v1243, %v1240
          %v1283 = vpack.c.b16 %v1244, %v1241
          %v1284 = vpack.c.b16 %v1248, %v1245
          %v1285 = vpack.c.b16 %v1249, %v1246
          %v1286 = vpack.c.b16 %v1250, %v1247
          %v1287 = vpack.c.b16 %v1254, %v1251
          %v1288 = vpack.c.b16 %v1255, %v1252
          %v1289 = vpack.c.b16 %v1256, %v1253
          %v1290 = vpack.c.b16 %v1260, %v1257
          %v1291 = vpack.c.b16 %v1261, %v1258
          %v1292 = vpack.c.b16 %v1262, %v1259
          %v1293 = vpack.c.b16 %v1266, %v1263
          %v1294 = vpack.c.b16 %v1267, %v1264
          %v1295 = vpack.c.b16 %v1268, %v1265
          %v1296 = vpack.c.b16 %v1272, %v1269
          %v1297 = vpack.c.b16 %v1273, %v1270
          %v1298 = vpack.c.b16 %v1274, %v1271
          %1323 = vmatpush.bf16.msra.mxu0 %v1296
          %1324 = vmatpush.bf16.msra.mxu0 %v1293
          %1325 = vmatpush.bf16.msra.mxu0 %v1290
          %1326 = vmatpush.bf16.msra.mxu0 %v1287
          %1327 = vmatpush.bf16.msra.mxu0 %v1284
          %1328 = vmatpush.bf16.msra.mxu0 %v1281
          %1329 = vmatpush.bf16.msra.mxu0 %v1278
          %1330 = vmatpush.bf16.msra.mxu0 %v1275
          %1331 = vmatmul.bf16.gmra.mxu0 %v1147
          %v1332 = vpop.f32.mrf.mxu0
          %v1333 = vadd.f32 %v1189, %v1332
          %v1334 = vpop.f32.mrf.mxu0
          %v1335 = vadd.f32 %v1189, %v1334
          %1336 = vmatmul.bf16.gmra.mxu0 %v1148
          %v1337 = vpop.f32.mrf.mxu0
          %v1338 = vadd.f32 %v1189, %v1337
          %v1339 = vpop.f32.mrf.mxu0
          %v1340 = vadd.f32 %v1189, %v1339
          %1341 = vmatmul.bf16.gmra.mxu0 %v1149
          %v1342 = vpop.f32.mrf.mxu0
          %v1343 = vadd.f32 %v1189, %v1342
          %v1344 = vpop.f32.mrf.mxu0
          %v1345 = vadd.f32 %v1189, %v1344
          %1346 = vmatmul.bf16.gmra.mxu0 %v1150
          %v1347 = vpop.f32.mrf.mxu0
          %v1348 = vadd.f32 %v1189, %v1347
          %v1349 = vpop.f32.mrf.mxu0
          %v1350 = vadd.f32 %v1189, %v1349
          %1351 = vmatmul.bf16.gmra.mxu0 %v1151
          %v1352 = vpop.f32.mrf.mxu0
          %v1353 = vadd.f32 %v1189, %v1352
          %v1354 = vpop.f32.mrf.mxu0
          %v1355 = vadd.f32 %v1189, %v1354
          %1356 = vmatmul.bf16.gmra.mxu0 %v1152
          %v1357 = vpop.f32.mrf.mxu0
          %v1358 = vadd.f32 %v1189, %v1357
          %v1359 = vpop.f32.mrf.mxu0
          %v1360 = vadd.f32 %v1189, %v1359
          %1361 = vmatmul.bf16.gmra.mxu0 %v1153
          %v1362 = vpop.f32.mrf.mxu0
          %v1363 = vadd.f32 %v1189, %v1362
          %v1364 = vpop.f32.mrf.mxu0
          %v1365 = vadd.f32 %v1189, %v1364
          %1366 = vmatmul.bf16.gmra.mxu0 %v1154
          %v1367 = vpop.f32.mrf.mxu0
          %v1368 = vadd.f32 %v1189, %v1367
          %v1369 = vpop.f32.mrf.mxu0
          %v1370 = vadd.f32 %v1189, %v1369
          %1371 = vdwg.mxu0
          %1372 = vmatpush.bf16.msra.mxu0 %v1297
          %1373 = vmatpush.bf16.msra.mxu0 %v1294
          %1374 = vmatpush.bf16.msra.mxu0 %v1291
          %1375 = vmatpush.bf16.msra.mxu0 %v1288
          %1376 = vmatpush.bf16.msra.mxu0 %v1285
          %1377 = vmatpush.bf16.msra.mxu0 %v1282
          %1378 = vmatpush.bf16.msra.mxu0 %v1279
          %1379 = vmatpush.bf16.msra.mxu0 %v1276
          %1380 = vmatmul.bf16.gmra.mxu0 %v1147
          %v1381 = vpop.f32.mrf.mxu0
          %v1382 = vadd.f32 %v1190, %v1381
          %v1383 = vpop.f32.mrf.mxu0
          %v1384 = vadd.f32 %v1190, %v1383
          %1385 = vmatmul.bf16.gmra.mxu0 %v1148
          %v1386 = vpop.f32.mrf.mxu0
          %v1387 = vadd.f32 %v1190, %v1386
          %v1388 = vpop.f32.mrf.mxu0
          %v1389 = vadd.f32 %v1190, %v1388
          %1390 = vmatmul.bf16.gmra.mxu0 %v1149
          %v1391 = vpop.f32.mrf.mxu0
          %v1392 = vadd.f32 %v1190, %v1391
          %v1393 = vpop.f32.mrf.mxu0
          %v1394 = vadd.f32 %v1190, %v1393
          %1395 = vmatmul.bf16.gmra.mxu0 %v1150
          %v1396 = vpop.f32.mrf.mxu0
          %v1397 = vadd.f32 %v1190, %v1396
          %v1398 = vpop.f32.mrf.mxu0
          %v1399 = vadd.f32 %v1190, %v1398
          %1400 = vmatmul.bf16.gmra.mxu0 %v1151
          %v1401 = vpop.f32.mrf.mxu0
          %v1402 = vadd.f32 %v1190, %v1401
          %v1403 = vpop.f32.mrf.mxu0
          %v1404 = vadd.f32 %v1190, %v1403
          %1405 = vmatmul.bf16.gmra.mxu0 %v1152
          %v1406 = vpop.f32.mrf.mxu0
          %v1407 = vadd.f32 %v1190, %v1406
          %v1408 = vpop.f32.mrf.mxu0
          %v1409 = vadd.f32 %v1190, %v1408
          %1410 = vmatmul.bf16.gmra.mxu0 %v1153
          %v1411 = vpop.f32.mrf.mxu0
          %v1412 = vadd.f32 %v1190, %v1411
          %v1413 = vpop.f32.mrf.mxu0
          %v1414 = vadd.f32 %v1190, %v1413
          %1415 = vmatmul.bf16.gmra.mxu0 %v1154
          %v1416 = vpop.f32.mrf.mxu0
          %v1417 = vadd.f32 %v1190, %v1416
          %v1418 = vpop.f32.mrf.mxu0
          %v1419 = vadd.f32 %v1190, %v1418
          %1420 = vdwg.mxu0
          %1421 = vmatpush.bf16.msra.mxu0 %v1298
          %1422 = vmatpush.bf16.msra.mxu0 %v1295
          %1423 = vmatpush.bf16.msra.mxu0 %v1292
          %1424 = vmatpush.bf16.msra.mxu0 %v1289
          %1425 = vmatpush.bf16.msra.mxu0 %v1286
          %1426 = vmatpush.bf16.msra.mxu0 %v1283
          %1427 = vmatpush.bf16.msra.mxu0 %v1280
          %1428 = vmatpush.bf16.msra.mxu0 %v1277
          %1429 = vmatmul.bf16.gmra.mxu0 %v1147
          %v1430 = vpop.f32.mrf.mxu0
          %v1431 = vadd.f32 %v1191, %v1430
          %v1432 = vpop.f32.mrf.mxu0
          %v1433 = vadd.f32 %v1191, %v1432
          %1434 = vmatmul.bf16.gmra.mxu0 %v1148
          %v1435 = vpop.f32.mrf.mxu0
          %v1436 = vadd.f32 %v1191, %v1435
          %v1437 = vpop.f32.mrf.mxu0
          %v1438 = vadd.f32 %v1191, %v1437
          %1439 = vmatmul.bf16.gmra.mxu0 %v1149
          %v1440 = vpop.f32.mrf.mxu0
          %v1441 = vadd.f32 %v1191, %v1440
          %v1442 = vpop.f32.mrf.mxu0
          %v1443 = vadd.f32 %v1191, %v1442
          %1444 = vmatmul.bf16.gmra.mxu0 %v1150
          %v1445 = vpop.f32.mrf.mxu0
          %v1446 = vadd.f32 %v1191, %v1445
          %v1447 = vpop.f32.mrf.mxu0
          %v1448 = vadd.f32 %v1191, %v1447
          %1449 = vmatmul.bf16.gmra.mxu0 %v1151
          %v1450 = vpop.f32.mrf.mxu0
          %v1451 = vadd.f32 %v1191, %v1450
          %v1452 = vpop.f32.mrf.mxu0
          %v1453 = vadd.f32 %v1191, %v1452
          %1454 = vmatmul.bf16.gmra.mxu0 %v1152
          %v1455 = vpop.f32.mrf.mxu0
          %v1456 = vadd.f32 %v1191, %v1455
          %v1457 = vpop.f32.mrf.mxu0
          %v1458 = vadd.f32 %v1191, %v1457
          %1459 = vmatmul.bf16.gmra.mxu0 %v1153
          %v1460 = vpop.f32.mrf.mxu0
          %v1461 = vadd.f32 %v1191, %v1460
          %v1462 = vpop.f32.mrf.mxu0
          %v1463 = vadd.f32 %v1191, %v1462
          %1464 = vmatmul.bf16.gmra.mxu0 %v1154
          %v1465 = vpop.f32.mrf.mxu0
          %v1466 = vadd.f32 %v1191, %v1465
          %v1467 = vpop.f32.mrf.mxu0
          %v1468 = vadd.f32 %v1191, %v1467
          %1469 = vdwg.mxu0
          %1470 = vst [vmem:[#allocation6] sm:$0xff] %v1333
          %1471 = vst [vmem:[#allocation6 + $0x8] sm:$0xff] %v1382
          %1472 = vst [vmem:[#allocation6 + $0x10] sm:$0xff] %v1431
          %1473 = vst [vmem:[#allocation6 + $0x18] sm:$0xff] %v1335
          %1474 = vst [vmem:[#allocation6 + $0x20] sm:$0xff] %v1384
          %1475 = vst [vmem:[#allocation6 + $0x28] sm:$0xff] %v1433
          %1476 = vst [vmem:[#allocation6 + $0x30] sm:$0xff] %v1338
          %1477 = vst [vmem:[#allocation6 + $0x38] sm:$0xff] %v1387
          %1478 = vst [vmem:[#allocation6 + $0x40] sm:$0xff] %v1436
          %1479 = vst [vmem:[#allocation6 + $0x48] sm:$0xff] %v1340
          %1480 = vst [vmem:[#allocation6 + $0x50] sm:$0xff] %v1389
          %1481 = vst [vmem:[#allocation6 + $0x58] sm:$0xff] %v1438
          %1482 = vst [vmem:[#allocation6 + $0x60] sm:$0xff] %v1343
          %1483 = vst [vmem:[#allocation6 + $0x68] sm:$0xff] %v1392
          %1484 = vst [vmem:[#allocation6 + $0x70] sm:$0xff] %v1441
          %1485 = vst [vmem:[#allocation6 + $0x78] sm:$0xff] %v1345
          %1486 = vst [vmem:[#allocation6 + $0x80] sm:$0xff] %v1394
          %1487 = vst [vmem:[#allocation6 + $0x88] sm:$0xff] %v1443
          %1488 = vst [vmem:[#allocation6 + $0x90] sm:$0xff] %v1348
          %1489 = vst [vmem:[#allocation6 + $0x98] sm:$0xff] %v1397
          %1490 = vst [vmem:[#allocation6 + $0xa0] sm:$0xff] %v1446
          %1491 = vst [vmem:[#allocation6 + $0xa8] sm:$0xff] %v1350
          %1492 = vst [vmem:[#allocation6 + $0xb0] sm:$0xff] %v1399
          %1493 = vst [vmem:[#allocation6 + $0xb8] sm:$0xff] %v1448
          %1494 = vst [vmem:[#allocation6 + $0xc0] sm:$0xff] %v1353
          %1495 = vst [vmem:[#allocation6 + $0xc8] sm:$0xff] %v1402
          %1496 = vst [vmem:[#allocation6 + $0xd0] sm:$0xff] %v1451
          %1497 = vst [vmem:[#allocation6 + $0xd8] sm:$0xff] %v1355
          %1498 = vst [vmem:[#allocation6 + $0xe0] sm:$0xff] %v1404
          %1499 = vst [vmem:[#allocation6 + $0xe8] sm:$0xff] %v1453
          %1500 = vst [vmem:[#allocation6 + $0xf0] sm:$0xff] %v1358
          %1501 = vst [vmem:[#allocation6 + $0xf8] sm:$0xff] %v1407
          %1502 = vst [vmem:[#allocation6 + $0x100] sm:$0xff] %v1456
          %1503 = vst [vmem:[#allocation6 + $0x108] sm:$0xff] %v1360
          %1504 = vst [vmem:[#allocation6 + $0x110] sm:$0xff] %v1409
          %1505 = vst [vmem:[#allocation6 + $0x118] sm:$0xff] %v1458
          %1506 = vst [vmem:[#allocation6 + $0x120] sm:$0xff] %v1363
          %1507 = vst [vmem:[#allocation6 + $0x128] sm:$0xff] %v1412
          %1508 = vst [vmem:[#allocation6 + $0x130] sm:$0xff] %v1461
          %1509 = vst [vmem:[#allocation6 + $0x138] sm:$0xff] %v1365
          %1510 = vst [vmem:[#allocation6 + $0x140] sm:$0xff] %v1414
          %1511 = vst [vmem:[#allocation6 + $0x148] sm:$0xff] %v1463
          %1512 = vst [vmem:[#allocation6 + $0x150] sm:$0xff] %v1368
          %1513 = vst [vmem:[#allocation6 + $0x158] sm:$0xff] %v1417
          %1514 = vst [vmem:[#allocation6 + $0x160] sm:$0xff] %v1466
          %1515 = vst [vmem:[#allocation6 + $0x168] sm:$0xff] %v1370
          %1516 = vst [vmem:[#allocation6 + $0x170] sm:$0xff] %v1419
          %1517 = vst [vmem:[#allocation6 + $0x178] sm:$0xff] %v1468
          %v1518 = vld [vmem:[#allocation23] sm:$0xff]
          %v1519 = vld [vmem:[#allocation23 + $0x8] sm:$0xf]
          %v1520 = vld [vmem:[#allocation23 + $0xc] sm:$0xff]
          %v1521 = vld [vmem:[#allocation23 + $0x14] sm:$0xf]
          %v1522 = vld [vmem:[#allocation23 + $0x18] sm:$0xff]
          %v1523 = vld [vmem:[#allocation23 + $0x20] sm:$0xf]
          %v1524 = vld [vmem:[#allocation23 + $0x24] sm:$0xff]
          %v1525 = vld [vmem:[#allocation23 + $0x2c] sm:$0xf]
          %v1526 = vld [vmem:[#allocation23 + $0x30] sm:$0xff]
          %v1527 = vld [vmem:[#allocation23 + $0x38] sm:$0xf]
          %v1528 = vld [vmem:[#allocation23 + $0x3c] sm:$0xff]
          %v1529 = vld [vmem:[#allocation23 + $0x44] sm:$0xf]
          %v1530 = vld [vmem:[#allocation23 + $0x48] sm:$0xff]
          %v1531 = vld [vmem:[#allocation23 + $0x50] sm:$0xf]
          %v1532 = vld [vmem:[#allocation23 + $0x54] sm:$0xff]
          %v1533 = vld [vmem:[#allocation23 + $0x5c] sm:$0xf]
          %v1534 = vld [vmem:[#allocation23 + $0x60] sm:$0xff]
          %v1535 = vld [vmem:[#allocation23 + $0x68] sm:$0xf]
          %v1536 = vld [vmem:[#allocation23 + $0x6c] sm:$0xff]
          %v1537 = vld [vmem:[#allocation23 + $0x74] sm:$0xf]
          %v1538 = vld [vmem:[#allocation23 + $0x78] sm:$0xff]
          %v1539 = vld [vmem:[#allocation23 + $0x80] sm:$0xf]
          %v1540 = vld [vmem:[#allocation23 + $0x84] sm:$0xff]
          %v1541 = vld [vmem:[#allocation23 + $0x8c] sm:$0xf]
          %v1542 = vld [vmem:[#allocation23 + $0x90] sm:$0xff]
          %v1543 = vld [vmem:[#allocation23 + $0x98] sm:$0xf]
          %v1544 = vld [vmem:[#allocation23 + $0x9c] sm:$0xff]
          %v1545 = vld [vmem:[#allocation23 + $0xa4] sm:$0xf]
          %v1546 = vld [vmem:[#allocation23 + $0xa8] sm:$0xff]
          %v1547 = vld [vmem:[#allocation23 + $0xb0] sm:$0xf]
          %v1548 = vld [vmem:[#allocation23 + $0xb4] sm:$0xff]
          %v1549 = vld [vmem:[#allocation23 + $0xbc] sm:$0xf]
          %v1550 = vld [vmem:[%s13] sm:$0x7]
          %v1552 = vperm.slane %v1550, 0
          %v1553 = vperm.slane %v1550, 1
          %v1554 = vperm.slane %v1550, 2
          %v1574 = vunpack.c.l.b16 %v1019
          %v1575 = vunpack.c.l.b16 %v1020
          %v1576 = vunpack.c.l.b16 %v1021
          %v1577 = vunpack.c.l.b16 %v1022
          %v1578 = vunpack.c.l.b16 %v1023
          %v1579 = vunpack.c.l.b16 %v1024
          %v1580 = vunpack.c.l.b16 %v1025
          %v1581 = vunpack.c.l.b16 %v1026
          %v1582 = vunpack.c.l.b16 %v1027
          %v1583 = vunpack.c.l.b16 %v1028
          %v1584 = vunpack.c.l.b16 %v1029
          %v1585 = vunpack.c.l.b16 %v1030
          %v1586 = vunpack.c.l.b16 %v1031
          %v1587 = vunpack.c.l.b16 %v1032
          %v1588 = vunpack.c.l.b16 %v1033
          %v1589 = vunpack.c.l.b16 %v1034
          %v1590 = vpack.c.b16 %v1575, %v1574
          %v1591 = vpack.c.b16 %v1577, %v1576
          %v1592 = vpack.c.b16 %v1579, %v1578
          %v1593 = vpack.c.b16 %v1581, %v1580
          %v1594 = vpack.c.b16 %v1583, %v1582
          %v1595 = vpack.c.b16 %v1585, %v1584
          %v1596 = vpack.c.b16 %v1587, %v1586
          %v1597 = vpack.c.b16 %v1589, %v1588
          %v1638 = vunpack.c.l.b16 %v1518
          %v1639 = vunpack.c.h.b16 %v1518
          %v1640 = vunpack.c.l.b16 %v1519
          %v1641 = vunpack.c.l.b16 %v1520
          %v1642 = vunpack.c.h.b16 %v1520
          %v1643 = vunpack.c.l.b16 %v1521
          %v1644 = vunpack.c.l.b16 %v1522
          %v1645 = vunpack.c.h.b16 %v1522
          %v1646 = vunpack.c.l.b16 %v1523
          %v1647 = vunpack.c.l.b16 %v1524
          %v1648 = vunpack.c.h.b16 %v1524
          %v1649 = vunpack.c.l.b16 %v1525
          %v1650 = vunpack.c.l.b16 %v1526
          %v1651 = vunpack.c.h.b16 %v1526
          %v1652 = vunpack.c.l.b16 %v1527
          %v1653 = vunpack.c.l.b16 %v1528
          %v1654 = vunpack.c.h.b16 %v1528
          %v1655 = vunpack.c.l.b16 %v1529
          %v1656 = vunpack.c.l.b16 %v1530
          %v1657 = vunpack.c.h.b16 %v1530
          %v1658 = vunpack.c.l.b16 %v1531
          %v1659 = vunpack.c.l.b16 %v1532
          %v1660 = vunpack.c.h.b16 %v1532
          %v1661 = vunpack.c.l.b16 %v1533
          %v1662 = vunpack.c.l.b16 %v1534
          %v1663 = vunpack.c.h.b16 %v1534
          %v1664 = vunpack.c.l.b16 %v1535
          %v1665 = vunpack.c.l.b16 %v1536
          %v1666 = vunpack.c.h.b16 %v1536
          %v1667 = vunpack.c.l.b16 %v1537
          %v1668 = vunpack.c.l.b16 %v1538
          %v1669 = vunpack.c.h.b16 %v1538
          %v1670 = vunpack.c.l.b16 %v1539
          %v1671 = vunpack.c.l.b16 %v1540
          %v1672 = vunpack.c.h.b16 %v1540
          %v1673 = vunpack.c.l.b16 %v1541
          %v1674 = vunpack.c.l.b16 %v1542
          %v1675 = vunpack.c.h.b16 %v1542
          %v1676 = vunpack.c.l.b16 %v1543
          %v1677 = vunpack.c.l.b16 %v1544
          %v1678 = vunpack.c.h.b16 %v1544
          %v1679 = vunpack.c.l.b16 %v1545
          %v1680 = vunpack.c.l.b16 %v1546
          %v1681 = vunpack.c.h.b16 %v1546
          %v1682 = vunpack.c.l.b16 %v1547
          %v1683 = vunpack.c.l.b16 %v1548
          %v1684 = vunpack.c.h.b16 %v1548
          %v1685 = vunpack.c.l.b16 %v1549
          %v1686 = vpack.c.b16 %v1641, %v1638
          %v1687 = vpack.c.b16 %v1642, %v1639
          %v1688 = vpack.c.b16 %v1643, %v1640
          %v1689 = vpack.c.b16 %v1647, %v1644
          %v1690 = vpack.c.b16 %v1648, %v1645
          %v1691 = vpack.c.b16 %v1649, %v1646
          %v1692 = vpack.c.b16 %v1653, %v1650
          %v1693 = vpack.c.b16 %v1654, %v1651
          %v1694 = vpack.c.b16 %v1655, %v1652
          %v1695 = vpack.c.b16 %v1659, %v1656
          %v1696 = vpack.c.b16 %v1660, %v1657
          %v1697 = vpack.c.b16 %v1661, %v1658
          %v1698 = vpack.c.b16 %v1665, %v1662
          %v1699 = vpack.c.b16 %v1666, %v1663
          %v1700 = vpack.c.b16 %v1667, %v1664
          %v1701 = vpack.c.b16 %v1671, %v1668
          %v1702 = vpack.c.b16 %v1672, %v1669
          %v1703 = vpack.c.b16 %v1673, %v1670
          %v1704 = vpack.c.b16 %v1677, %v1674
          %v1705 = vpack.c.b16 %v1678, %v1675
          %v1706 = vpack.c.b16 %v1679, %v1676
          %v1707 = vpack.c.b16 %v1683, %v1680
          %v1708 = vpack.c.b16 %v1684, %v1681
          %v1709 = vpack.c.b16 %v1685, %v1682
          %1734 = vmatpush.bf16.msra.mxu0 %v1707
          %1735 = vmatpush.bf16.msra.mxu0 %v1704
          %1736 = vmatpush.bf16.msra.mxu0 %v1701
          %1737 = vmatpush.bf16.msra.mxu0 %v1698
          %1738 = vmatpush.bf16.msra.mxu0 %v1695
          %1739 = vmatpush.bf16.msra.mxu0 %v1692
          %1740 = vmatpush.bf16.msra.mxu0 %v1689
          %1741 = vmatpush.bf16.msra.mxu0 %v1686
          %1742 = vmatmul.bf16.gmra.mxu0 %v1590
          %v1743 = vpop.f32.mrf.mxu0
          %v1744 = vadd.f32 %v1552, %v1743
          %v1745 = vpop.f32.mrf.mxu0
          %v1746 = vadd.f32 %v1552, %v1745
          %1747 = vmatmul.bf16.gmra.mxu0 %v1591
          %v1748 = vpop.f32.mrf.mxu0
          %v1749 = vadd.f32 %v1552, %v1748
          %v1750 = vpop.f32.mrf.mxu0
          %v1751 = vadd.f32 %v1552, %v1750
          %1752 = vmatmul.bf16.gmra.mxu0 %v1592
          %v1753 = vpop.f32.mrf.mxu0
          %v1754 = vadd.f32 %v1552, %v1753
          %v1755 = vpop.f32.mrf.mxu0
          %v1756 = vadd.f32 %v1552, %v1755
          %1757 = vmatmul.bf16.gmra.mxu0 %v1593
          %v1758 = vpop.f32.mrf.mxu0
          %v1759 = vadd.f32 %v1552, %v1758
          %v1760 = vpop.f32.mrf.mxu0
          %v1761 = vadd.f32 %v1552, %v1760
          %1762 = vmatmul.bf16.gmra.mxu0 %v1594
          %v1763 = vpop.f32.mrf.mxu0
          %v1764 = vadd.f32 %v1552, %v1763
          %v1765 = vpop.f32.mrf.mxu0
          %v1766 = vadd.f32 %v1552, %v1765
          %1767 = vmatmul.bf16.gmra.mxu0 %v1595
          %v1768 = vpop.f32.mrf.mxu0
          %v1769 = vadd.f32 %v1552, %v1768
          %v1770 = vpop.f32.mrf.mxu0
          %v1771 = vadd.f32 %v1552, %v1770
          %1772 = vmatmul.bf16.gmra.mxu0 %v1596
          %v1773 = vpop.f32.mrf.mxu0
          %v1774 = vadd.f32 %v1552, %v1773
          %v1775 = vpop.f32.mrf.mxu0
          %v1776 = vadd.f32 %v1552, %v1775
          %1777 = vmatmul.bf16.gmra.mxu0 %v1597
          %v1778 = vpop.f32.mrf.mxu0
          %v1779 = vadd.f32 %v1552, %v1778
          %v1780 = vpop.f32.mrf.mxu0
          %v1781 = vadd.f32 %v1552, %v1780
          %1782 = vdwg.mxu0
          %1783 = vmatpush.bf16.msra.mxu0 %v1708
          %1784 = vmatpush.bf16.msra.mxu0 %v1705
          %1785 = vmatpush.bf16.msra.mxu0 %v1702
          %1786 = vmatpush.bf16.msra.mxu0 %v1699
          %1787 = vmatpush.bf16.msra.mxu0 %v1696
          %1788 = vmatpush.bf16.msra.mxu0 %v1693
          %1789 = vmatpush.bf16.msra.mxu0 %v1690
          %1790 = vmatpush.bf16.msra.mxu0 %v1687
          %1791 = vmatmul.bf16.gmra.mxu0 %v1590
          %v1792 = vpop.f32.mrf.mxu0
          %v1793 = vadd.f32 %v1553, %v1792
          %v1794 = vpop.f32.mrf.mxu0
          %v1795 = vadd.f32 %v1553, %v1794
          %1796 = vmatmul.bf16.gmra.mxu0 %v1591
          %v1797 = vpop.f32.mrf.mxu0
          %v1798 = vadd.f32 %v1553, %v1797
          %v1799 = vpop.f32.mrf.mxu0
          %v1800 = vadd.f32 %v1553, %v1799
          %1801 = vmatmul.bf16.gmra.mxu0 %v1592
          %v1802 = vpop.f32.mrf.mxu0
          %v1803 = vadd.f32 %v1553, %v1802
          %v1804 = vpop.f32.mrf.mxu0
          %v1805 = vadd.f32 %v1553, %v1804
          %1806 = vmatmul.bf16.gmra.mxu0 %v1593
          %v1807 = vpop.f32.mrf.mxu0
          %v1808 = vadd.f32 %v1553, %v1807
          %v1809 = vpop.f32.mrf.mxu0
          %v1810 = vadd.f32 %v1553, %v1809
          %1811 = vmatmul.bf16.gmra.mxu0 %v1594
          %v1812 = vpop.f32.mrf.mxu0
          %v1813 = vadd.f32 %v1553, %v1812
          %v1814 = vpop.f32.mrf.mxu0
          %v1815 = vadd.f32 %v1553, %v1814
          %1816 = vmatmul.bf16.gmra.mxu0 %v1595
          %v1817 = vpop.f32.mrf.mxu0
          %v1818 = vadd.f32 %v1553, %v1817
          %v1819 = vpop.f32.mrf.mxu0
          %v1820 = vadd.f32 %v1553, %v1819
          %1821 = vmatmul.bf16.gmra.mxu0 %v1596
          %v1822 = vpop.f32.mrf.mxu0
          %v1823 = vadd.f32 %v1553, %v1822
          %v1824 = vpop.f32.mrf.mxu0
          %v1825 = vadd.f32 %v1553, %v1824
          %1826 = vmatmul.bf16.gmra.mxu0 %v1597
          %v1827 = vpop.f32.mrf.mxu0
          %v1828 = vadd.f32 %v1553, %v1827
          %v1829 = vpop.f32.mrf.mxu0
          %v1830 = vadd.f32 %v1553, %v1829
          %1831 = vdwg.mxu0
          %1832 = vmatpush.bf16.msra.mxu0 %v1709
          %1833 = vmatpush.bf16.msra.mxu0 %v1706
          %1834 = vmatpush.bf16.msra.mxu0 %v1703
          %1835 = vmatpush.bf16.msra.mxu0 %v1700
          %1836 = vmatpush.bf16.msra.mxu0 %v1697
          %1837 = vmatpush.bf16.msra.mxu0 %v1694
          %1838 = vmatpush.bf16.msra.mxu0 %v1691
          %1839 = vmatpush.bf16.msra.mxu0 %v1688
          %1840 = vmatmul.bf16.gmra.mxu0 %v1590
          %v1841 = vpop.f32.mrf.mxu0
          %v1842 = vadd.f32 %v1554, %v1841
          %v1843 = vpop.f32.mrf.mxu0
          %v1844 = vadd.f32 %v1554, %v1843
          %1845 = vmatmul.bf16.gmra.mxu0 %v1591
          %v1846 = vpop.f32.mrf.mxu0
          %v1847 = vadd.f32 %v1554, %v1846
          %v1848 = vpop.f32.mrf.mxu0
          %v1849 = vadd.f32 %v1554, %v1848
          %1850 = vmatmul.bf16.gmra.mxu0 %v1592
          %v1851 = vpop.f32.mrf.mxu0
          %v1852 = vadd.f32 %v1554, %v1851
          %v1853 = vpop.f32.mrf.mxu0
          %v1854 = vadd.f32 %v1554, %v1853
          %1855 = vmatmul.bf16.gmra.mxu0 %v1593
          %v1856 = vpop.f32.mrf.mxu0
          %v1857 = vadd.f32 %v1554, %v1856
          %v1858 = vpop.f32.mrf.mxu0
          %v1859 = vadd.f32 %v1554, %v1858
          %1860 = vmatmul.bf16.gmra.mxu0 %v1594
          %v1861 = vpop.f32.mrf.mxu0
          %v1862 = vadd.f32 %v1554, %v1861
          %v1863 = vpop.f32.mrf.mxu0
          %v1864 = vadd.f32 %v1554, %v1863
          %1865 = vmatmul.bf16.gmra.mxu0 %v1595
          %v1866 = vpop.f32.mrf.mxu0
          %v1867 = vadd.f32 %v1554, %v1866
          %v1868 = vpop.f32.mrf.mxu0
          %v1869 = vadd.f32 %v1554, %v1868
          %1870 = vmatmul.bf16.gmra.mxu0 %v1596
          %v1871 = vpop.f32.mrf.mxu0
          %v1872 = vadd.f32 %v1554, %v1871
          %v1873 = vpop.f32.mrf.mxu0
          %v1874 = vadd.f32 %v1554, %v1873
          %1875 = vmatmul.bf16.gmra.mxu0 %v1597
          %v1876 = vpop.f32.mrf.mxu0
          %v1877 = vadd.f32 %v1554, %v1876
          %v1878 = vpop.f32.mrf.mxu0
          %v1879 = vadd.f32 %v1554, %v1878
          %1880 = vdwg.mxu0
          %1881 = vst [vmem:[#allocation7] sm:$0xff] %v1744
          %1882 = vst [vmem:[#allocation7 + $0x8] sm:$0xff] %v1793
          %1883 = vst [vmem:[#allocation7 + $0x10] sm:$0xff] %v1842
          %1884 = vst [vmem:[#allocation7 + $0x18] sm:$0xff] %v1746
          %1885 = vst [vmem:[#allocation7 + $0x20] sm:$0xff] %v1795
          %1886 = vst [vmem:[#allocation7 + $0x28] sm:$0xff] %v1844
          %1887 = vst [vmem:[#allocation7 + $0x30] sm:$0xff] %v1749
          %1888 = vst [vmem:[#allocation7 + $0x38] sm:$0xff] %v1798
          %1889 = vst [vmem:[#allocation7 + $0x40] sm:$0xff] %v1847
          %1890 = vst [vmem:[#allocation7 + $0x48] sm:$0xff] %v1751
          %1891 = vst [vmem:[#allocation7 + $0x50] sm:$0xff] %v1800
          %1892 = vst [vmem:[#allocation7 + $0x58] sm:$0xff] %v1849
          %1893 = vst [vmem:[#allocation7 + $0x60] sm:$0xff] %v1754
          %1894 = vst [vmem:[#allocation7 + $0x68] sm:$0xff] %v1803
          %1895 = vst [vmem:[#allocation7 + $0x70] sm:$0xff] %v1852
          %1896 = vst [vmem:[#allocation7 + $0x78] sm:$0xff] %v1756
          %1897 = vst [vmem:[#allocation7 + $0x80] sm:$0xff] %v1805
          %1898 = vst [vmem:[#allocation7 + $0x88] sm:$0xff] %v1854
          %1899 = vst [vmem:[#allocation7 + $0x90] sm:$0xff] %v1759
          %1900 = vst [vmem:[#allocation7 + $0x98] sm:$0xff] %v1808
          %1901 = vst [vmem:[#allocation7 + $0xa0] sm:$0xff] %v1857
          %1902 = vst [vmem:[#allocation7 + $0xa8] sm:$0xff] %v1761
          %1903 = vst [vmem:[#allocation7 + $0xb0] sm:$0xff] %v1810
          %1904 = vst [vmem:[#allocation7 + $0xb8] sm:$0xff] %v1859
          %1905 = vst [vmem:[#allocation7 + $0xc0] sm:$0xff] %v1764
          %1906 = vst [vmem:[#allocation7 + $0xc8] sm:$0xff] %v1813
          %1907 = vst [vmem:[#allocation7 + $0xd0] sm:$0xff] %v1862
          %1908 = vst [vmem:[#allocation7 + $0xd8] sm:$0xff] %v1766
          %1909 = vst [vmem:[#allocation7 + $0xe0] sm:$0xff] %v1815
          %1910 = vst [vmem:[#allocation7 + $0xe8] sm:$0xff] %v1864
          %1911 = vst [vmem:[#allocation7 + $0xf0] sm:$0xff] %v1769
          %1912 = vst [vmem:[#allocation7 + $0xf8] sm:$0xff] %v1818
          %1913 = vst [vmem:[#allocation7 + $0x100] sm:$0xff] %v1867
          %1914 = vst [vmem:[#allocation7 + $0x108] sm:$0xff] %v1771
          %1915 = vst [vmem:[#allocation7 + $0x110] sm:$0xff] %v1820
          %1916 = vst [vmem:[#allocation7 + $0x118] sm:$0xff] %v1869
          %1917 = vst [vmem:[#allocation7 + $0x120] sm:$0xff] %v1774
          %1918 = vst [vmem:[#allocation7 + $0x128] sm:$0xff] %v1823
          %1919 = vst [vmem:[#allocation7 + $0x130] sm:$0xff] %v1872
          %1920 = vst [vmem:[#allocation7 + $0x138] sm:$0xff] %v1776
          %1921 = vst [vmem:[#allocation7 + $0x140] sm:$0xff] %v1825
          %1922 = vst [vmem:[#allocation7 + $0x148] sm:$0xff] %v1874
          %1923 = vst [vmem:[#allocation7 + $0x150] sm:$0xff] %v1779
          %1924 = vst [vmem:[#allocation7 + $0x158] sm:$0xff] %v1828
          %1925 = vst [vmem:[#allocation7 + $0x160] sm:$0xff] %v1877
          %1926 = vst [vmem:[#allocation7 + $0x168] sm:$0xff] %v1781
          %1927 = vst [vmem:[#allocation7 + $0x170] sm:$0xff] %v1830
          %1928 = vst [vmem:[#allocation7 + $0x178] sm:$0xff] %v1879
        $region128: #{tpu_custom_call.1} parent=79 // pred_fallthru
          _
        %v1929 = vld [vmem:[#allocation2 + $0x4] sm:$0xf]
        %v1930 = vld [vmem:[#allocation2 + $0xc] sm:$0xf]
        %v1931 = vld [vmem:[#allocation2 + $0x14] sm:$0xf]
        %v1932 = vld [vmem:[#allocation2 + $0x1c] sm:$0xf]
        %v1933 = vld [vmem:[#allocation2 + $0x24] sm:$0xf]
        %v1934 = vld [vmem:[#allocation2 + $0x2c] sm:$0xf]
        %v1935 = vld [vmem:[#allocation2 + $0x34] sm:$0xf]
        %v1936 = vld [vmem:[#allocation2 + $0x3c] sm:$0xf]
        %v1937 = vld [vmem:[#allocation2 + $0x44] sm:$0xf]
        %v1938 = vld [vmem:[#allocation2 + $0x4c] sm:$0xf]
        %v1939 = vld [vmem:[#allocation2 + $0x54] sm:$0xf]
        %v1940 = vld [vmem:[#allocation2 + $0x5c] sm:$0xf]
        %v1941 = vld [vmem:[#allocation2 + $0x64] sm:$0xf]
        %v1942 = vld [vmem:[#allocation2 + $0x6c] sm:$0xf]
        %v1943 = vld [vmem:[#allocation2 + $0x74] sm:$0xf]
        %v1944 = vld [vmem:[#allocation2 + $0x7c] sm:$0xf]
        %v1945 = vld [vmem:[#allocation3] sm:$0xff]
        %v1946 = vld [vmem:[#allocation3 + $0x8] sm:$0xff]
        %v1947 = vld [vmem:[#allocation3 + $0x10] sm:$0xff]
        %v1948 = vld [vmem:[#allocation3 + $0x18] sm:$0xff]
        %v1949 = vld [vmem:[#allocation3 + $0x20] sm:$0xff]
        %v1950 = vld [vmem:[#allocation3 + $0x28] sm:$0xff]
        %v1951 = vld [vmem:[#allocation3 + $0x30] sm:$0xff]
        %v1952 = vld [vmem:[#allocation3 + $0x38] sm:$0xff]
        %v1953 = vld [vmem:[#allocation3 + $0x40] sm:$0xff]
        %v1954 = vld [vmem:[#allocation3 + $0x48] sm:$0xff]
        %v1955 = vld [vmem:[#allocation3 + $0x50] sm:$0xff]
        %v1956 = vld [vmem:[#allocation3 + $0x58] sm:$0xff]
        %v1957 = vld [vmem:[#allocation3 + $0x60] sm:$0xff]
        %v1958 = vld [vmem:[#allocation3 + $0x68] sm:$0xff]
        %v1959 = vld [vmem:[#allocation3 + $0x70] sm:$0xff]
        %v1960 = vld [vmem:[#allocation3 + $0x78] sm:$0xff]
        %v1961 = vld [vmem:[#allocation4] sm:$0xf]
        %v1962 = vld [vmem:[#allocation4 + $0x4] sm:$0xf]
        %v1963 = vld [vmem:[#allocation4 + $0x8] sm:$0xf]
        %v1964 = vld [vmem:[#allocation4 + $0xc] sm:$0xf]
        %v1965 = vld [vmem:[#allocation4 + $0x10] sm:$0xf]
        %v1966 = vld [vmem:[#allocation4 + $0x14] sm:$0xf]
        %v1967 = vld [vmem:[#allocation4 + $0x18] sm:$0xf]
        %v1968 = vld [vmem:[#allocation4 + $0x1c] sm:$0xf]
        %v1969 = vld [vmem:[#allocation4 + $0x20] sm:$0xf]
        %v1970 = vld [vmem:[#allocation4 + $0x24] sm:$0xf]
        %v1971 = vld [vmem:[#allocation4 + $0x28] sm:$0xf]
        %v1972 = vld [vmem:[#allocation4 + $0x2c] sm:$0xf]
        %v1973 = vld [vmem:[#allocation4 + $0x30] sm:$0xf]
        %v1974 = vld [vmem:[#allocation4 + $0x34] sm:$0xf]
        %v1975 = vld [vmem:[#allocation4 + $0x38] sm:$0xf]
        %v1976 = vld [vmem:[#allocation4 + $0x3c] sm:$0xf]
        %v1977 = vld [vmem:[#allocation5] sm:$0xff]
        %v1978 = vld [vmem:[#allocation5 + $0x8] sm:$0xff]
        %v1979 = vld [vmem:[#allocation5 + $0x10] sm:$0xff]
        %v1980 = vld [vmem:[#allocation5 + $0x18] sm:$0xff]
        %v1981 = vld [vmem:[#allocation5 + $0x20] sm:$0xff]
        %v1982 = vld [vmem:[#allocation5 + $0x28] sm:$0xff]
        %v1983 = vld [vmem:[#allocation5 + $0x30] sm:$0xff]
        %v1984 = vld [vmem:[#allocation5 + $0x38] sm:$0xff]
        %v1985 = vld [vmem:[#allocation5 + $0x40] sm:$0xff]
        %v1986 = vld [vmem:[#allocation5 + $0x48] sm:$0xff]
        %v1987 = vld [vmem:[#allocation5 + $0x50] sm:$0xff]
        %v1988 = vld [vmem:[#allocation5 + $0x58] sm:$0xff]
        %v1989 = vld [vmem:[#allocation5 + $0x60] sm:$0xff]
        %v1990 = vld [vmem:[#allocation5 + $0x68] sm:$0xff]
        %v1991 = vld [vmem:[#allocation5 + $0x70] sm:$0xff]
        %v1992 = vld [vmem:[#allocation5 + $0x78] sm:$0xff]
        %v1993 = vld [vmem:[%s621] sm:$0xf]
        %v1994 = vld [vmem:[%s621 + $0x4] sm:$0xf]
        %v1995 = vld [vmem:[%s621 + $0x8] sm:$0xf]
        %v1996 = vld [vmem:[%s621 + $0xc] sm:$0xf]
        %v1997 = vld [vmem:[%s621 + $0x10] sm:$0xf]
        %v1998 = vld [vmem:[%s621 + $0x14] sm:$0xf]
        %v1999 = vld [vmem:[%s621 + $0x18] sm:$0xf]
        %v2000 = vld [vmem:[%s621 + $0x1c] sm:$0xf]
        %v2001 = vld [vmem:[%s621 + $0x20] sm:$0xf]
        %v2002 = vld [vmem:[%s621 + $0x24] sm:$0xf]
        %v2003 = vld [vmem:[%s621 + $0x28] sm:$0xf]
        %v2004 = vld [vmem:[%s621 + $0x2c] sm:$0xf]
        %v2005 = vld [vmem:[%s621 + $0x30] sm:$0xf]
        %v2006 = vld [vmem:[%s621 + $0x34] sm:$0xf]
        %v2007 = vld [vmem:[%s621 + $0x38] sm:$0xf]
        %v2008 = vld [vmem:[%s621 + $0x3c] sm:$0xf]
        %v2025 = vunpack.c.l.b16 %v1993
        %v2026 = vunpack.c.l.b16 %v1994
        %v2027 = vunpack.c.l.b16 %v1995
        %v2028 = vunpack.c.l.b16 %v1996
        %v2029 = vunpack.c.l.b16 %v1997
        %v2030 = vunpack.c.l.b16 %v1998
        %v2031 = vunpack.c.l.b16 %v1999
        %v2032 = vunpack.c.l.b16 %v2000
        %v2033 = vunpack.c.l.b16 %v2001
        %v2034 = vunpack.c.l.b16 %v2002
        %v2035 = vunpack.c.l.b16 %v2003
        %v2036 = vunpack.c.l.b16 %v2004
        %v2037 = vunpack.c.l.b16 %v2005
        %v2038 = vunpack.c.l.b16 %v2006
        %v2039 = vunpack.c.l.b16 %v2007
        %v2040 = vunpack.c.l.b16 %v2008
        %v2041 = vpack.c.b16 %v2026, %v2025
        %v2042 = vpack.c.b16 %v2028, %v2027
        %v2043 = vpack.c.b16 %v2030, %v2029
        %v2044 = vpack.c.b16 %v2032, %v2031
        %v2045 = vpack.c.b16 %v2034, %v2033
        %v2046 = vpack.c.b16 %v2036, %v2035
        %v2047 = vpack.c.b16 %v2038, %v2037
        %v2048 = vpack.c.b16 %v2040, %v2039
        %v2073 = vunpack.c.l.b16 %v1929
        %v2074 = vunpack.c.l.b16 %v1930
        %v2075 = vunpack.c.l.b16 %v1931
        %v2076 = vunpack.c.l.b16 %v1932
        %v2077 = vunpack.c.l.b16 %v1933
        %v2078 = vunpack.c.l.b16 %v1934
        %v2079 = vunpack.c.l.b16 %v1935
        %v2080 = vunpack.c.l.b16 %v1936
        %v2081 = vunpack.c.l.b16 %v1937
        %v2082 = vunpack.c.l.b16 %v1938
        %v2083 = vunpack.c.l.b16 %v1939
        %v2084 = vunpack.c.l.b16 %v1940
        %v2085 = vunpack.c.l.b16 %v1941
        %v2086 = vunpack.c.l.b16 %v1942
        %v2087 = vunpack.c.l.b16 %v1943
        %v2088 = vunpack.c.l.b16 %v1944
        %v2089 = vpack.c.b16 %v2074, %v2073
        %v2090 = vpack.c.b16 %v2076, %v2075
        %v2091 = vpack.c.b16 %v2078, %v2077
        %v2092 = vpack.c.b16 %v2080, %v2079
        %v2093 = vpack.c.b16 %v2082, %v2081
        %v2094 = vpack.c.b16 %v2084, %v2083
        %v2095 = vpack.c.b16 %v2086, %v2085
        %v2096 = vpack.c.b16 %v2088, %v2087
        %2105 = vmatpush.bf16.msra.mxu0 %v2096
        %2106 = vmatpush.bf16.msra.mxu0 %v2095
        %2107 = vmatpush.bf16.msra.mxu0 %v2094
        %2108 = vmatpush.bf16.msra.mxu0 %v2093
        %2109 = vmatpush.bf16.msra.mxu0 %v2092
        %2110 = vmatpush.bf16.msra.mxu0 %v2091
        %2111 = vmatpush.bf16.msra.mxu0 %v2090
        %2112 = vmatpush.bf16.msra.mxu0 %v2089
        %2113 = vmatmul.bf16.gmra.mxu0 %v2041
        %v2114 = vpop.f32.mrf.mxu0
        %v2115 = vadd.f32 0.0, %v2114
        %v2116 = vpop.f32.mrf.mxu0
        %v2117 = vadd.f32 0.0, %v2116
        %2118 = vmatmul.bf16.gmra.mxu0 %v2042
        %v2119 = vpop.f32.mrf.mxu0
        %v2120 = vadd.f32 0.0, %v2119
        %v2121 = vpop.f32.mrf.mxu0
        %v2122 = vadd.f32 0.0, %v2121
        %2123 = vmatmul.bf16.gmra.mxu0 %v2043
        %v2124 = vpop.f32.mrf.mxu0
        %v2125 = vadd.f32 0.0, %v2124
        %v2126 = vpop.f32.mrf.mxu0
        %v2127 = vadd.f32 0.0, %v2126
        %2128 = vmatmul.bf16.gmra.mxu0 %v2044
        %v2129 = vpop.f32.mrf.mxu0
        %v2130 = vadd.f32 0.0, %v2129
        %v2131 = vpop.f32.mrf.mxu0
        %v2132 = vadd.f32 0.0, %v2131
        %2133 = vmatmul.bf16.gmra.mxu0 %v2045
        %v2134 = vpop.f32.mrf.mxu0
        %v2135 = vadd.f32 0.0, %v2134
        %v2136 = vpop.f32.mrf.mxu0
        %v2137 = vadd.f32 0.0, %v2136
        %2138 = vmatmul.bf16.gmra.mxu0 %v2046
        %v2139 = vpop.f32.mrf.mxu0
        %v2140 = vadd.f32 0.0, %v2139
        %v2141 = vpop.f32.mrf.mxu0
        %v2142 = vadd.f32 0.0, %v2141
        %2143 = vmatmul.bf16.gmra.mxu0 %v2047
        %v2144 = vpop.f32.mrf.mxu0
        %v2145 = vadd.f32 0.0, %v2144
        %v2146 = vpop.f32.mrf.mxu0
        %v2147 = vadd.f32 0.0, %v2146
        %2148 = vmatmul.bf16.gmra.mxu0 %v2048
        %v2149 = vpop.f32.mrf.mxu0
        %v2150 = vadd.f32 0.0, %v2149
        %v2151 = vpop.f32.mrf.mxu0
        %v2152 = vadd.f32 0.0, %v2151
        %2153 = vdwg.mxu0
        %v2154 = vld [vmem:[#allocation6] sm:$0xff]
        %v2155 = vld [vmem:[#allocation6 + $0x8] sm:$0xff]
        %v2156 = vld [vmem:[#allocation6 + $0x10] sm:$0xff]
        %v2157 = vld [vmem:[#allocation6 + $0x18] sm:$0xff]
        %v2158 = vld [vmem:[#allocation6 + $0x20] sm:$0xff]
        %v2159 = vld [vmem:[#allocation6 + $0x28] sm:$0xff]
        %v2160 = vld [vmem:[#allocation6 + $0x30] sm:$0xff]
        %v2161 = vld [vmem:[#allocation6 + $0x38] sm:$0xff]
        %v2162 = vld [vmem:[#allocation6 + $0x40] sm:$0xff]
        %v2163 = vld [vmem:[#allocation6 + $0x48] sm:$0xff]
        %v2164 = vld [vmem:[#allocation6 + $0x50] sm:$0xff]
        %v2165 = vld [vmem:[#allocation6 + $0x58] sm:$0xff]
        %v2166 = vld [vmem:[#allocation6 + $0x60] sm:$0xff]
        %v2167 = vld [vmem:[#allocation6 + $0x68] sm:$0xff]
        %v2168 = vld [vmem:[#allocation6 + $0x70] sm:$0xff]
        %v2169 = vld [vmem:[#allocation6 + $0x78] sm:$0xff]
        %v2170 = vld [vmem:[#allocation6 + $0x80] sm:$0xff]
        %v2171 = vld [vmem:[#allocation6 + $0x88] sm:$0xff]
        %v2172 = vld [vmem:[#allocation6 + $0x90] sm:$0xff]
        %v2173 = vld [vmem:[#allocation6 + $0x98] sm:$0xff]
        %v2174 = vld [vmem:[#allocation6 + $0xa0] sm:$0xff]
        %v2175 = vld [vmem:[#allocation6 + $0xa8] sm:$0xff]
        %v2176 = vld [vmem:[#allocation6 + $0xb0] sm:$0xff]
        %v2177 = vld [vmem:[#allocation6 + $0xb8] sm:$0xff]
        %v2178 = vld [vmem:[#allocation6 + $0xc0] sm:$0xff]
        %v2179 = vld [vmem:[#allocation6 + $0xc8] sm:$0xff]
        %v2180 = vld [vmem:[#allocation6 + $0xd0] sm:$0xff]
        %v2181 = vld [vmem:[#allocation6 + $0xd8] sm:$0xff]
        %v2182 = vld [vmem:[#allocation6 + $0xe0] sm:$0xff]
        %v2183 = vld [vmem:[#allocation6 + $0xe8] sm:$0xff]
        %v2184 = vld [vmem:[#allocation6 + $0xf0] sm:$0xff]
        %v2185 = vld [vmem:[#allocation6 + $0xf8] sm:$0xff]
        %v2186 = vld [vmem:[#allocation6 + $0x100] sm:$0xff]
        %v2187 = vld [vmem:[#allocation6 + $0x108] sm:$0xff]
        %v2188 = vld [vmem:[#allocation6 + $0x110] sm:$0xff]
        %v2189 = vld [vmem:[#allocation6 + $0x118] sm:$0xff]
        %v2190 = vld [vmem:[#allocation6 + $0x120] sm:$0xff]
        %v2191 = vld [vmem:[#allocation6 + $0x128] sm:$0xff]
        %v2192 = vld [vmem:[#allocation6 + $0x130] sm:$0xff]
        %v2193 = vld [vmem:[#allocation6 + $0x138] sm:$0xff]
        %v2194 = vld [vmem:[#allocation6 + $0x140] sm:$0xff]
        %v2195 = vld [vmem:[#allocation6 + $0x148] sm:$0xff]
        %v2196 = vld [vmem:[#allocation6 + $0x150] sm:$0xff]
        %v2197 = vld [vmem:[#allocation6 + $0x158] sm:$0xff]
        %v2198 = vld [vmem:[#allocation6 + $0x160] sm:$0xff]
        %v2199 = vld [vmem:[#allocation6 + $0x168] sm:$0xff]
        %v2200 = vld [vmem:[#allocation6 + $0x170] sm:$0xff]
        %v2201 = vld [vmem:[#allocation6 + $0x178] sm:$0xff]
        %v2202 = vpack.c.bf16 %v2117, %v2115
        %v2203 = vpack.c.bf16 %v2122, %v2120
        %v2204 = vpack.c.bf16 %v2127, %v2125
        %v2205 = vpack.c.bf16 %v2132, %v2130
        %v2206 = vpack.c.bf16 %v2137, %v2135
        %v2207 = vpack.c.bf16 %v2142, %v2140
        %v2208 = vpack.c.bf16 %v2147, %v2145
        %v2209 = vpack.c.bf16 %v2152, %v2150
        %v2210 = vld [vmem:[#allocation19] sm:$0xff]
        %v2211 = vld [vmem:[#allocation19 + $0x8] sm:$0xf]
        %v2212 = vld [vmem:[#allocation19 + $0xc] sm:$0xff]
        %v2213 = vld [vmem:[#allocation19 + $0x14] sm:$0xf]
        %v2214 = vld [vmem:[#allocation19 + $0x18] sm:$0xff]
        %v2215 = vld [vmem:[#allocation19 + $0x20] sm:$0xf]
        %v2216 = vld [vmem:[#allocation19 + $0x24] sm:$0xff]
        %v2217 = vld [vmem:[#allocation19 + $0x2c] sm:$0xf]
        %v2218 = vld [vmem:[#allocation19 + $0x30] sm:$0xff]
        %v2219 = vld [vmem:[#allocation19 + $0x38] sm:$0xf]
        %v2220 = vld [vmem:[#allocation19 + $0x3c] sm:$0xff]
        %v2221 = vld [vmem:[#allocation19 + $0x44] sm:$0xf]
        %v2222 = vld [vmem:[#allocation19 + $0x48] sm:$0xff]
        %v2223 = vld [vmem:[#allocation19 + $0x50] sm:$0xf]
        %v2224 = vld [vmem:[#allocation19 + $0x54] sm:$0xff]
        %v2225 = vld [vmem:[#allocation19 + $0x5c] sm:$0xf]
        %v2226 = vld [vmem:[#allocation19 + $0x60] sm:$0xff]
        %v2227 = vld [vmem:[#allocation19 + $0x68] sm:$0xf]
        %v2228 = vld [vmem:[#allocation19 + $0x6c] sm:$0xff]
        %v2229 = vld [vmem:[#allocation19 + $0x74] sm:$0xf]
        %v2230 = vld [vmem:[#allocation19 + $0x78] sm:$0xff]
        %v2231 = vld [vmem:[#allocation19 + $0x80] sm:$0xf]
        %v2232 = vld [vmem:[#allocation19 + $0x84] sm:$0xff]
        %v2233 = vld [vmem:[#allocation19 + $0x8c] sm:$0xf]
        %v2234 = vld [vmem:[#allocation19 + $0x90] sm:$0xff]
        %v2235 = vld [vmem:[#allocation19 + $0x98] sm:$0xf]
        %v2236 = vld [vmem:[#allocation19 + $0x9c] sm:$0xff]
        %v2237 = vld [vmem:[#allocation19 + $0xa4] sm:$0xf]
        %v2238 = vld [vmem:[#allocation19 + $0xa8] sm:$0xff]
        %v2239 = vld [vmem:[#allocation19 + $0xb0] sm:$0xf]
        %v2240 = vld [vmem:[#allocation19 + $0xb4] sm:$0xff]
        %v2241 = vld [vmem:[#allocation19 + $0xbc] sm:$0xf]
        %v2274 = vunpack.c.l.b16 %v2210
        %v2275 = vunpack.c.h.b16 %v2210
        %v2276 = vunpack.c.l.b16 %v2211
        %v2277 = vunpack.c.l.b16 %v2212
        %v2278 = vunpack.c.h.b16 %v2212
        %v2279 = vunpack.c.l.b16 %v2213
        %v2280 = vunpack.c.l.b16 %v2214
        %v2281 = vunpack.c.h.b16 %v2214
        %v2282 = vunpack.c.l.b16 %v2215
        %v2283 = vunpack.c.l.b16 %v2216
        %v2284 = vunpack.c.h.b16 %v2216
        %v2285 = vunpack.c.l.b16 %v2217
        %v2286 = vunpack.c.l.b16 %v2218
        %v2287 = vunpack.c.h.b16 %v2218
        %v2288 = vunpack.c.l.b16 %v2219
        %v2289 = vunpack.c.l.b16 %v2220
        %v2290 = vunpack.c.h.b16 %v2220
        %v2291 = vunpack.c.l.b16 %v2221
        %v2292 = vunpack.c.l.b16 %v2222
        %v2293 = vunpack.c.h.b16 %v2222
        %v2294 = vunpack.c.l.b16 %v2223
        %v2295 = vunpack.c.l.b16 %v2224
        %v2296 = vunpack.c.h.b16 %v2224
        %v2297 = vunpack.c.l.b16 %v2225
        %v2298 = vunpack.c.l.b16 %v2226
        %v2299 = vunpack.c.h.b16 %v2226
        %v2300 = vunpack.c.l.b16 %v2227
        %v2301 = vunpack.c.l.b16 %v2228
        %v2302 = vunpack.c.h.b16 %v2228
        %v2303 = vunpack.c.l.b16 %v2229
        %v2304 = vunpack.c.l.b16 %v2230
        %v2305 = vunpack.c.h.b16 %v2230
        %v2306 = vunpack.c.l.b16 %v2231
        %v2307 = vunpack.c.l.b16 %v2232
        %v2308 = vunpack.c.h.b16 %v2232
        %v2309 = vunpack.c.l.b16 %v2233
        %v2310 = vunpack.c.l.b16 %v2234
        %v2311 = vunpack.c.h.b16 %v2234
        %v2312 = vunpack.c.l.b16 %v2235
        %v2313 = vunpack.c.l.b16 %v2236
        %v2314 = vunpack.c.h.b16 %v2236
        %v2315 = vunpack.c.l.b16 %v2237
        %v2316 = vunpack.c.l.b16 %v2238
        %v2317 = vunpack.c.h.b16 %v2238
        %v2318 = vunpack.c.l.b16 %v2239
        %v2319 = vunpack.c.l.b16 %v2240
        %v2320 = vunpack.c.h.b16 %v2240
        %v2321 = vunpack.c.l.b16 %v2241
        %v2322 = vpack.c.b16 %v2277, %v2274
        %v2323 = vpack.c.b16 %v2278, %v2275
        %v2324 = vpack.c.b16 %v2279, %v2276
        %v2325 = vpack.c.b16 %v2283, %v2280
        %v2326 = vpack.c.b16 %v2284, %v2281
        %v2327 = vpack.c.b16 %v2285, %v2282
        %v2328 = vpack.c.b16 %v2289, %v2286
        %v2329 = vpack.c.b16 %v2290, %v2287
        %v2330 = vpack.c.b16 %v2291, %v2288
        %v2331 = vpack.c.b16 %v2295, %v2292
        %v2332 = vpack.c.b16 %v2296, %v2293
        %v2333 = vpack.c.b16 %v2297, %v2294
        %v2334 = vpack.c.b16 %v2301, %v2298
        %v2335 = vpack.c.b16 %v2302, %v2299
        %v2336 = vpack.c.b16 %v2303, %v2300
        %v2337 = vpack.c.b16 %v2307, %v2304
        %v2338 = vpack.c.b16 %v2308, %v2305
        %v2339 = vpack.c.b16 %v2309, %v2306
        %v2340 = vpack.c.b16 %v2313, %v2310
        %v2341 = vpack.c.b16 %v2314, %v2311
        %v2342 = vpack.c.b16 %v2315, %v2312
        %v2343 = vpack.c.b16 %v2319, %v2316
        %v2344 = vpack.c.b16 %v2320, %v2317
        %v2345 = vpack.c.b16 %v2321, %v2318
        %2370 = vmatpush.bf16.msra.mxu0 %v2343
        %2371 = vmatpush.bf16.msra.mxu0 %v2340
        %2372 = vmatpush.bf16.msra.mxu0 %v2337
        %2373 = vmatpush.bf16.msra.mxu0 %v2334
        %2374 = vmatpush.bf16.msra.mxu0 %v2331
        %2375 = vmatpush.bf16.msra.mxu0 %v2328
        %2376 = vmatpush.bf16.msra.mxu0 %v2325
        %2377 = vmatpush.bf16.msra.mxu0 %v2322
        %2378 = vmatmul.bf16.gmra.mxu0 %v2202
        %v2379 = vpop.f32.mrf.mxu0
        %v2380 = vadd.f32 0.0, %v2379
        %v2381 = vpop.f32.mrf.mxu0
        %v2382 = vadd.f32 0.0, %v2381
        %2383 = vmatmul.bf16.gmra.mxu0 %v2203
        %v2384 = vpop.f32.mrf.mxu0
        %v2385 = vadd.f32 0.0, %v2384
        %v2386 = vpop.f32.mrf.mxu0
        %v2387 = vadd.f32 0.0, %v2386
        %2388 = vmatmul.bf16.gmra.mxu0 %v2204
        %v2389 = vpop.f32.mrf.mxu0
        %v2390 = vadd.f32 0.0, %v2389
        %v2391 = vpop.f32.mrf.mxu0
        %v2392 = vadd.f32 0.0, %v2391
        %2393 = vmatmul.bf16.gmra.mxu0 %v2205
        %v2394 = vpop.f32.mrf.mxu0
        %v2395 = vadd.f32 0.0, %v2394
        %v2396 = vpop.f32.mrf.mxu0
        %v2397 = vadd.f32 0.0, %v2396
        %2398 = vmatmul.bf16.gmra.mxu0 %v2206
        %v2399 = vpop.f32.mrf.mxu0
        %v2400 = vadd.f32 0.0, %v2399
        %v2401 = vpop.f32.mrf.mxu0
        %v2402 = vadd.f32 0.0, %v2401
        %2403 = vmatmul.bf16.gmra.mxu0 %v2207
        %v2404 = vpop.f32.mrf.mxu0
        %v2405 = vadd.f32 0.0, %v2404
        %v2406 = vpop.f32.mrf.mxu0
        %v2407 = vadd.f32 0.0, %v2406
        %2408 = vmatmul.bf16.gmra.mxu0 %v2208
        %v2409 = vpop.f32.mrf.mxu0
        %v2410 = vadd.f32 0.0, %v2409
        %v2411 = vpop.f32.mrf.mxu0
        %v2412 = vadd.f32 0.0, %v2411
        %2413 = vmatmul.bf16.gmra.mxu0 %v2209
        %v2414 = vpop.f32.mrf.mxu0
        %v2415 = vadd.f32 0.0, %v2414
        %v2416 = vpop.f32.mrf.mxu0
        %v2417 = vadd.f32 0.0, %v2416
        %2418 = vdwg.mxu0
        %2419 = vmatpush.bf16.msra.mxu0 %v2344
        %2420 = vmatpush.bf16.msra.mxu0 %v2341
        %2421 = vmatpush.bf16.msra.mxu0 %v2338
        %2422 = vmatpush.bf16.msra.mxu0 %v2335
        %2423 = vmatpush.bf16.msra.mxu0 %v2332
        %2424 = vmatpush.bf16.msra.mxu0 %v2329
        %2425 = vmatpush.bf16.msra.mxu0 %v2326
        %2426 = vmatpush.bf16.msra.mxu0 %v2323
        %2427 = vmatmul.bf16.gmra.mxu0 %v2202
        %v2428 = vpop.f32.mrf.mxu0
        %v2429 = vadd.f32 0.0, %v2428
        %v2430 = vpop.f32.mrf.mxu0
        %v2431 = vadd.f32 0.0, %v2430
        %2432 = vmatmul.bf16.gmra.mxu0 %v2203
        %v2433 = vpop.f32.mrf.mxu0
        %v2434 = vadd.f32 0.0, %v2433
        %v2435 = vpop.f32.mrf.mxu0
        %v2436 = vadd.f32 0.0, %v2435
        %2437 = vmatmul.bf16.gmra.mxu0 %v2204
        %v2438 = vpop.f32.mrf.mxu0
        %v2439 = vadd.f32 0.0, %v2438
        %v2440 = vpop.f32.mrf.mxu0
        %v2441 = vadd.f32 0.0, %v2440
        %2442 = vmatmul.bf16.gmra.mxu0 %v2205
        %v2443 = vpop.f32.mrf.mxu0
        %v2444 = vadd.f32 0.0, %v2443
        %v2445 = vpop.f32.mrf.mxu0
        %v2446 = vadd.f32 0.0, %v2445
        %2447 = vmatmul.bf16.gmra.mxu0 %v2206
        %v2448 = vpop.f32.mrf.mxu0
        %v2449 = vadd.f32 0.0, %v2448
        %v2450 = vpop.f32.mrf.mxu0
        %v2451 = vadd.f32 0.0, %v2450
        %2452 = vmatmul.bf16.gmra.mxu0 %v2207
        %v2453 = vpop.f32.mrf.mxu0
        %v2454 = vadd.f32 0.0, %v2453
        %v2455 = vpop.f32.mrf.mxu0
        %v2456 = vadd.f32 0.0, %v2455
        %2457 = vmatmul.bf16.gmra.mxu0 %v2208
        %v2458 = vpop.f32.mrf.mxu0
        %v2459 = vadd.f32 0.0, %v2458
        %v2460 = vpop.f32.mrf.mxu0
        %v2461 = vadd.f32 0.0, %v2460
        %2462 = vmatmul.bf16.gmra.mxu0 %v2209
        %v2463 = vpop.f32.mrf.mxu0
        %v2464 = vadd.f32 0.0, %v2463
        %v2465 = vpop.f32.mrf.mxu0
        %v2466 = vadd.f32 0.0, %v2465
        %2467 = vdwg.mxu0
        %2468 = vmatpush.bf16.msra.mxu0 %v2345
        %2469 = vmatpush.bf16.msra.mxu0 %v2342
        %2470 = vmatpush.bf16.msra.mxu0 %v2339
        %2471 = vmatpush.bf16.msra.mxu0 %v2336
        %2472 = vmatpush.bf16.msra.mxu0 %v2333
        %2473 = vmatpush.bf16.msra.mxu0 %v2330
        %2474 = vmatpush.bf16.msra.mxu0 %v2327
        %2475 = vmatpush.bf16.msra.mxu0 %v2324
        %2476 = vmatmul.bf16.gmra.mxu0 %v2202
        %v2477 = vpop.f32.mrf.mxu0
        %v2478 = vadd.f32 0.0, %v2477
        %v2479 = vpop.f32.mrf.mxu0
        %v2480 = vadd.f32 0.0, %v2479
        %2481 = vmatmul.bf16.gmra.mxu0 %v2203
        %v2482 = vpop.f32.mrf.mxu0
        %v2483 = vadd.f32 0.0, %v2482
        %v2484 = vpop.f32.mrf.mxu0
        %v2485 = vadd.f32 0.0, %v2484
        %2486 = vmatmul.bf16.gmra.mxu0 %v2204
        %v2487 = vpop.f32.mrf.mxu0
        %v2488 = vadd.f32 0.0, %v2487
        %v2489 = vpop.f32.mrf.mxu0
        %v2490 = vadd.f32 0.0, %v2489
        %2491 = vmatmul.bf16.gmra.mxu0 %v2205
        %v2492 = vpop.f32.mrf.mxu0
        %v2493 = vadd.f32 0.0, %v2492
        %v2494 = vpop.f32.mrf.mxu0
        %v2495 = vadd.f32 0.0, %v2494
        %2496 = vmatmul.bf16.gmra.mxu0 %v2206
        %v2497 = vpop.f32.mrf.mxu0
        %v2498 = vadd.f32 0.0, %v2497
        %v2499 = vpop.f32.mrf.mxu0
        %v2500 = vadd.f32 0.0, %v2499
        %2501 = vmatmul.bf16.gmra.mxu0 %v2207
        %v2502 = vpop.f32.mrf.mxu0
        %v2503 = vadd.f32 0.0, %v2502
        %v2504 = vpop.f32.mrf.mxu0
        %v2505 = vadd.f32 0.0, %v2504
        %2506 = vmatmul.bf16.gmra.mxu0 %v2208
        %v2507 = vpop.f32.mrf.mxu0
        %v2508 = vadd.f32 0.0, %v2507
        %v2509 = vpop.f32.mrf.mxu0
        %v2510 = vadd.f32 0.0, %v2509
        %2511 = vmatmul.bf16.gmra.mxu0 %v2209
        %v2512 = vpop.f32.mrf.mxu0
        %v2513 = vadd.f32 0.0, %v2512
        %v2514 = vpop.f32.mrf.mxu0
        %v2515 = vadd.f32 0.0, %v2514
        %2516 = vdwg.mxu0
        %v2517 = vadd.f32 %v2154, %v2380
        %v2518 = vadd.f32 %v2155, %v2429
        %v2519 = vadd.f32 %v2156, %v2478
        %v2520 = vadd.f32 %v2157, %v2382
        %v2521 = vadd.f32 %v2158, %v2431
        %v2522 = vadd.f32 %v2159, %v2480
        %v2523 = vadd.f32 %v2160, %v2385
        %v2524 = vadd.f32 %v2161, %v2434
        %v2525 = vadd.f32 %v2162, %v2483
        %v2526 = vadd.f32 %v2163, %v2387
        %v2527 = vadd.f32 %v2164, %v2436
        %v2528 = vadd.f32 %v2165, %v2485
        %v2529 = vadd.f32 %v2166, %v2390
        %v2530 = vadd.f32 %v2167, %v2439
        %v2531 = vadd.f32 %v2168, %v2488
        %v2532 = vadd.f32 %v2169, %v2392
        %v2533 = vadd.f32 %v2170, %v2441
        %v2534 = vadd.f32 %v2171, %v2490
        %v2535 = vadd.f32 %v2172, %v2395
        %v2536 = vadd.f32 %v2173, %v2444
        %v2537 = vadd.f32 %v2174, %v2493
        %v2538 = vadd.f32 %v2175, %v2397
        %v2539 = vadd.f32 %v2176, %v2446
        %v2540 = vadd.f32 %v2177, %v2495
        %v2541 = vadd.f32 %v2178, %v2400
        %v2542 = vadd.f32 %v2179, %v2449
        %v2543 = vadd.f32 %v2180, %v2498
        %v2544 = vadd.f32 %v2181, %v2402
        %v2545 = vadd.f32 %v2182, %v2451
        %v2546 = vadd.f32 %v2183, %v2500
        %v2547 = vadd.f32 %v2184, %v2405
        %v2548 = vadd.f32 %v2185, %v2454
        %v2549 = vadd.f32 %v2186, %v2503
        %v2550 = vadd.f32 %v2187, %v2407
        %v2551 = vadd.f32 %v2188, %v2456
        %v2552 = vadd.f32 %v2189, %v2505
        %v2553 = vadd.f32 %v2190, %v2410
        %v2554 = vadd.f32 %v2191, %v2459
        %v2555 = vadd.f32 %v2192, %v2508
        %v2556 = vadd.f32 %v2193, %v2412
        %v2557 = vadd.f32 %v2194, %v2461
        %v2558 = vadd.f32 %v2195, %v2510
        %v2559 = vadd.f32 %v2196, %v2415
        %v2560 = vadd.f32 %v2197, %v2464
        %v2561 = vadd.f32 %v2198, %v2513
        %v2562 = vadd.f32 %v2199, %v2417
        %v2563 = vadd.f32 %v2200, %v2466
        %v2564 = vadd.f32 %v2201, %v2515
        %v2565 = vld [vmem:[#allocation20] sm:$0xff]
        %v2566 = vld [vmem:[#allocation20 + $0x8] sm:$0xf]
        %v2567 = vld [vmem:[#allocation20 + $0xc] sm:$0xff]
        %v2568 = vld [vmem:[#allocation20 + $0x14] sm:$0xf]
        %v2569 = vld [vmem:[#allocation20 + $0x18] sm:$0xff]
        %v2570 = vld [vmem:[#allocation20 + $0x20] sm:$0xf]
        %v2571 = vld [vmem:[#allocation20 + $0x24] sm:$0xff]
        %v2572 = vld [vmem:[#allocation20 + $0x2c] sm:$0xf]
        %v2573 = vld [vmem:[#allocation20 + $0x30] sm:$0xff]
        %v2574 = vld [vmem:[#allocation20 + $0x38] sm:$0xf]
        %v2575 = vld [vmem:[#allocation20 + $0x3c] sm:$0xff]
        %v2576 = vld [vmem:[#allocation20 + $0x44] sm:$0xf]
        %v2577 = vld [vmem:[#allocation20 + $0x48] sm:$0xff]
        %v2578 = vld [vmem:[#allocation20 + $0x50] sm:$0xf]
        %v2579 = vld [vmem:[#allocation20 + $0x54] sm:$0xff]
        %v2580 = vld [vmem:[#allocation20 + $0x5c] sm:$0xf]
        %v2581 = vld [vmem:[#allocation20 + $0x60] sm:$0xff]
        %v2582 = vld [vmem:[#allocation20 + $0x68] sm:$0xf]
        %v2583 = vld [vmem:[#allocation20 + $0x6c] sm:$0xff]
        %v2584 = vld [vmem:[#allocation20 + $0x74] sm:$0xf]
        %v2585 = vld [vmem:[#allocation20 + $0x78] sm:$0xff]
        %v2586 = vld [vmem:[#allocation20 + $0x80] sm:$0xf]
        %v2587 = vld [vmem:[#allocation20 + $0x84] sm:$0xff]
        %v2588 = vld [vmem:[#allocation20 + $0x8c] sm:$0xf]
        %v2589 = vld [vmem:[#allocation20 + $0x90] sm:$0xff]
        %v2590 = vld [vmem:[#allocation20 + $0x98] sm:$0xf]
        %v2591 = vld [vmem:[#allocation20 + $0x9c] sm:$0xff]
        %v2592 = vld [vmem:[#allocation20 + $0xa4] sm:$0xf]
        %v2593 = vld [vmem:[#allocation20 + $0xa8] sm:$0xff]
        %v2594 = vld [vmem:[#allocation20 + $0xb0] sm:$0xf]
        %v2595 = vld [vmem:[#allocation20 + $0xb4] sm:$0xff]
        %v2596 = vld [vmem:[#allocation20 + $0xbc] sm:$0xf]
        %v2597 = vld [vmem:[%s9] sm:$0x7]
        %v2599 = vperm.slane %v2597, 0
        %v2600 = vperm.slane %v2597, 1
        %v2601 = vperm.slane %v2597, 2
        %v2621 = vunpack.c.l.b16 %v1961
        %v2622 = vunpack.c.l.b16 %v1962
        %v2623 = vunpack.c.l.b16 %v1963
        %v2624 = vunpack.c.l.b16 %v1964
        %v2625 = vunpack.c.l.b16 %v1965
        %v2626 = vunpack.c.l.b16 %v1966
        %v2627 = vunpack.c.l.b16 %v1967
        %v2628 = vunpack.c.l.b16 %v1968
        %v2629 = vunpack.c.l.b16 %v1969
        %v2630 = vunpack.c.l.b16 %v1970
        %v2631 = vunpack.c.l.b16 %v1971
        %v2632 = vunpack.c.l.b16 %v1972
        %v2633 = vunpack.c.l.b16 %v1973
        %v2634 = vunpack.c.l.b16 %v1974
        %v2635 = vunpack.c.l.b16 %v1975
        %v2636 = vunpack.c.l.b16 %v1976
        %v2637 = vpack.c.b16 %v2622, %v2621
        %v2638 = vpack.c.b16 %v2624, %v2623
        %v2639 = vpack.c.b16 %v2626, %v2625
        %v2640 = vpack.c.b16 %v2628, %v2627
        %v2641 = vpack.c.b16 %v2630, %v2629
        %v2642 = vpack.c.b16 %v2632, %v2631
        %v2643 = vpack.c.b16 %v2634, %v2633
        %v2644 = vpack.c.b16 %v2636, %v2635
        %v2685 = vunpack.c.l.b16 %v2565
        %v2686 = vunpack.c.h.b16 %v2565
        %v2687 = vunpack.c.l.b16 %v2566
        %v2688 = vunpack.c.l.b16 %v2567
        %v2689 = vunpack.c.h.b16 %v2567
        %v2690 = vunpack.c.l.b16 %v2568
        %v2691 = vunpack.c.l.b16 %v2569
        %v2692 = vunpack.c.h.b16 %v2569
        %v2693 = vunpack.c.l.b16 %v2570
        %v2694 = vunpack.c.l.b16 %v2571
        %v2695 = vunpack.c.h.b16 %v2571
        %v2696 = vunpack.c.l.b16 %v2572
        %v2697 = vunpack.c.l.b16 %v2573
        %v2698 = vunpack.c.h.b16 %v2573
        %v2699 = vunpack.c.l.b16 %v2574
        %v2700 = vunpack.c.l.b16 %v2575
        %v2701 = vunpack.c.h.b16 %v2575
        %v2702 = vunpack.c.l.b16 %v2576
        %v2703 = vunpack.c.l.b16 %v2577
        %v2704 = vunpack.c.h.b16 %v2577
        %v2705 = vunpack.c.l.b16 %v2578
        %v2706 = vunpack.c.l.b16 %v2579
        %v2707 = vunpack.c.h.b16 %v2579
        %v2708 = vunpack.c.l.b16 %v2580
        %v2709 = vunpack.c.l.b16 %v2581
        %v2710 = vunpack.c.h.b16 %v2581
        %v2711 = vunpack.c.l.b16 %v2582
        %v2712 = vunpack.c.l.b16 %v2583
        %v2713 = vunpack.c.h.b16 %v2583
        %v2714 = vunpack.c.l.b16 %v2584
        %v2715 = vunpack.c.l.b16 %v2585
        %v2716 = vunpack.c.h.b16 %v2585
        %v2717 = vunpack.c.l.b16 %v2586
        %v2718 = vunpack.c.l.b16 %v2587
        %v2719 = vunpack.c.h.b16 %v2587
        %v2720 = vunpack.c.l.b16 %v2588
        %v2721 = vunpack.c.l.b16 %v2589
        %v2722 = vunpack.c.h.b16 %v2589
        %v2723 = vunpack.c.l.b16 %v2590
        %v2724 = vunpack.c.l.b16 %v2591
        %v2725 = vunpack.c.h.b16 %v2591
        %v2726 = vunpack.c.l.b16 %v2592
        %v2727 = vunpack.c.l.b16 %v2593
        %v2728 = vunpack.c.h.b16 %v2593
        %v2729 = vunpack.c.l.b16 %v2594
        %v2730 = vunpack.c.l.b16 %v2595
        %v2731 = vunpack.c.h.b16 %v2595
        %v2732 = vunpack.c.l.b16 %v2596
        %v2733 = vpack.c.b16 %v2688, %v2685
        %v2734 = vpack.c.b16 %v2689, %v2686
        %v2735 = vpack.c.b16 %v2690, %v2687
        %v2736 = vpack.c.b16 %v2694, %v2691
        %v2737 = vpack.c.b16 %v2695, %v2692
        %v2738 = vpack.c.b16 %v2696, %v2693
        %v2739 = vpack.c.b16 %v2700, %v2697
        %v2740 = vpack.c.b16 %v2701, %v2698
        %v2741 = vpack.c.b16 %v2702, %v2699
        %v2742 = vpack.c.b16 %v2706, %v2703
        %v2743 = vpack.c.b16 %v2707, %v2704
        %v2744 = vpack.c.b16 %v2708, %v2705
        %v2745 = vpack.c.b16 %v2712, %v2709
        %v2746 = vpack.c.b16 %v2713, %v2710
        %v2747 = vpack.c.b16 %v2714, %v2711
        %v2748 = vpack.c.b16 %v2718, %v2715
        %v2749 = vpack.c.b16 %v2719, %v2716
        %v2750 = vpack.c.b16 %v2720, %v2717
        %v2751 = vpack.c.b16 %v2724, %v2721
        %v2752 = vpack.c.b16 %v2725, %v2722
        %v2753 = vpack.c.b16 %v2726, %v2723
        %v2754 = vpack.c.b16 %v2730, %v2727
        %v2755 = vpack.c.b16 %v2731, %v2728
        %v2756 = vpack.c.b16 %v2732, %v2729
        %2781 = vmatpush.bf16.msra.mxu0 %v2754
        %2782 = vmatpush.bf16.msra.mxu0 %v2751
        %2783 = vmatpush.bf16.msra.mxu0 %v2748
        %2784 = vmatpush.bf16.msra.mxu0 %v2745
        %2785 = vmatpush.bf16.msra.mxu0 %v2742
        %2786 = vmatpush.bf16.msra.mxu0 %v2739
        %2787 = vmatpush.bf16.msra.mxu0 %v2736
        %2788 = vmatpush.bf16.msra.mxu0 %v2733
        %2789 = vmatmul.bf16.gmra.mxu0 %v2637
        %v2790 = vpop.f32.mrf.mxu0
        %v2791 = vadd.f32 %v2599, %v2790
        %v2792 = vpop.f32.mrf.mxu0
        %v2793 = vadd.f32 %v2599, %v2792
        %2794 = vmatmul.bf16.gmra.mxu0 %v2638
        %v2795 = vpop.f32.mrf.mxu0
        %v2796 = vadd.f32 %v2599, %v2795
        %v2797 = vpop.f32.mrf.mxu0
        %v2798 = vadd.f32 %v2599, %v2797
        %2799 = vmatmul.bf16.gmra.mxu0 %v2639
        %v2800 = vpop.f32.mrf.mxu0
        %v2801 = vadd.f32 %v2599, %v2800
        %v2802 = vpop.f32.mrf.mxu0
        %v2803 = vadd.f32 %v2599, %v2802
        %2804 = vmatmul.bf16.gmra.mxu0 %v2640
        %v2805 = vpop.f32.mrf.mxu0
        %v2806 = vadd.f32 %v2599, %v2805
        %v2807 = vpop.f32.mrf.mxu0
        %v2808 = vadd.f32 %v2599, %v2807
        %2809 = vmatmul.bf16.gmra.mxu0 %v2641
        %v2810 = vpop.f32.mrf.mxu0
        %v2811 = vadd.f32 %v2599, %v2810
        %v2812 = vpop.f32.mrf.mxu0
        %v2813 = vadd.f32 %v2599, %v2812
        %2814 = vmatmul.bf16.gmra.mxu0 %v2642
        %v2815 = vpop.f32.mrf.mxu0
        %v2816 = vadd.f32 %v2599, %v2815
        %v2817 = vpop.f32.mrf.mxu0
        %v2818 = vadd.f32 %v2599, %v2817
        %2819 = vmatmul.bf16.gmra.mxu0 %v2643
        %v2820 = vpop.f32.mrf.mxu0
        %v2821 = vadd.f32 %v2599, %v2820
        %v2822 = vpop.f32.mrf.mxu0
        %v2823 = vadd.f32 %v2599, %v2822
        %2824 = vmatmul.bf16.gmra.mxu0 %v2644
        %v2825 = vpop.f32.mrf.mxu0
        %v2826 = vadd.f32 %v2599, %v2825
        %v2827 = vpop.f32.mrf.mxu0
        %v2828 = vadd.f32 %v2599, %v2827
        %2829 = vdwg.mxu0
        %2830 = vmatpush.bf16.msra.mxu0 %v2755
        %2831 = vmatpush.bf16.msra.mxu0 %v2752
        %2832 = vmatpush.bf16.msra.mxu0 %v2749
        %2833 = vmatpush.bf16.msra.mxu0 %v2746
        %2834 = vmatpush.bf16.msra.mxu0 %v2743
        %2835 = vmatpush.bf16.msra.mxu0 %v2740
        %2836 = vmatpush.bf16.msra.mxu0 %v2737
        %2837 = vmatpush.bf16.msra.mxu0 %v2734
        %2838 = vmatmul.bf16.gmra.mxu0 %v2637
        %v2839 = vpop.f32.mrf.mxu0
        %v2840 = vadd.f32 %v2600, %v2839
        %v2841 = vpop.f32.mrf.mxu0
        %v2842 = vadd.f32 %v2600, %v2841
        %2843 = vmatmul.bf16.gmra.mxu0 %v2638
        %v2844 = vpop.f32.mrf.mxu0
        %v2845 = vadd.f32 %v2600, %v2844
        %v2846 = vpop.f32.mrf.mxu0
        %v2847 = vadd.f32 %v2600, %v2846
        %2848 = vmatmul.bf16.gmra.mxu0 %v2639
        %v2849 = vpop.f32.mrf.mxu0
        %v2850 = vadd.f32 %v2600, %v2849
        %v2851 = vpop.f32.mrf.mxu0
        %v2852 = vadd.f32 %v2600, %v2851
        %2853 = vmatmul.bf16.gmra.mxu0 %v2640
        %v2854 = vpop.f32.mrf.mxu0
        %v2855 = vadd.f32 %v2600, %v2854
        %v2856 = vpop.f32.mrf.mxu0
        %v2857 = vadd.f32 %v2600, %v2856
        %2858 = vmatmul.bf16.gmra.mxu0 %v2641
        %v2859 = vpop.f32.mrf.mxu0
        %v2860 = vadd.f32 %v2600, %v2859
        %v2861 = vpop.f32.mrf.mxu0
        %v2862 = vadd.f32 %v2600, %v2861
        %2863 = vmatmul.bf16.gmra.mxu0 %v2642
        %v2864 = vpop.f32.mrf.mxu0
        %v2865 = vadd.f32 %v2600, %v2864
        %v2866 = vpop.f32.mrf.mxu0
        %v2867 = vadd.f32 %v2600, %v2866
        %2868 = vmatmul.bf16.gmra.mxu0 %v2643
        %v2869 = vpop.f32.mrf.mxu0
        %v2870 = vadd.f32 %v2600, %v2869
        %v2871 = vpop.f32.mrf.mxu0
        %v2872 = vadd.f32 %v2600, %v2871
        %2873 = vmatmul.bf16.gmra.mxu0 %v2644
        %v2874 = vpop.f32.mrf.mxu0
        %v2875 = vadd.f32 %v2600, %v2874
        %v2876 = vpop.f32.mrf.mxu0
        %v2877 = vadd.f32 %v2600, %v2876
        %2878 = vdwg.mxu0
        %2879 = vmatpush.bf16.msra.mxu0 %v2756
        %2880 = vmatpush.bf16.msra.mxu0 %v2753
        %2881 = vmatpush.bf16.msra.mxu0 %v2750
        %2882 = vmatpush.bf16.msra.mxu0 %v2747
        %2883 = vmatpush.bf16.msra.mxu0 %v2744
        %2884 = vmatpush.bf16.msra.mxu0 %v2741
        %2885 = vmatpush.bf16.msra.mxu0 %v2738
        %2886 = vmatpush.bf16.msra.mxu0 %v2735
        %2887 = vmatmul.bf16.gmra.mxu0 %v2637
        %v2888 = vpop.f32.mrf.mxu0
        %v2889 = vadd.f32 %v2601, %v2888
        %v2890 = vpop.f32.mrf.mxu0
        %v2891 = vadd.f32 %v2601, %v2890
        %2892 = vmatmul.bf16.gmra.mxu0 %v2638
        %v2893 = vpop.f32.mrf.mxu0
        %v2894 = vadd.f32 %v2601, %v2893
        %v2895 = vpop.f32.mrf.mxu0
        %v2896 = vadd.f32 %v2601, %v2895
        %2897 = vmatmul.bf16.gmra.mxu0 %v2639
        %v2898 = vpop.f32.mrf.mxu0
        %v2899 = vadd.f32 %v2601, %v2898
        %v2900 = vpop.f32.mrf.mxu0
        %v2901 = vadd.f32 %v2601, %v2900
        %2902 = vmatmul.bf16.gmra.mxu0 %v2640
        %v2903 = vpop.f32.mrf.mxu0
        %v2904 = vadd.f32 %v2601, %v2903
        %v2905 = vpop.f32.mrf.mxu0
        %v2906 = vadd.f32 %v2601, %v2905
        %2907 = vmatmul.bf16.gmra.mxu0 %v2641
        %v2908 = vpop.f32.mrf.mxu0
        %v2909 = vadd.f32 %v2601, %v2908
        %v2910 = vpop.f32.mrf.mxu0
        %v2911 = vadd.f32 %v2601, %v2910
        %2912 = vmatmul.bf16.gmra.mxu0 %v2642
        %v2913 = vpop.f32.mrf.mxu0
        %v2914 = vadd.f32 %v2601, %v2913
        %v2915 = vpop.f32.mrf.mxu0
        %v2916 = vadd.f32 %v2601, %v2915
        %2917 = vmatmul.bf16.gmra.mxu0 %v2643
        %v2918 = vpop.f32.mrf.mxu0
        %v2919 = vadd.f32 %v2601, %v2918
        %v2920 = vpop.f32.mrf.mxu0
        %v2921 = vadd.f32 %v2601, %v2920
        %2922 = vmatmul.bf16.gmra.mxu0 %v2644
        %v2923 = vpop.f32.mrf.mxu0
        %v2924 = vadd.f32 %v2601, %v2923
        %v2925 = vpop.f32.mrf.mxu0
        %v2926 = vadd.f32 %v2601, %v2925
        %2927 = vdwg.mxu0
        %v2928 = vadd.f32 %v2517, %v2791
        %v2929 = vadd.f32 %v2520, %v2793
        %v2930 = vadd.f32 %v2523, %v2796
        %v2931 = vadd.f32 %v2526, %v2798
        %v2932 = vadd.f32 %v2529, %v2801
        %v2933 = vadd.f32 %v2532, %v2803
        %v2934 = vadd.f32 %v2535, %v2806
        %v2935 = vadd.f32 %v2538, %v2808
        %v2936 = vadd.f32 %v2541, %v2811
        %v2937 = vadd.f32 %v2544, %v2813
        %v2938 = vadd.f32 %v2547, %v2816
        %v2939 = vadd.f32 %v2550, %v2818
        %v2940 = vadd.f32 %v2553, %v2821
        %v2941 = vadd.f32 %v2556, %v2823
        %v2942 = vadd.f32 %v2559, %v2826
        %v2943 = vadd.f32 %v2562, %v2828
        %v2944 = vxor.u32 %v2928, 2147483648
        %v2945 = vxor.u32 %v2929, 2147483648
        %v2946 = vxor.u32 %v2930, 2147483648
        %v2947 = vxor.u32 %v2931, 2147483648
        %v2948 = vxor.u32 %v2932, 2147483648
        %v2949 = vxor.u32 %v2933, 2147483648
        %v2950 = vxor.u32 %v2934, 2147483648
        %v2951 = vxor.u32 %v2935, 2147483648
        %v2952 = vxor.u32 %v2936, 2147483648
        %v2953 = vxor.u32 %v2937, 2147483648
        %v2954 = vxor.u32 %v2938, 2147483648
        %v2955 = vxor.u32 %v2939, 2147483648
        %v2956 = vxor.u32 %v2940, 2147483648
        %v2957 = vxor.u32 %v2941, 2147483648
        %v2958 = vxor.u32 %v2942, 2147483648
        %v2959 = vxor.u32 %v2943, 2147483648
        %v2960 = vmul.f32 %v2944, 1.442695
        %v2961 = vpow.pop %v2960
        %v2962 = vmul.f32 %v2945, 1.442695
        %v2963 = vpow.pop %v2962
        %v2964 = vmul.f32 %v2946, 1.442695
        %v2965 = vpow.pop %v2964
        %v2966 = vmul.f32 %v2947, 1.442695
        %v2967 = vpow.pop %v2966
        %v2968 = vmul.f32 %v2948, 1.442695
        %v2969 = vpow.pop %v2968
        %v2970 = vmul.f32 %v2949, 1.442695
        %v2971 = vpow.pop %v2970
        %v2972 = vmul.f32 %v2950, 1.442695
        %v2973 = vpow.pop %v2972
        %v2974 = vmul.f32 %v2951, 1.442695
        %v2975 = vpow.pop %v2974
        %v2976 = vmul.f32 %v2952, 1.442695
        %v2977 = vpow.pop %v2976
        %v2978 = vmul.f32 %v2953, 1.442695
        %v2979 = vpow.pop %v2978
        %v2980 = vmul.f32 %v2954, 1.442695
        %v2981 = vpow.pop %v2980
        %v2982 = vmul.f32 %v2955, 1.442695
        %v2983 = vpow.pop %v2982
        %v2984 = vmul.f32 %v2956, 1.442695
        %v2985 = vpow.pop %v2984
        %v2986 = vmul.f32 %v2957, 1.442695
        %v2987 = vpow.pop %v2986
        %v2988 = vmul.f32 %v2958, 1.442695
        %v2989 = vpow.pop %v2988
        %v2990 = vmul.f32 %v2959, 1.442695
        %v2991 = vpow.pop %v2990
        %v2992 = vadd.f32 %v2961, 1.0
        %v2993 = vadd.f32 %v2963, 1.0
        %v2994 = vadd.f32 %v2965, 1.0
        %v2995 = vadd.f32 %v2967, 1.0
        %v2996 = vadd.f32 %v2969, 1.0
        %v2997 = vadd.f32 %v2971, 1.0
        %v2998 = vadd.f32 %v2973, 1.0
        %v2999 = vadd.f32 %v2975, 1.0
        %v3000 = vadd.f32 %v2977, 1.0
        %v3001 = vadd.f32 %v2979, 1.0
        %v3002 = vadd.f32 %v2981, 1.0
        %v3003 = vadd.f32 %v2983, 1.0
        %v3004 = vadd.f32 %v2985, 1.0
        %v3005 = vadd.f32 %v2987, 1.0
        %v3006 = vadd.f32 %v2989, 1.0
        %v3007 = vadd.f32 %v2991, 1.0
        %v3008 = vrcp.pop %v2992
        %v3009 = vmul.f32 %v2992, %v3008
        %v3010 = vsub.f32 1.0, %v3009
        %v3011 = vmul.f32 %v3008, %v3010
        %v3012 = vadd.f32 %v3008, %v3011
        %vm3013 = vweird.f32 %v2992
        %vm3014 = vweird.f32 %v3008
        %vm3015 = vmor %vm3013, %vm3014
        %v3016 = vsel %vm3015, %v3008, %v3012
        %v3017 = vand.u32 2147483647, %v2992
        %vm3018 = vcmp.eq.f32.partialorder %v3017, 8.507059e+37
        %v3019 = vand.u32 %v2992, 2147483648
        %v3020 = vor.u32 1.1754944e-38, %v3019
        %v3021 = vsel %vm3018, %v3020, %v3016
        %v3022 = vmul.f32 1.0, %v3021
        %v3023 = vrcp.pop %v2993
        %v3024 = vmul.f32 %v2993, %v3023
        %v3025 = vsub.f32 1.0, %v3024
        %v3026 = vmul.f32 %v3023, %v3025
        %v3027 = vadd.f32 %v3023, %v3026
        %vm3028 = vweird.f32 %v2993
        %vm3029 = vweird.f32 %v3023
        %vm3030 = vmor %vm3028, %vm3029
        %v3031 = vsel %vm3030, %v3023, %v3027
        %v3032 = vand.u32 2147483647, %v2993
        %vm3033 = vcmp.eq.f32.partialorder %v3032, 8.507059e+37
        %v3034 = vand.u32 %v2993, 2147483648
        %v3035 = vor.u32 1.1754944e-38, %v3034
        %v3036 = vsel %vm3033, %v3035, %v3031
        %v3037 = vmul.f32 1.0, %v3036
        %v3038 = vrcp.pop %v2994
        %v3039 = vmul.f32 %v2994, %v3038
        %v3040 = vsub.f32 1.0, %v3039
        %v3041 = vmul.f32 %v3038, %v3040
        %v3042 = vadd.f32 %v3038, %v3041
        %vm3043 = vweird.f32 %v2994
        %vm3044 = vweird.f32 %v3038
        %vm3045 = vmor %vm3043, %vm3044
        %v3046 = vsel %vm3045, %v3038, %v3042
        %v3047 = vand.u32 2147483647, %v2994
        %vm3048 = vcmp.eq.f32.partialorder %v3047, 8.507059e+37
        %v3049 = vand.u32 %v2994, 2147483648
        %v3050 = vor.u32 1.1754944e-38, %v3049
        %v3051 = vsel %vm3048, %v3050, %v3046
        %v3052 = vmul.f32 1.0, %v3051
        %v3053 = vrcp.pop %v2995
        %v3054 = vmul.f32 %v2995, %v3053
        %v3055 = vsub.f32 1.0, %v3054
        %v3056 = vmul.f32 %v3053, %v3055
        %v3057 = vadd.f32 %v3053, %v3056
        %vm3058 = vweird.f32 %v2995
        %vm3059 = vweird.f32 %v3053
        %vm3060 = vmor %vm3058, %vm3059
        %v3061 = vsel %vm3060, %v3053, %v3057
        %v3062 = vand.u32 2147483647, %v2995
        %vm3063 = vcmp.eq.f32.partialorder %v3062, 8.507059e+37
        %v3064 = vand.u32 %v2995, 2147483648
        %v3065 = vor.u32 1.1754944e-38, %v3064
        %v3066 = vsel %vm3063, %v3065, %v3061
        %v3067 = vmul.f32 1.0, %v3066
        %v3068 = vrcp.pop %v2996
        %v3069 = vmul.f32 %v2996, %v3068
        %v3070 = vsub.f32 1.0, %v3069
        %v3071 = vmul.f32 %v3068, %v3070
        %v3072 = vadd.f32 %v3068, %v3071
        %vm3073 = vweird.f32 %v2996
        %vm3074 = vweird.f32 %v3068
        %vm3075 = vmor %vm3073, %vm3074
        %v3076 = vsel %vm3075, %v3068, %v3072
        %v3077 = vand.u32 2147483647, %v2996
        %vm3078 = vcmp.eq.f32.partialorder %v3077, 8.507059e+37
        %v3079 = vand.u32 %v2996, 2147483648
        %v3080 = vor.u32 1.1754944e-38, %v3079
        %v3081 = vsel %vm3078, %v3080, %v3076
        %v3082 = vmul.f32 1.0, %v3081
        %v3083 = vrcp.pop %v2997
        %v3084 = vmul.f32 %v2997, %v3083
        %v3085 = vsub.f32 1.0, %v3084
        %v3086 = vmul.f32 %v3083, %v3085
        %v3087 = vadd.f32 %v3083, %v3086
        %vm3088 = vweird.f32 %v2997
        %vm3089 = vweird.f32 %v3083
        %vm3090 = vmor %vm3088, %vm3089
        %v3091 = vsel %vm3090, %v3083, %v3087
        %v3092 = vand.u32 2147483647, %v2997
        %vm3093 = vcmp.eq.f32.partialorder %v3092, 8.507059e+37
        %v3094 = vand.u32 %v2997, 2147483648
        %v3095 = vor.u32 1.1754944e-38, %v3094
        %v3096 = vsel %vm3093, %v3095, %v3091
        %v3097 = vmul.f32 1.0, %v3096
        %v3098 = vrcp.pop %v2998
        %v3099 = vmul.f32 %v2998, %v3098
        %v3100 = vsub.f32 1.0, %v3099
        %v3101 = vmul.f32 %v3098, %v3100
        %v3102 = vadd.f32 %v3098, %v3101
        %vm3103 = vweird.f32 %v2998
        %vm3104 = vweird.f32 %v3098
        %vm3105 = vmor %vm3103, %vm3104
        %v3106 = vsel %vm3105, %v3098, %v3102
        %v3107 = vand.u32 2147483647, %v2998
        %vm3108 = vcmp.eq.f32.partialorder %v3107, 8.507059e+37
        %v3109 = vand.u32 %v2998, 2147483648
        %v3110 = vor.u32 1.1754944e-38, %v3109
        %v3111 = vsel %vm3108, %v3110, %v3106
        %v3112 = vmul.f32 1.0, %v3111
        %v3113 = vrcp.pop %v2999
        %v3114 = vmul.f32 %v2999, %v3113
        %v3115 = vsub.f32 1.0, %v3114
        %v3116 = vmul.f32 %v3113, %v3115
        %v3117 = vadd.f32 %v3113, %v3116
        %vm3118 = vweird.f32 %v2999
        %vm3119 = vweird.f32 %v3113
        %vm3120 = vmor %vm3118, %vm3119
        %v3121 = vsel %vm3120, %v3113, %v3117
        %v3122 = vand.u32 2147483647, %v2999
        %vm3123 = vcmp.eq.f32.partialorder %v3122, 8.507059e+37
        %v3124 = vand.u32 %v2999, 2147483648
        %v3125 = vor.u32 1.1754944e-38, %v3124
        %v3126 = vsel %vm3123, %v3125, %v3121
        %v3127 = vmul.f32 1.0, %v3126
        %v3128 = vrcp.pop %v3000
        %v3129 = vmul.f32 %v3000, %v3128
        %v3130 = vsub.f32 1.0, %v3129
        %v3131 = vmul.f32 %v3128, %v3130
        %v3132 = vadd.f32 %v3128, %v3131
        %vm3133 = vweird.f32 %v3000
        %vm3134 = vweird.f32 %v3128
        %vm3135 = vmor %vm3133, %vm3134
        %v3136 = vsel %vm3135, %v3128, %v3132
        %v3137 = vand.u32 2147483647, %v3000
        %vm3138 = vcmp.eq.f32.partialorder %v3137, 8.507059e+37
        %v3139 = vand.u32 %v3000, 2147483648
        %v3140 = vor.u32 1.1754944e-38, %v3139
        %v3141 = vsel %vm3138, %v3140, %v3136
        %v3142 = vmul.f32 1.0, %v3141
        %v3143 = vrcp.pop %v3001
        %v3144 = vmul.f32 %v3001, %v3143
        %v3145 = vsub.f32 1.0, %v3144
        %v3146 = vmul.f32 %v3143, %v3145
        %v3147 = vadd.f32 %v3143, %v3146
        %vm3148 = vweird.f32 %v3001
        %vm3149 = vweird.f32 %v3143
        %vm3150 = vmor %vm3148, %vm3149
        %v3151 = vsel %vm3150, %v3143, %v3147
        %v3152 = vand.u32 2147483647, %v3001
        %vm3153 = vcmp.eq.f32.partialorder %v3152, 8.507059e+37
        %v3154 = vand.u32 %v3001, 2147483648
        %v3155 = vor.u32 1.1754944e-38, %v3154
        %v3156 = vsel %vm3153, %v3155, %v3151
        %v3157 = vmul.f32 1.0, %v3156
        %v3158 = vrcp.pop %v3002
        %v3159 = vmul.f32 %v3002, %v3158
        %v3160 = vsub.f32 1.0, %v3159
        %v3161 = vmul.f32 %v3158, %v3160
        %v3162 = vadd.f32 %v3158, %v3161
        %vm3163 = vweird.f32 %v3002
        %vm3164 = vweird.f32 %v3158
        %vm3165 = vmor %vm3163, %vm3164
        %v3166 = vsel %vm3165, %v3158, %v3162
        %v3167 = vand.u32 2147483647, %v3002
        %vm3168 = vcmp.eq.f32.partialorder %v3167, 8.507059e+37
        %v3169 = vand.u32 %v3002, 2147483648
        %v3170 = vor.u32 1.1754944e-38, %v3169
        %v3171 = vsel %vm3168, %v3170, %v3166
        %v3172 = vmul.f32 1.0, %v3171
        %v3173 = vrcp.pop %v3003
        %v3174 = vmul.f32 %v3003, %v3173
        %v3175 = vsub.f32 1.0, %v3174
        %v3176 = vmul.f32 %v3173, %v3175
        %v3177 = vadd.f32 %v3173, %v3176
        %vm3178 = vweird.f32 %v3003
        %vm3179 = vweird.f32 %v3173
        %vm3180 = vmor %vm3178, %vm3179
        %v3181 = vsel %vm3180, %v3173, %v3177
        %v3182 = vand.u32 2147483647, %v3003
        %vm3183 = vcmp.eq.f32.partialorder %v3182, 8.507059e+37
        %v3184 = vand.u32 %v3003, 2147483648
        %v3185 = vor.u32 1.1754944e-38, %v3184
        %v3186 = vsel %vm3183, %v3185, %v3181
        %v3187 = vmul.f32 1.0, %v3186
        %v3188 = vrcp.pop %v3004
        %v3189 = vmul.f32 %v3004, %v3188
        %v3190 = vsub.f32 1.0, %v3189
        %v3191 = vmul.f32 %v3188, %v3190
        %v3192 = vadd.f32 %v3188, %v3191
        %vm3193 = vweird.f32 %v3004
        %vm3194 = vweird.f32 %v3188
        %vm3195 = vmor %vm3193, %vm3194
        %v3196 = vsel %vm3195, %v3188, %v3192
        %v3197 = vand.u32 2147483647, %v3004
        %vm3198 = vcmp.eq.f32.partialorder %v3197, 8.507059e+37
        %v3199 = vand.u32 %v3004, 2147483648
        %v3200 = vor.u32 1.1754944e-38, %v3199
        %v3201 = vsel %vm3198, %v3200, %v3196
        %v3202 = vmul.f32 1.0, %v3201
        %v3203 = vrcp.pop %v3005
        %v3204 = vmul.f32 %v3005, %v3203
        %v3205 = vsub.f32 1.0, %v3204
        %v3206 = vmul.f32 %v3203, %v3205
        %v3207 = vadd.f32 %v3203, %v3206
        %vm3208 = vweird.f32 %v3005
        %vm3209 = vweird.f32 %v3203
        %vm3210 = vmor %vm3208, %vm3209
        %v3211 = vsel %vm3210, %v3203, %v3207
        %v3212 = vand.u32 2147483647, %v3005
        %vm3213 = vcmp.eq.f32.partialorder %v3212, 8.507059e+37
        %v3214 = vand.u32 %v3005, 2147483648
        %v3215 = vor.u32 1.1754944e-38, %v3214
        %v3216 = vsel %vm3213, %v3215, %v3211
        %v3217 = vmul.f32 1.0, %v3216
        %v3218 = vrcp.pop %v3006
        %v3219 = vmul.f32 %v3006, %v3218
        %v3220 = vsub.f32 1.0, %v3219
        %v3221 = vmul.f32 %v3218, %v3220
        %v3222 = vadd.f32 %v3218, %v3221
        %vm3223 = vweird.f32 %v3006
        %vm3224 = vweird.f32 %v3218
        %vm3225 = vmor %vm3223, %vm3224
        %v3226 = vsel %vm3225, %v3218, %v3222
        %v3227 = vand.u32 2147483647, %v3006
        %vm3228 = vcmp.eq.f32.partialorder %v3227, 8.507059e+37
        %v3229 = vand.u32 %v3006, 2147483648
        %v3230 = vor.u32 1.1754944e-38, %v3229
        %v3231 = vsel %vm3228, %v3230, %v3226
        %v3232 = vmul.f32 1.0, %v3231
        %v3233 = vrcp.pop %v3007
        %v3234 = vmul.f32 %v3007, %v3233
        %v3235 = vsub.f32 1.0, %v3234
        %v3236 = vmul.f32 %v3233, %v3235
        %v3237 = vadd.f32 %v3233, %v3236
        %vm3238 = vweird.f32 %v3007
        %vm3239 = vweird.f32 %v3233
        %vm3240 = vmor %vm3238, %vm3239
        %v3241 = vsel %vm3240, %v3233, %v3237
        %v3242 = vand.u32 2147483647, %v3007
        %vm3243 = vcmp.eq.f32.partialorder %v3242, 8.507059e+37
        %v3244 = vand.u32 %v3007, 2147483648
        %v3245 = vor.u32 1.1754944e-38, %v3244
        %v3246 = vsel %vm3243, %v3245, %v3241
        %v3247 = vmul.f32 1.0, %v3246
        %v3248 = vadd.f32 %v2518, %v2840
        %v3249 = vadd.f32 %v2521, %v2842
        %v3250 = vadd.f32 %v2524, %v2845
        %v3251 = vadd.f32 %v2527, %v2847
        %v3252 = vadd.f32 %v2530, %v2850
        %v3253 = vadd.f32 %v2533, %v2852
        %v3254 = vadd.f32 %v2536, %v2855
        %v3255 = vadd.f32 %v2539, %v2857
        %v3256 = vadd.f32 %v2542, %v2860
        %v3257 = vadd.f32 %v2545, %v2862
        %v3258 = vadd.f32 %v2548, %v2865
        %v3259 = vadd.f32 %v2551, %v2867
        %v3260 = vadd.f32 %v2554, %v2870
        %v3261 = vadd.f32 %v2557, %v2872
        %v3262 = vadd.f32 %v2560, %v2875
        %v3263 = vadd.f32 %v2563, %v2877
        %v3264 = vxor.u32 %v3248, 2147483648
        %v3265 = vxor.u32 %v3249, 2147483648
        %v3266 = vxor.u32 %v3250, 2147483648
        %v3267 = vxor.u32 %v3251, 2147483648
        %v3268 = vxor.u32 %v3252, 2147483648
        %v3269 = vxor.u32 %v3253, 2147483648
        %v3270 = vxor.u32 %v3254, 2147483648
        %v3271 = vxor.u32 %v3255, 2147483648
        %v3272 = vxor.u32 %v3256, 2147483648
        %v3273 = vxor.u32 %v3257, 2147483648
        %v3274 = vxor.u32 %v3258, 2147483648
        %v3275 = vxor.u32 %v3259, 2147483648
        %v3276 = vxor.u32 %v3260, 2147483648
        %v3277 = vxor.u32 %v3261, 2147483648
        %v3278 = vxor.u32 %v3262, 2147483648
        %v3279 = vxor.u32 %v3263, 2147483648
        %v3280 = vmul.f32 %v3264, 1.442695
        %v3281 = vpow.pop %v3280
        %v3282 = vmul.f32 %v3265, 1.442695
        %v3283 = vpow.pop %v3282
        %v3284 = vmul.f32 %v3266, 1.442695
        %v3285 = vpow.pop %v3284
        %v3286 = vmul.f32 %v3267, 1.442695
        %v3287 = vpow.pop %v3286
        %v3288 = vmul.f32 %v3268, 1.442695
        %v3289 = vpow.pop %v3288
        %v3290 = vmul.f32 %v3269, 1.442695
        %v3291 = vpow.pop %v3290
        %v3292 = vmul.f32 %v3270, 1.442695
        %v3293 = vpow.pop %v3292
        %v3294 = vmul.f32 %v3271, 1.442695
        %v3295 = vpow.pop %v3294
        %v3296 = vmul.f32 %v3272, 1.442695
        %v3297 = vpow.pop %v3296
        %v3298 = vmul.f32 %v3273, 1.442695
        %v3299 = vpow.pop %v3298
        %v3300 = vmul.f32 %v3274, 1.442695
        %v3301 = vpow.pop %v3300
        %v3302 = vmul.f32 %v3275, 1.442695
        %v3303 = vpow.pop %v3302
        %v3304 = vmul.f32 %v3276, 1.442695
        %v3305 = vpow.pop %v3304
        %v3306 = vmul.f32 %v3277, 1.442695
        %v3307 = vpow.pop %v3306
        %v3308 = vmul.f32 %v3278, 1.442695
        %v3309 = vpow.pop %v3308
        %v3310 = vmul.f32 %v3279, 1.442695
        %v3311 = vpow.pop %v3310
        %v3312 = vadd.f32 %v3281, 1.0
        %v3313 = vadd.f32 %v3283, 1.0
        %v3314 = vadd.f32 %v3285, 1.0
        %v3315 = vadd.f32 %v3287, 1.0
        %v3316 = vadd.f32 %v3289, 1.0
        %v3317 = vadd.f32 %v3291, 1.0
        %v3318 = vadd.f32 %v3293, 1.0
        %v3319 = vadd.f32 %v3295, 1.0
        %v3320 = vadd.f32 %v3297, 1.0
        %v3321 = vadd.f32 %v3299, 1.0
        %v3322 = vadd.f32 %v3301, 1.0
        %v3323 = vadd.f32 %v3303, 1.0
        %v3324 = vadd.f32 %v3305, 1.0
        %v3325 = vadd.f32 %v3307, 1.0
        %v3326 = vadd.f32 %v3309, 1.0
        %v3327 = vadd.f32 %v3311, 1.0
        %v3328 = vrcp.pop %v3312
        %v3329 = vmul.f32 %v3312, %v3328
        %v3330 = vsub.f32 1.0, %v3329
        %v3331 = vmul.f32 %v3328, %v3330
        %v3332 = vadd.f32 %v3328, %v3331
        %vm3333 = vweird.f32 %v3312
        %vm3334 = vweird.f32 %v3328
        %vm3335 = vmor %vm3333, %vm3334
        %v3336 = vsel %vm3335, %v3328, %v3332
        %v3337 = vand.u32 2147483647, %v3312
        %vm3338 = vcmp.eq.f32.partialorder %v3337, 8.507059e+37
        %v3339 = vand.u32 %v3312, 2147483648
        %v3340 = vor.u32 1.1754944e-38, %v3339
        %v3341 = vsel %vm3338, %v3340, %v3336
        %v3342 = vmul.f32 1.0, %v3341
        %v3343 = vrcp.pop %v3313
        %v3344 = vmul.f32 %v3313, %v3343
        %v3345 = vsub.f32 1.0, %v3344
        %v3346 = vmul.f32 %v3343, %v3345
        %v3347 = vadd.f32 %v3343, %v3346
        %vm3348 = vweird.f32 %v3313
        %vm3349 = vweird.f32 %v3343
        %vm3350 = vmor %vm3348, %vm3349
        %v3351 = vsel %vm3350, %v3343, %v3347
        %v3352 = vand.u32 2147483647, %v3313
        %vm3353 = vcmp.eq.f32.partialorder %v3352, 8.507059e+37
        %v3354 = vand.u32 %v3313, 2147483648
        %v3355 = vor.u32 1.1754944e-38, %v3354
        %v3356 = vsel %vm3353, %v3355, %v3351
        %v3357 = vmul.f32 1.0, %v3356
        %v3358 = vrcp.pop %v3314
        %v3359 = vmul.f32 %v3314, %v3358
        %v3360 = vsub.f32 1.0, %v3359
        %v3361 = vmul.f32 %v3358, %v3360
        %v3362 = vadd.f32 %v3358, %v3361
        %vm3363 = vweird.f32 %v3314
        %vm3364 = vweird.f32 %v3358
        %vm3365 = vmor %vm3363, %vm3364
        %v3366 = vsel %vm3365, %v3358, %v3362
        %v3367 = vand.u32 2147483647, %v3314
        %vm3368 = vcmp.eq.f32.partialorder %v3367, 8.507059e+37
        %v3369 = vand.u32 %v3314, 2147483648
        %v3370 = vor.u32 1.1754944e-38, %v3369
        %v3371 = vsel %vm3368, %v3370, %v3366
        %v3372 = vmul.f32 1.0, %v3371
        %v3373 = vrcp.pop %v3315
        %v3374 = vmul.f32 %v3315, %v3373
        %v3375 = vsub.f32 1.0, %v3374
        %v3376 = vmul.f32 %v3373, %v3375
        %v3377 = vadd.f32 %v3373, %v3376
        %vm3378 = vweird.f32 %v3315
        %vm3379 = vweird.f32 %v3373
        %vm3380 = vmor %vm3378, %vm3379
        %v3381 = vsel %vm3380, %v3373, %v3377
        %v3382 = vand.u32 2147483647, %v3315
        %vm3383 = vcmp.eq.f32.partialorder %v3382, 8.507059e+37
        %v3384 = vand.u32 %v3315, 2147483648
        %v3385 = vor.u32 1.1754944e-38, %v3384
        %v3386 = vsel %vm3383, %v3385, %v3381
        %v3387 = vmul.f32 1.0, %v3386
        %v3388 = vrcp.pop %v3316
        %v3389 = vmul.f32 %v3316, %v3388
        %v3390 = vsub.f32 1.0, %v3389
        %v3391 = vmul.f32 %v3388, %v3390
        %v3392 = vadd.f32 %v3388, %v3391
        %vm3393 = vweird.f32 %v3316
        %vm3394 = vweird.f32 %v3388
        %vm3395 = vmor %vm3393, %vm3394
        %v3396 = vsel %vm3395, %v3388, %v3392
        %v3397 = vand.u32 2147483647, %v3316
        %vm3398 = vcmp.eq.f32.partialorder %v3397, 8.507059e+37
        %v3399 = vand.u32 %v3316, 2147483648
        %v3400 = vor.u32 1.1754944e-38, %v3399
        %v3401 = vsel %vm3398, %v3400, %v3396
        %v3402 = vmul.f32 1.0, %v3401
        %v3403 = vrcp.pop %v3317
        %v3404 = vmul.f32 %v3317, %v3403
        %v3405 = vsub.f32 1.0, %v3404
        %v3406 = vmul.f32 %v3403, %v3405
        %v3407 = vadd.f32 %v3403, %v3406
        %vm3408 = vweird.f32 %v3317
        %vm3409 = vweird.f32 %v3403
        %vm3410 = vmor %vm3408, %vm3409
        %v3411 = vsel %vm3410, %v3403, %v3407
        %v3412 = vand.u32 2147483647, %v3317
        %vm3413 = vcmp.eq.f32.partialorder %v3412, 8.507059e+37
        %v3414 = vand.u32 %v3317, 2147483648
        %v3415 = vor.u32 1.1754944e-38, %v3414
        %v3416 = vsel %vm3413, %v3415, %v3411
        %v3417 = vmul.f32 1.0, %v3416
        %v3418 = vrcp.pop %v3318
        %v3419 = vmul.f32 %v3318, %v3418
        %v3420 = vsub.f32 1.0, %v3419
        %v3421 = vmul.f32 %v3418, %v3420
        %v3422 = vadd.f32 %v3418, %v3421
        %vm3423 = vweird.f32 %v3318
        %vm3424 = vweird.f32 %v3418
        %vm3425 = vmor %vm3423, %vm3424
        %v3426 = vsel %vm3425, %v3418, %v3422
        %v3427 = vand.u32 2147483647, %v3318
        %vm3428 = vcmp.eq.f32.partialorder %v3427, 8.507059e+37
        %v3429 = vand.u32 %v3318, 2147483648
        %v3430 = vor.u32 1.1754944e-38, %v3429
        %v3431 = vsel %vm3428, %v3430, %v3426
        %v3432 = vmul.f32 1.0, %v3431
        %v3433 = vrcp.pop %v3319
        %v3434 = vmul.f32 %v3319, %v3433
        %v3435 = vsub.f32 1.0, %v3434
        %v3436 = vmul.f32 %v3433, %v3435
        %v3437 = vadd.f32 %v3433, %v3436
        %vm3438 = vweird.f32 %v3319
        %vm3439 = vweird.f32 %v3433
        %vm3440 = vmor %vm3438, %vm3439
        %v3441 = vsel %vm3440, %v3433, %v3437
        %v3442 = vand.u32 2147483647, %v3319
        %vm3443 = vcmp.eq.f32.partialorder %v3442, 8.507059e+37
        %v3444 = vand.u32 %v3319, 2147483648
        %v3445 = vor.u32 1.1754944e-38, %v3444
        %v3446 = vsel %vm3443, %v3445, %v3441
        %v3447 = vmul.f32 1.0, %v3446
        %v3448 = vrcp.pop %v3320
        %v3449 = vmul.f32 %v3320, %v3448
        %v3450 = vsub.f32 1.0, %v3449
        %v3451 = vmul.f32 %v3448, %v3450
        %v3452 = vadd.f32 %v3448, %v3451
        %vm3453 = vweird.f32 %v3320
        %vm3454 = vweird.f32 %v3448
        %vm3455 = vmor %vm3453, %vm3454
        %v3456 = vsel %vm3455, %v3448, %v3452
        %v3457 = vand.u32 2147483647, %v3320
        %vm3458 = vcmp.eq.f32.partialorder %v3457, 8.507059e+37
        %v3459 = vand.u32 %v3320, 2147483648
        %v3460 = vor.u32 1.1754944e-38, %v3459
        %v3461 = vsel %vm3458, %v3460, %v3456
        %v3462 = vmul.f32 1.0, %v3461
        %v3463 = vrcp.pop %v3321
        %v3464 = vmul.f32 %v3321, %v3463
        %v3465 = vsub.f32 1.0, %v3464
        %v3466 = vmul.f32 %v3463, %v3465
        %v3467 = vadd.f32 %v3463, %v3466
        %vm3468 = vweird.f32 %v3321
        %vm3469 = vweird.f32 %v3463
        %vm3470 = vmor %vm3468, %vm3469
        %v3471 = vsel %vm3470, %v3463, %v3467
        %v3472 = vand.u32 2147483647, %v3321
        %vm3473 = vcmp.eq.f32.partialorder %v3472, 8.507059e+37
        %v3474 = vand.u32 %v3321, 2147483648
        %v3475 = vor.u32 1.1754944e-38, %v3474
        %v3476 = vsel %vm3473, %v3475, %v3471
        %v3477 = vmul.f32 1.0, %v3476
        %v3478 = vrcp.pop %v3322
        %v3479 = vmul.f32 %v3322, %v3478
        %v3480 = vsub.f32 1.0, %v3479
        %v3481 = vmul.f32 %v3478, %v3480
        %v3482 = vadd.f32 %v3478, %v3481
        %vm3483 = vweird.f32 %v3322
        %vm3484 = vweird.f32 %v3478
        %vm3485 = vmor %vm3483, %vm3484
        %v3486 = vsel %vm3485, %v3478, %v3482
        %v3487 = vand.u32 2147483647, %v3322
        %vm3488 = vcmp.eq.f32.partialorder %v3487, 8.507059e+37
        %v3489 = vand.u32 %v3322, 2147483648
        %v3490 = vor.u32 1.1754944e-38, %v3489
        %v3491 = vsel %vm3488, %v3490, %v3486
        %v3492 = vmul.f32 1.0, %v3491
        %v3493 = vrcp.pop %v3323
        %v3494 = vmul.f32 %v3323, %v3493
        %v3495 = vsub.f32 1.0, %v3494
        %v3496 = vmul.f32 %v3493, %v3495
        %v3497 = vadd.f32 %v3493, %v3496
        %vm3498 = vweird.f32 %v3323
        %vm3499 = vweird.f32 %v3493
        %vm3500 = vmor %vm3498, %vm3499
        %v3501 = vsel %vm3500, %v3493, %v3497
        %v3502 = vand.u32 2147483647, %v3323
        %vm3503 = vcmp.eq.f32.partialorder %v3502, 8.507059e+37
        %v3504 = vand.u32 %v3323, 2147483648
        %v3505 = vor.u32 1.1754944e-38, %v3504
        %v3506 = vsel %vm3503, %v3505, %v3501
        %v3507 = vmul.f32 1.0, %v3506
        %v3508 = vrcp.pop %v3324
        %v3509 = vmul.f32 %v3324, %v3508
        %v3510 = vsub.f32 1.0, %v3509
        %v3511 = vmul.f32 %v3508, %v3510
        %v3512 = vadd.f32 %v3508, %v3511
        %vm3513 = vweird.f32 %v3324
        %vm3514 = vweird.f32 %v3508
        %vm3515 = vmor %vm3513, %vm3514
        %v3516 = vsel %vm3515, %v3508, %v3512
        %v3517 = vand.u32 2147483647, %v3324
        %vm3518 = vcmp.eq.f32.partialorder %v3517, 8.507059e+37
        %v3519 = vand.u32 %v3324, 2147483648
        %v3520 = vor.u32 1.1754944e-38, %v3519
        %v3521 = vsel %vm3518, %v3520, %v3516
        %v3522 = vmul.f32 1.0, %v3521
        %v3523 = vrcp.pop %v3325
        %v3524 = vmul.f32 %v3325, %v3523
        %v3525 = vsub.f32 1.0, %v3524
        %v3526 = vmul.f32 %v3523, %v3525
        %v3527 = vadd.f32 %v3523, %v3526
        %vm3528 = vweird.f32 %v3325
        %vm3529 = vweird.f32 %v3523
        %vm3530 = vmor %vm3528, %vm3529
        %v3531 = vsel %vm3530, %v3523, %v3527
        %v3532 = vand.u32 2147483647, %v3325
        %vm3533 = vcmp.eq.f32.partialorder %v3532, 8.507059e+37
        %v3534 = vand.u32 %v3325, 2147483648
        %v3535 = vor.u32 1.1754944e-38, %v3534
        %v3536 = vsel %vm3533, %v3535, %v3531
        %v3537 = vmul.f32 1.0, %v3536
        %v3538 = vrcp.pop %v3326
        %v3539 = vmul.f32 %v3326, %v3538
        %v3540 = vsub.f32 1.0, %v3539
        %v3541 = vmul.f32 %v3538, %v3540
        %v3542 = vadd.f32 %v3538, %v3541
        %vm3543 = vweird.f32 %v3326
        %vm3544 = vweird.f32 %v3538
        %vm3545 = vmor %vm3543, %vm3544
        %v3546 = vsel %vm3545, %v3538, %v3542
        %v3547 = vand.u32 2147483647, %v3326
        %vm3548 = vcmp.eq.f32.partialorder %v3547, 8.507059e+37
        %v3549 = vand.u32 %v3326, 2147483648
        %v3550 = vor.u32 1.1754944e-38, %v3549
        %v3551 = vsel %vm3548, %v3550, %v3546
        %v3552 = vmul.f32 1.0, %v3551
        %v3553 = vrcp.pop %v3327
        %v3554 = vmul.f32 %v3327, %v3553
        %v3555 = vsub.f32 1.0, %v3554
        %v3556 = vmul.f32 %v3553, %v3555
        %v3557 = vadd.f32 %v3553, %v3556
        %vm3558 = vweird.f32 %v3327
        %vm3559 = vweird.f32 %v3553
        %vm3560 = vmor %vm3558, %vm3559
        %v3561 = vsel %vm3560, %v3553, %v3557
        %v3562 = vand.u32 2147483647, %v3327
        %vm3563 = vcmp.eq.f32.partialorder %v3562, 8.507059e+37
        %v3564 = vand.u32 %v3327, 2147483648
        %v3565 = vor.u32 1.1754944e-38, %v3564
        %v3566 = vsel %vm3563, %v3565, %v3561
        %v3567 = vmul.f32 1.0, %v3566
        %v3568 = vmul.f32 %v3022, %v2889
        %v3569 = vmul.f32 %v3037, %v2891
        %v3570 = vmul.f32 %v3052, %v2894
        %v3571 = vmul.f32 %v3067, %v2896
        %v3572 = vmul.f32 %v3082, %v2899
        %v3573 = vmul.f32 %v3097, %v2901
        %v3574 = vmul.f32 %v3112, %v2904
        %v3575 = vmul.f32 %v3127, %v2906
        %v3576 = vmul.f32 %v3142, %v2909
        %v3577 = vmul.f32 %v3157, %v2911
        %v3578 = vmul.f32 %v3172, %v2914
        %v3579 = vmul.f32 %v3187, %v2916
        %v3580 = vmul.f32 %v3202, %v2919
        %v3581 = vmul.f32 %v3217, %v2921
        %v3582 = vmul.f32 %v3232, %v2924
        %v3583 = vmul.f32 %v3247, %v2926
        %v3584 = vadd.f32 %v2519, %v3568
        %v3585 = vadd.f32 %v2522, %v3569
        %v3586 = vadd.f32 %v2525, %v3570
        %v3587 = vadd.f32 %v2528, %v3571
        %v3588 = vadd.f32 %v2531, %v3572
        %v3589 = vadd.f32 %v2534, %v3573
        %v3590 = vadd.f32 %v2537, %v3574
        %v3591 = vadd.f32 %v2540, %v3575
        %v3592 = vadd.f32 %v2543, %v3576
        %v3593 = vadd.f32 %v2546, %v3577
        %v3594 = vadd.f32 %v2549, %v3578
        %v3595 = vadd.f32 %v2552, %v3579
        %v3596 = vadd.f32 %v2555, %v3580
        %v3597 = vadd.f32 %v2558, %v3581
        %v3598 = vadd.f32 %v2561, %v3582
        %v3599 = vadd.f32 %v2564, %v3583
        %v3600 = vtanh.pop %v3584
        %v3601 = vtanh.pop %v3585
        %v3602 = vtanh.pop %v3586
        %v3603 = vtanh.pop %v3587
        %v3604 = vtanh.pop %v3588
        %v3605 = vtanh.pop %v3589
        %v3606 = vtanh.pop %v3590
        %v3607 = vtanh.pop %v3591
        %v3608 = vtanh.pop %v3592
        %v3609 = vtanh.pop %v3593
        %v3610 = vtanh.pop %v3594
        %v3611 = vtanh.pop %v3595
        %v3612 = vtanh.pop %v3596
        %v3613 = vtanh.pop %v3597
        %v3614 = vtanh.pop %v3598
        %v3615 = vtanh.pop %v3599
        %v3616 = vsub.f32 1.0, %v3342
        %v3617 = vsub.f32 1.0, %v3357
        %v3618 = vsub.f32 1.0, %v3372
        %v3619 = vsub.f32 1.0, %v3387
        %v3620 = vsub.f32 1.0, %v3402
        %v3621 = vsub.f32 1.0, %v3417
        %v3622 = vsub.f32 1.0, %v3432
        %v3623 = vsub.f32 1.0, %v3447
        %v3624 = vsub.f32 1.0, %v3462
        %v3625 = vsub.f32 1.0, %v3477
        %v3626 = vsub.f32 1.0, %v3492
        %v3627 = vsub.f32 1.0, %v3507
        %v3628 = vsub.f32 1.0, %v3522
        %v3629 = vsub.f32 1.0, %v3537
        %v3630 = vsub.f32 1.0, %v3552
        %v3631 = vsub.f32 1.0, %v3567
        %v3632 = vmul.f32 %v3616, %v3600
        %v3633 = vmul.f32 %v3617, %v3601
        %v3634 = vmul.f32 %v3618, %v3602
        %v3635 = vmul.f32 %v3619, %v3603
        %v3636 = vmul.f32 %v3620, %v3604
        %v3637 = vmul.f32 %v3621, %v3605
        %v3638 = vmul.f32 %v3622, %v3606
        %v3639 = vmul.f32 %v3623, %v3607
        %v3640 = vmul.f32 %v3624, %v3608
        %v3641 = vmul.f32 %v3625, %v3609
        %v3642 = vmul.f32 %v3626, %v3610
        %v3643 = vmul.f32 %v3627, %v3611
        %v3644 = vmul.f32 %v3628, %v3612
        %v3645 = vmul.f32 %v3629, %v3613
        %v3646 = vmul.f32 %v3630, %v3614
        %v3647 = vmul.f32 %v3631, %v3615
        %v3648 = vmul.f32 %v3342, %v1945
        %v3649 = vmul.f32 %v3357, %v1946
        %v3650 = vmul.f32 %v3372, %v1947
        %v3651 = vmul.f32 %v3387, %v1948
        %v3652 = vmul.f32 %v3402, %v1949
        %v3653 = vmul.f32 %v3417, %v1950
        %v3654 = vmul.f32 %v3432, %v1951
        %v3655 = vmul.f32 %v3447, %v1952
        %v3656 = vmul.f32 %v3462, %v1953
        %v3657 = vmul.f32 %v3477, %v1954
        %v3658 = vmul.f32 %v3492, %v1955
        %v3659 = vmul.f32 %v3507, %v1956
        %v3660 = vmul.f32 %v3522, %v1957
        %v3661 = vmul.f32 %v3537, %v1958
        %v3662 = vmul.f32 %v3552, %v1959
        %v3663 = vmul.f32 %v3567, %v1960
        %v3664 = vadd.f32 %v3632, %v3648
        %v3665 = vadd.f32 %v3633, %v3649
        %v3666 = vadd.f32 %v3634, %v3650
        %v3667 = vadd.f32 %v3635, %v3651
        %v3668 = vadd.f32 %v3636, %v3652
        %v3669 = vadd.f32 %v3637, %v3653
        %v3670 = vadd.f32 %v3638, %v3654
        %v3671 = vadd.f32 %v3639, %v3655
        %v3672 = vadd.f32 %v3640, %v3656
        %v3673 = vadd.f32 %v3641, %v3657
        %v3674 = vadd.f32 %v3642, %v3658
        %v3675 = vadd.f32 %v3643, %v3659
        %v3676 = vadd.f32 %v3644, %v3660
        %v3677 = vadd.f32 %v3645, %v3661
        %v3678 = vadd.f32 %v3646, %v3662
        %v3679 = vadd.f32 %v3647, %v3663
        %v3680 = vmul.f32 %v3664, %v3664
        %v3681 = vmul.f32 %v3665, %v3665
        %v3682 = vmul.f32 %v3666, %v3666
        %v3683 = vmul.f32 %v3667, %v3667
        %v3684 = vmul.f32 %v3668, %v3668
        %v3685 = vmul.f32 %v3669, %v3669
        %v3686 = vmul.f32 %v3670, %v3670
        %v3687 = vmul.f32 %v3671, %v3671
        %v3688 = vmul.f32 %v3672, %v3672
        %v3689 = vmul.f32 %v3673, %v3673
        %v3690 = vmul.f32 %v3674, %v3674
        %v3691 = vmul.f32 %v3675, %v3675
        %v3692 = vmul.f32 %v3676, %v3676
        %v3693 = vmul.f32 %v3677, %v3677
        %v3694 = vmul.f32 %v3678, %v3678
        %v3695 = vmul.f32 %v3679, %v3679
        %3696 = vadd.xlane.f32.xlu0 %v3680
        %v3697 = vpop.xlane.xlu0 %3696
        %3698 = vadd.xlane.f32.xlu0 %v3681
        %v3699 = vpop.xlane.xlu0 %3698
        %3700 = vadd.xlane.f32.xlu0 %v3682
        %v3701 = vpop.xlane.xlu0 %3700
        %3702 = vadd.xlane.f32.xlu0 %v3683
        %v3703 = vpop.xlane.xlu0 %3702
        %3704 = vadd.xlane.f32.xlu0 %v3684
        %v3705 = vpop.xlane.xlu0 %3704
        %3706 = vadd.xlane.f32.xlu0 %v3685
        %v3707 = vpop.xlane.xlu0 %3706
        %3708 = vadd.xlane.f32.xlu0 %v3686
        %v3709 = vpop.xlane.xlu0 %3708
        %3710 = vadd.xlane.f32.xlu0 %v3687
        %v3711 = vpop.xlane.xlu0 %3710
        %3712 = vadd.xlane.f32.xlu0 %v3688
        %v3713 = vpop.xlane.xlu0 %3712
        %3714 = vadd.xlane.f32.xlu0 %v3689
        %v3715 = vpop.xlane.xlu0 %3714
        %3716 = vadd.xlane.f32.xlu0 %v3690
        %v3717 = vpop.xlane.xlu0 %3716
        %3718 = vadd.xlane.f32.xlu0 %v3691
        %v3719 = vpop.xlane.xlu0 %3718
        %3720 = vadd.xlane.f32.xlu0 %v3692
        %v3721 = vpop.xlane.xlu0 %3720
        %3722 = vadd.xlane.f32.xlu0 %v3693
        %v3723 = vpop.xlane.xlu0 %3722
        %3724 = vadd.xlane.f32.xlu0 %v3694
        %v3725 = vpop.xlane.xlu0 %3724
        %3726 = vadd.xlane.f32.xlu0 %v3695
        %v3727 = vpop.xlane.xlu0 %3726
        %v3728 = vmax.f32 %v3697, 1e-24
        %v3729 = vmax.f32 %v3699, 1e-24
        %v3730 = vmax.f32 %v3701, 1e-24
        %v3731 = vmax.f32 %v3703, 1e-24
        %v3732 = vmax.f32 %v3705, 1e-24
        %v3733 = vmax.f32 %v3707, 1e-24
        %v3734 = vmax.f32 %v3709, 1e-24
        %v3735 = vmax.f32 %v3711, 1e-24
        %v3736 = vmax.f32 %v3713, 1e-24
        %v3737 = vmax.f32 %v3715, 1e-24
        %v3738 = vmax.f32 %v3717, 1e-24
        %v3739 = vmax.f32 %v3719, 1e-24
        %v3740 = vmax.f32 %v3721, 1e-24
        %v3741 = vmax.f32 %v3723, 1e-24
        %v3742 = vmax.f32 %v3725, 1e-24
        %v3743 = vmax.f32 %v3727, 1e-24
        %v3744 = vrsqrt.pop %v3728
        %v3745 = vmul.f32 %v3744, %v3728
        %v3746 = vmul.f32 %v3745, %v3744
        %v3747 = vmul.f32 0.5, %v3746
        %v3748 = vsub.f32 1.5, %v3747
        %v3749 = vmul.f32 %v3744, %v3748
        %vm3750 = vweird.f32 %v3728
        %vm3751 = vweird.f32 %v3744
        %vm3752 = vmor %vm3750, %vm3751
        %v3753 = vsel %vm3752, %v3744, %v3749
        %v3754 = vrsqrt.pop %v3729
        %v3755 = vmul.f32 %v3754, %v3729
        %v3756 = vmul.f32 %v3755, %v3754
        %v3757 = vmul.f32 0.5, %v3756
        %v3758 = vsub.f32 1.5, %v3757
        %v3759 = vmul.f32 %v3754, %v3758
        %vm3760 = vweird.f32 %v3729
        %vm3761 = vweird.f32 %v3754
        %vm3762 = vmor %vm3760, %vm3761
        %v3763 = vsel %vm3762, %v3754, %v3759
        %v3764 = vrsqrt.pop %v3730
        %v3765 = vmul.f32 %v3764, %v3730
        %v3766 = vmul.f32 %v3765, %v3764
        %v3767 = vmul.f32 0.5, %v3766
        %v3768 = vsub.f32 1.5, %v3767
        %v3769 = vmul.f32 %v3764, %v3768
        %vm3770 = vweird.f32 %v3730
        %vm3771 = vweird.f32 %v3764
        %vm3772 = vmor %vm3770, %vm3771
        %v3773 = vsel %vm3772, %v3764, %v3769
        %v3774 = vrsqrt.pop %v3731
        %v3775 = vmul.f32 %v3774, %v3731
        %v3776 = vmul.f32 %v3775, %v3774
        %v3777 = vmul.f32 0.5, %v3776
        %v3778 = vsub.f32 1.5, %v3777
        %v3779 = vmul.f32 %v3774, %v3778
        %vm3780 = vweird.f32 %v3731
        %vm3781 = vweird.f32 %v3774
        %vm3782 = vmor %vm3780, %vm3781
        %v3783 = vsel %vm3782, %v3774, %v3779
        %v3784 = vrsqrt.pop %v3732
        %v3785 = vmul.f32 %v3784, %v3732
        %v3786 = vmul.f32 %v3785, %v3784
        %v3787 = vmul.f32 0.5, %v3786
        %v3788 = vsub.f32 1.5, %v3787
        %v3789 = vmul.f32 %v3784, %v3788
        %vm3790 = vweird.f32 %v3732
        %vm3791 = vweird.f32 %v3784
        %vm3792 = vmor %vm3790, %vm3791
        %v3793 = vsel %vm3792, %v3784, %v3789
        %v3794 = vrsqrt.pop %v3733
        %v3795 = vmul.f32 %v3794, %v3733
        %v3796 = vmul.f32 %v3795, %v3794
        %v3797 = vmul.f32 0.5, %v3796
        %v3798 = vsub.f32 1.5, %v3797
        %v3799 = vmul.f32 %v3794, %v3798
        %vm3800 = vweird.f32 %v3733
        %vm3801 = vweird.f32 %v3794
        %vm3802 = vmor %vm3800, %vm3801
        %v3803 = vsel %vm3802, %v3794, %v3799
        %v3804 = vrsqrt.pop %v3734
        %v3805 = vmul.f32 %v3804, %v3734
        %v3806 = vmul.f32 %v3805, %v3804
        %v3807 = vmul.f32 0.5, %v3806
        %v3808 = vsub.f32 1.5, %v3807
        %v3809 = vmul.f32 %v3804, %v3808
        %vm3810 = vweird.f32 %v3734
        %vm3811 = vweird.f32 %v3804
        %vm3812 = vmor %vm3810, %vm3811
        %v3813 = vsel %vm3812, %v3804, %v3809
        %v3814 = vrsqrt.pop %v3735
        %v3815 = vmul.f32 %v3814, %v3735
        %v3816 = vmul.f32 %v3815, %v3814
        %v3817 = vmul.f32 0.5, %v3816
        %v3818 = vsub.f32 1.5, %v3817
        %v3819 = vmul.f32 %v3814, %v3818
        %vm3820 = vweird.f32 %v3735
        %vm3821 = vweird.f32 %v3814
        %vm3822 = vmor %vm3820, %vm3821
        %v3823 = vsel %vm3822, %v3814, %v3819
        %v3824 = vrsqrt.pop %v3736
        %v3825 = vmul.f32 %v3824, %v3736
        %v3826 = vmul.f32 %v3825, %v3824
        %v3827 = vmul.f32 0.5, %v3826
        %v3828 = vsub.f32 1.5, %v3827
        %v3829 = vmul.f32 %v3824, %v3828
        %vm3830 = vweird.f32 %v3736
        %vm3831 = vweird.f32 %v3824
        %vm3832 = vmor %vm3830, %vm3831
        %v3833 = vsel %vm3832, %v3824, %v3829
        %v3834 = vrsqrt.pop %v3737
        %v3835 = vmul.f32 %v3834, %v3737
        %v3836 = vmul.f32 %v3835, %v3834
        %v3837 = vmul.f32 0.5, %v3836
        %v3838 = vsub.f32 1.5, %v3837
        %v3839 = vmul.f32 %v3834, %v3838
        %vm3840 = vweird.f32 %v3737
        %vm3841 = vweird.f32 %v3834
        %vm3842 = vmor %vm3840, %vm3841
        %v3843 = vsel %vm3842, %v3834, %v3839
        %v3844 = vrsqrt.pop %v3738
        %v3845 = vmul.f32 %v3844, %v3738
        %v3846 = vmul.f32 %v3845, %v3844
        %v3847 = vmul.f32 0.5, %v3846
        %v3848 = vsub.f32 1.5, %v3847
        %v3849 = vmul.f32 %v3844, %v3848
        %vm3850 = vweird.f32 %v3738
        %vm3851 = vweird.f32 %v3844
        %vm3852 = vmor %vm3850, %vm3851
        %v3853 = vsel %vm3852, %v3844, %v3849
        %v3854 = vrsqrt.pop %v3739
        %v3855 = vmul.f32 %v3854, %v3739
        %v3856 = vmul.f32 %v3855, %v3854
        %v3857 = vmul.f32 0.5, %v3856
        %v3858 = vsub.f32 1.5, %v3857
        %v3859 = vmul.f32 %v3854, %v3858
        %vm3860 = vweird.f32 %v3739
        %vm3861 = vweird.f32 %v3854
        %vm3862 = vmor %vm3860, %vm3861
        %v3863 = vsel %vm3862, %v3854, %v3859
        %v3864 = vrsqrt.pop %v3740
        %v3865 = vmul.f32 %v3864, %v3740
        %v3866 = vmul.f32 %v3865, %v3864
        %v3867 = vmul.f32 0.5, %v3866
        %v3868 = vsub.f32 1.5, %v3867
        %v3869 = vmul.f32 %v3864, %v3868
        %vm3870 = vweird.f32 %v3740
        %vm3871 = vweird.f32 %v3864
        %vm3872 = vmor %vm3870, %vm3871
        %v3873 = vsel %vm3872, %v3864, %v3869
        %v3874 = vrsqrt.pop %v3741
        %v3875 = vmul.f32 %v3874, %v3741
        %v3876 = vmul.f32 %v3875, %v3874
        %v3877 = vmul.f32 0.5, %v3876
        %v3878 = vsub.f32 1.5, %v3877
        %v3879 = vmul.f32 %v3874, %v3878
        %vm3880 = vweird.f32 %v3741
        %vm3881 = vweird.f32 %v3874
        %vm3882 = vmor %vm3880, %vm3881
        %v3883 = vsel %vm3882, %v3874, %v3879
        %v3884 = vrsqrt.pop %v3742
        %v3885 = vmul.f32 %v3884, %v3742
        %v3886 = vmul.f32 %v3885, %v3884
        %v3887 = vmul.f32 0.5, %v3886
        %v3888 = vsub.f32 1.5, %v3887
        %v3889 = vmul.f32 %v3884, %v3888
        %vm3890 = vweird.f32 %v3742
        %vm3891 = vweird.f32 %v3884
        %vm3892 = vmor %vm3890, %vm3891
        %v3893 = vsel %vm3892, %v3884, %v3889
        %v3894 = vrsqrt.pop %v3743
        %v3895 = vmul.f32 %v3894, %v3743
        %v3896 = vmul.f32 %v3895, %v3894
        %v3897 = vmul.f32 0.5, %v3896
        %v3898 = vsub.f32 1.5, %v3897
        %v3899 = vmul.f32 %v3894, %v3898
        %vm3900 = vweird.f32 %v3743
        %vm3901 = vweird.f32 %v3894
        %vm3902 = vmor %vm3900, %vm3901
        %v3903 = vsel %vm3902, %v3894, %v3899
        %v3904 = vmul.f32 %v3664, %v3753
        %v3905 = vmul.f32 %v3665, %v3763
        %v3906 = vmul.f32 %v3666, %v3773
        %v3907 = vmul.f32 %v3667, %v3783
        %v3908 = vmul.f32 %v3668, %v3793
        %v3909 = vmul.f32 %v3669, %v3803
        %v3910 = vmul.f32 %v3670, %v3813
        %v3911 = vmul.f32 %v3671, %v3823
        %v3912 = vmul.f32 %v3672, %v3833
        %v3913 = vmul.f32 %v3673, %v3843
        %v3914 = vmul.f32 %v3674, %v3853
        %v3915 = vmul.f32 %v3675, %v3863
        %v3916 = vmul.f32 %v3676, %v3873
        %v3917 = vmul.f32 %v3677, %v3883
        %v3918 = vmul.f32 %v3678, %v3893
        %v3919 = vmul.f32 %v3679, %v3903
        %3920 = vst [vmem:[#allocation3] sm:$0xff] %v3904
        %3921 = vst [vmem:[#allocation3 + $0x8] sm:$0xff] %v3905
        %3922 = vst [vmem:[#allocation3 + $0x10] sm:$0xff] %v3906
        %3923 = vst [vmem:[#allocation3 + $0x18] sm:$0xff] %v3907
        %3924 = vst [vmem:[#allocation3 + $0x20] sm:$0xff] %v3908
        %3925 = vst [vmem:[#allocation3 + $0x28] sm:$0xff] %v3909
        %3926 = vst [vmem:[#allocation3 + $0x30] sm:$0xff] %v3910
        %3927 = vst [vmem:[#allocation3 + $0x38] sm:$0xff] %v3911
        %3928 = vst [vmem:[#allocation3 + $0x40] sm:$0xff] %v3912
        %3929 = vst [vmem:[#allocation3 + $0x48] sm:$0xff] %v3913
        %3930 = vst [vmem:[#allocation3 + $0x50] sm:$0xff] %v3914
        %3931 = vst [vmem:[#allocation3 + $0x58] sm:$0xff] %v3915
        %3932 = vst [vmem:[#allocation3 + $0x60] sm:$0xff] %v3916
        %3933 = vst [vmem:[#allocation3 + $0x68] sm:$0xff] %v3917
        %3934 = vst [vmem:[#allocation3 + $0x70] sm:$0xff] %v3918
        %3935 = vst [vmem:[#allocation3 + $0x78] sm:$0xff] %v3919
        %v3936 = vpack.c.bf16 %v3904, %v3904
        %v3937 = vpack.c.bf16 %v3905, %v3905
        %v3938 = vpack.c.bf16 %v3906, %v3906
        %v3939 = vpack.c.bf16 %v3907, %v3907
        %v3940 = vpack.c.bf16 %v3908, %v3908
        %v3941 = vpack.c.bf16 %v3909, %v3909
        %v3942 = vpack.c.bf16 %v3910, %v3910
        %v3943 = vpack.c.bf16 %v3911, %v3911
        %v3944 = vpack.c.bf16 %v3912, %v3912
        %v3945 = vpack.c.bf16 %v3913, %v3913
        %v3946 = vpack.c.bf16 %v3914, %v3914
        %v3947 = vpack.c.bf16 %v3915, %v3915
        %v3948 = vpack.c.bf16 %v3916, %v3916
        %v3949 = vpack.c.bf16 %v3917, %v3917
        %v3950 = vpack.c.bf16 %v3918, %v3918
        %v3951 = vpack.c.bf16 %v3919, %v3919
        %3952 = vst [vmem:[#allocation4] sm:$0xf] %v3936
        %3953 = vst [vmem:[#allocation4 + $0x4] sm:$0xf] %v3937
        %3954 = vst [vmem:[#allocation4 + $0x8] sm:$0xf] %v3938
        %3955 = vst [vmem:[#allocation4 + $0xc] sm:$0xf] %v3939
        %3956 = vst [vmem:[#allocation4 + $0x10] sm:$0xf] %v3940
        %3957 = vst [vmem:[#allocation4 + $0x14] sm:$0xf] %v3941
        %3958 = vst [vmem:[#allocation4 + $0x18] sm:$0xf] %v3942
        %3959 = vst [vmem:[#allocation4 + $0x1c] sm:$0xf] %v3943
        %3960 = vst [vmem:[#allocation4 + $0x20] sm:$0xf] %v3944
        %3961 = vst [vmem:[#allocation4 + $0x24] sm:$0xf] %v3945
        %3962 = vst [vmem:[#allocation4 + $0x28] sm:$0xf] %v3946
        %3963 = vst [vmem:[#allocation4 + $0x2c] sm:$0xf] %v3947
        %3964 = vst [vmem:[#allocation4 + $0x30] sm:$0xf] %v3948
        %3965 = vst [vmem:[#allocation4 + $0x34] sm:$0xf] %v3949
        %3966 = vst [vmem:[#allocation4 + $0x38] sm:$0xf] %v3950
        %3967 = vst [vmem:[#allocation4 + $0x3c] sm:$0xf] %v3951
        %v3968 = vld [vmem:[%s631] sm:$0xf]
        %v3969 = vld [vmem:[%s631 + $0x4] sm:$0xf]
        %v3970 = vld [vmem:[%s631 + $0x8] sm:$0xf]
        %v3971 = vld [vmem:[%s631 + $0xc] sm:$0xf]
        %v3972 = vld [vmem:[%s631 + $0x10] sm:$0xf]
        %v3973 = vld [vmem:[%s631 + $0x14] sm:$0xf]
        %v3974 = vld [vmem:[%s631 + $0x18] sm:$0xf]
        %v3975 = vld [vmem:[%s631 + $0x1c] sm:$0xf]
        %v3976 = vld [vmem:[%s631 + $0x20] sm:$0xf]
        %v3977 = vld [vmem:[%s631 + $0x24] sm:$0xf]
        %v3978 = vld [vmem:[%s631 + $0x28] sm:$0xf]
        %v3979 = vld [vmem:[%s631 + $0x2c] sm:$0xf]
        %v3980 = vld [vmem:[%s631 + $0x30] sm:$0xf]
        %v3981 = vld [vmem:[%s631 + $0x34] sm:$0xf]
        %v3982 = vld [vmem:[%s631 + $0x38] sm:$0xf]
        %v3983 = vld [vmem:[%s631 + $0x3c] sm:$0xf]
        %v3984 = vld [vmem:[%s641] sm:$0xf]
        %v3985 = vld [vmem:[%s641 + $0x4] sm:$0xf]
        %v3986 = vld [vmem:[%s641 + $0x8] sm:$0xf]
        %v3987 = vld [vmem:[%s641 + $0xc] sm:$0xf]
        %v3988 = vld [vmem:[%s641 + $0x10] sm:$0xf]
        %v3989 = vld [vmem:[%s641 + $0x14] sm:$0xf]
        %v3990 = vld [vmem:[%s641 + $0x18] sm:$0xf]
        %v3991 = vld [vmem:[%s641 + $0x1c] sm:$0xf]
        %v3992 = vld [vmem:[%s641 + $0x20] sm:$0xf]
        %v3993 = vld [vmem:[%s641 + $0x24] sm:$0xf]
        %v3994 = vld [vmem:[%s641 + $0x28] sm:$0xf]
        %v3995 = vld [vmem:[%s641 + $0x2c] sm:$0xf]
        %v3996 = vld [vmem:[%s641 + $0x30] sm:$0xf]
        %v3997 = vld [vmem:[%s641 + $0x34] sm:$0xf]
        %v3998 = vld [vmem:[%s641 + $0x38] sm:$0xf]
        %v3999 = vld [vmem:[%s641 + $0x3c] sm:$0xf]
        %v4016 = vunpack.c.l.b16 %v3984
        %v4017 = vunpack.c.l.b16 %v3985
        %v4018 = vunpack.c.l.b16 %v3986
        %v4019 = vunpack.c.l.b16 %v3987
        %v4020 = vunpack.c.l.b16 %v3988
        %v4021 = vunpack.c.l.b16 %v3989
        %v4022 = vunpack.c.l.b16 %v3990
        %v4023 = vunpack.c.l.b16 %v3991
        %v4024 = vunpack.c.l.b16 %v3992
        %v4025 = vunpack.c.l.b16 %v3993
        %v4026 = vunpack.c.l.b16 %v3994
        %v4027 = vunpack.c.l.b16 %v3995
        %v4028 = vunpack.c.l.b16 %v3996
        %v4029 = vunpack.c.l.b16 %v3997
        %v4030 = vunpack.c.l.b16 %v3998
        %v4031 = vunpack.c.l.b16 %v3999
        %v4032 = vpack.c.b16 %v4017, %v4016
        %v4033 = vpack.c.b16 %v4019, %v4018
        %v4034 = vpack.c.b16 %v4021, %v4020
        %v4035 = vpack.c.b16 %v4023, %v4022
        %v4036 = vpack.c.b16 %v4025, %v4024
        %v4037 = vpack.c.b16 %v4027, %v4026
        %v4038 = vpack.c.b16 %v4029, %v4028
        %v4039 = vpack.c.b16 %v4031, %v4030
        %v4064 = vunpack.c.l.b16 %v3936
        %v4065 = vunpack.c.l.b16 %v3937
        %v4066 = vunpack.c.l.b16 %v3938
        %v4067 = vunpack.c.l.b16 %v3939
        %v4068 = vunpack.c.l.b16 %v3940
        %v4069 = vunpack.c.l.b16 %v3941
        %v4070 = vunpack.c.l.b16 %v3942
        %v4071 = vunpack.c.l.b16 %v3943
        %v4072 = vunpack.c.l.b16 %v3944
        %v4073 = vunpack.c.l.b16 %v3945
        %v4074 = vunpack.c.l.b16 %v3946
        %v4075 = vunpack.c.l.b16 %v3947
        %v4076 = vunpack.c.l.b16 %v3948
        %v4077 = vunpack.c.l.b16 %v3949
        %v4078 = vunpack.c.l.b16 %v3950
        %v4079 = vunpack.c.l.b16 %v3951
        %v4080 = vpack.c.b16 %v4065, %v4064
        %v4081 = vpack.c.b16 %v4067, %v4066
        %v4082 = vpack.c.b16 %v4069, %v4068
        %v4083 = vpack.c.b16 %v4071, %v4070
        %v4084 = vpack.c.b16 %v4073, %v4072
        %v4085 = vpack.c.b16 %v4075, %v4074
        %v4086 = vpack.c.b16 %v4077, %v4076
        %v4087 = vpack.c.b16 %v4079, %v4078
        %4096 = vmatpush.bf16.msra.mxu0 %v4087
        %4097 = vmatpush.bf16.msra.mxu0 %v4086
        %4098 = vmatpush.bf16.msra.mxu0 %v4085
        %4099 = vmatpush.bf16.msra.mxu0 %v4084
        %4100 = vmatpush.bf16.msra.mxu0 %v4083
        %4101 = vmatpush.bf16.msra.mxu0 %v4082
        %4102 = vmatpush.bf16.msra.mxu0 %v4081
        %4103 = vmatpush.bf16.msra.mxu0 %v4080
        %4104 = vmatmul.bf16.gmra.mxu0 %v4032
        %v4105 = vpop.f32.mrf.mxu0
        %v4106 = vadd.f32 0.0, %v4105
        %v4107 = vpop.f32.mrf.mxu0
        %v4108 = vadd.f32 0.0, %v4107
        %4109 = vmatmul.bf16.gmra.mxu0 %v4033
        %v4110 = vpop.f32.mrf.mxu0
        %v4111 = vadd.f32 0.0, %v4110
        %v4112 = vpop.f32.mrf.mxu0
        %v4113 = vadd.f32 0.0, %v4112
        %4114 = vmatmul.bf16.gmra.mxu0 %v4034
        %v4115 = vpop.f32.mrf.mxu0
        %v4116 = vadd.f32 0.0, %v4115
        %v4117 = vpop.f32.mrf.mxu0
        %v4118 = vadd.f32 0.0, %v4117
        %4119 = vmatmul.bf16.gmra.mxu0 %v4035
        %v4120 = vpop.f32.mrf.mxu0
        %v4121 = vadd.f32 0.0, %v4120
        %v4122 = vpop.f32.mrf.mxu0
        %v4123 = vadd.f32 0.0, %v4122
        %4124 = vmatmul.bf16.gmra.mxu0 %v4036
        %v4125 = vpop.f32.mrf.mxu0
        %v4126 = vadd.f32 0.0, %v4125
        %v4127 = vpop.f32.mrf.mxu0
        %v4128 = vadd.f32 0.0, %v4127
        %4129 = vmatmul.bf16.gmra.mxu0 %v4037
        %v4130 = vpop.f32.mrf.mxu0
        %v4131 = vadd.f32 0.0, %v4130
        %v4132 = vpop.f32.mrf.mxu0
        %v4133 = vadd.f32 0.0, %v4132
        %4134 = vmatmul.bf16.gmra.mxu0 %v4038
        %v4135 = vpop.f32.mrf.mxu0
        %v4136 = vadd.f32 0.0, %v4135
        %v4137 = vpop.f32.mrf.mxu0
        %v4138 = vadd.f32 0.0, %v4137
        %4139 = vmatmul.bf16.gmra.mxu0 %v4039
        %v4140 = vpop.f32.mrf.mxu0
        %v4141 = vadd.f32 0.0, %v4140
        %v4142 = vpop.f32.mrf.mxu0
        %v4143 = vadd.f32 0.0, %v4142
        %4144 = vdwg.mxu0
        %v4161 = vunpack.c.l.b16 %v3968
        %v4162 = vunpack.c.l.b16 %v3969
        %v4163 = vunpack.c.l.b16 %v3970
        %v4164 = vunpack.c.l.b16 %v3971
        %v4165 = vunpack.c.l.b16 %v3972
        %v4166 = vunpack.c.l.b16 %v3973
        %v4167 = vunpack.c.l.b16 %v3974
        %v4168 = vunpack.c.l.b16 %v3975
        %v4169 = vunpack.c.l.b16 %v3976
        %v4170 = vunpack.c.l.b16 %v3977
        %v4171 = vunpack.c.l.b16 %v3978
        %v4172 = vunpack.c.l.b16 %v3979
        %v4173 = vunpack.c.l.b16 %v3980
        %v4174 = vunpack.c.l.b16 %v3981
        %v4175 = vunpack.c.l.b16 %v3982
        %v4176 = vunpack.c.l.b16 %v3983
        %v4177 = vpack.c.b16 %v4162, %v4161
        %v4178 = vpack.c.b16 %v4164, %v4163
        %v4179 = vpack.c.b16 %v4166, %v4165
        %v4180 = vpack.c.b16 %v4168, %v4167
        %v4181 = vpack.c.b16 %v4170, %v4169
        %v4182 = vpack.c.b16 %v4172, %v4171
        %v4183 = vpack.c.b16 %v4174, %v4173
        %v4184 = vpack.c.b16 %v4176, %v4175
        %4193 = vmatpush.bf16.msra.mxu0 %v2096
        %4194 = vmatpush.bf16.msra.mxu0 %v2095
        %4195 = vmatpush.bf16.msra.mxu0 %v2094
        %4196 = vmatpush.bf16.msra.mxu0 %v2093
        %4197 = vmatpush.bf16.msra.mxu0 %v2092
        %4198 = vmatpush.bf16.msra.mxu0 %v2091
        %4199 = vmatpush.bf16.msra.mxu0 %v2090
        %4200 = vmatpush.bf16.msra.mxu0 %v2089
        %4201 = vmatmul.bf16.gmra.mxu0 %v4177
        %v4202 = vpop.f32.mrf.mxu0
        %v4203 = vadd.f32 %v4106, %v4202
        %v4204 = vpop.f32.mrf.mxu0
        %v4205 = vadd.f32 %v4108, %v4204
        %4206 = vmatmul.bf16.gmra.mxu0 %v4178
        %v4207 = vpop.f32.mrf.mxu0
        %v4208 = vadd.f32 %v4111, %v4207
        %v4209 = vpop.f32.mrf.mxu0
        %v4210 = vadd.f32 %v4113, %v4209
        %4211 = vmatmul.bf16.gmra.mxu0 %v4179
        %v4212 = vpop.f32.mrf.mxu0
        %v4213 = vadd.f32 %v4116, %v4212
        %v4214 = vpop.f32.mrf.mxu0
        %v4215 = vadd.f32 %v4118, %v4214
        %4216 = vmatmul.bf16.gmra.mxu0 %v4180
        %v4217 = vpop.f32.mrf.mxu0
        %v4218 = vadd.f32 %v4121, %v4217
        %v4219 = vpop.f32.mrf.mxu0
        %v4220 = vadd.f32 %v4123, %v4219
        %4221 = vmatmul.bf16.gmra.mxu0 %v4181
        %v4222 = vpop.f32.mrf.mxu0
        %v4223 = vadd.f32 %v4126, %v4222
        %v4224 = vpop.f32.mrf.mxu0
        %v4225 = vadd.f32 %v4128, %v4224
        %4226 = vmatmul.bf16.gmra.mxu0 %v4182
        %v4227 = vpop.f32.mrf.mxu0
        %v4228 = vadd.f32 %v4131, %v4227
        %v4229 = vpop.f32.mrf.mxu0
        %v4230 = vadd.f32 %v4133, %v4229
        %4231 = vmatmul.bf16.gmra.mxu0 %v4183
        %v4232 = vpop.f32.mrf.mxu0
        %v4233 = vadd.f32 %v4136, %v4232
        %v4234 = vpop.f32.mrf.mxu0
        %v4235 = vadd.f32 %v4138, %v4234
        %4236 = vmatmul.bf16.gmra.mxu0 %v4184
        %v4237 = vpop.f32.mrf.mxu0
        %v4238 = vadd.f32 %v4141, %v4237
        %v4239 = vpop.f32.mrf.mxu0
        %v4240 = vadd.f32 %v4143, %v4239
        %4241 = vdwg.mxu0
        %v4242 = vpack.c.bf16 %v4203, %v4203
        %v4243 = vpack.c.bf16 %v4205, %v4205
        %v4244 = vpack.c.bf16 %v4208, %v4208
        %v4245 = vpack.c.bf16 %v4210, %v4210
        %v4246 = vpack.c.bf16 %v4213, %v4213
        %v4247 = vpack.c.bf16 %v4215, %v4215
        %v4248 = vpack.c.bf16 %v4218, %v4218
        %v4249 = vpack.c.bf16 %v4220, %v4220
        %v4250 = vpack.c.bf16 %v4223, %v4223
        %v4251 = vpack.c.bf16 %v4225, %v4225
        %v4252 = vpack.c.bf16 %v4228, %v4228
        %v4253 = vpack.c.bf16 %v4230, %v4230
        %v4254 = vpack.c.bf16 %v4233, %v4233
        %v4255 = vpack.c.bf16 %v4235, %v4235
        %v4256 = vpack.c.bf16 %v4238, %v4238
        %v4257 = vpack.c.bf16 %v4240, %v4240
        %4258 = vst [vmem:[#allocation2] sm:$0xf] %v4242
        %4259 = vst [vmem:[#allocation2 + $0x8] sm:$0xf] %v4243
        %4260 = vst [vmem:[#allocation2 + $0x10] sm:$0xf] %v4244
        %4261 = vst [vmem:[#allocation2 + $0x18] sm:$0xf] %v4245
        %4262 = vst [vmem:[#allocation2 + $0x20] sm:$0xf] %v4246
        %4263 = vst [vmem:[#allocation2 + $0x28] sm:$0xf] %v4247
        %4264 = vst [vmem:[#allocation2 + $0x30] sm:$0xf] %v4248
        %4265 = vst [vmem:[#allocation2 + $0x38] sm:$0xf] %v4249
        %4266 = vst [vmem:[#allocation2 + $0x40] sm:$0xf] %v4250
        %4267 = vst [vmem:[#allocation2 + $0x48] sm:$0xf] %v4251
        %4268 = vst [vmem:[#allocation2 + $0x50] sm:$0xf] %v4252
        %4269 = vst [vmem:[#allocation2 + $0x58] sm:$0xf] %v4253
        %4270 = vst [vmem:[#allocation2 + $0x60] sm:$0xf] %v4254
        %4271 = vst [vmem:[#allocation2 + $0x68] sm:$0xf] %v4255
        %4272 = vst [vmem:[#allocation2 + $0x70] sm:$0xf] %v4256
        %4273 = vst [vmem:[#allocation2 + $0x78] sm:$0xf] %v4257
        %v4274 = vld [vmem:[#allocation2] sm:$0xff]
        %v4275 = vld [vmem:[#allocation2 + $0x8] sm:$0xff]
        %v4276 = vld [vmem:[#allocation2 + $0x10] sm:$0xff]
        %v4277 = vld [vmem:[#allocation2 + $0x18] sm:$0xff]
        %v4278 = vld [vmem:[#allocation2 + $0x20] sm:$0xff]
        %v4279 = vld [vmem:[#allocation2 + $0x28] sm:$0xff]
        %v4280 = vld [vmem:[#allocation2 + $0x30] sm:$0xff]
        %v4281 = vld [vmem:[#allocation2 + $0x38] sm:$0xff]
        %v4282 = vld [vmem:[#allocation2 + $0x40] sm:$0xff]
        %v4283 = vld [vmem:[#allocation2 + $0x48] sm:$0xff]
        %v4284 = vld [vmem:[#allocation2 + $0x50] sm:$0xff]
        %v4285 = vld [vmem:[#allocation2 + $0x58] sm:$0xff]
        %v4286 = vld [vmem:[#allocation2 + $0x60] sm:$0xff]
        %v4287 = vld [vmem:[#allocation2 + $0x68] sm:$0xff]
        %v4288 = vld [vmem:[#allocation2 + $0x70] sm:$0xff]
        %v4289 = vld [vmem:[#allocation2 + $0x78] sm:$0xff]
        %v4290 = vld [vmem:[#allocation25] sm:$0xf]
        %v4291 = vld [vmem:[#allocation25 + $0x4] sm:$0xf]
        %v4292 = vld [vmem:[#allocation25 + $0x8] sm:$0xf]
        %v4293 = vld [vmem:[#allocation25 + $0xc] sm:$0xf]
        %v4294 = vld [vmem:[#allocation25 + $0x10] sm:$0xf]
        %v4295 = vld [vmem:[#allocation25 + $0x14] sm:$0xf]
        %v4296 = vld [vmem:[#allocation25 + $0x18] sm:$0xf]
        %v4297 = vld [vmem:[#allocation25 + $0x1c] sm:$0xf]
        %v4298 = vld [vmem:[#allocation25 + $0x20] sm:$0xf]
        %v4299 = vld [vmem:[#allocation25 + $0x24] sm:$0xf]
        %v4300 = vld [vmem:[#allocation25 + $0x28] sm:$0xf]
        %v4301 = vld [vmem:[#allocation25 + $0x2c] sm:$0xf]
        %v4302 = vld [vmem:[#allocation25 + $0x30] sm:$0xf]
        %v4303 = vld [vmem:[#allocation25 + $0x34] sm:$0xf]
        %v4304 = vld [vmem:[#allocation25 + $0x38] sm:$0xf]
        %v4305 = vld [vmem:[#allocation25 + $0x3c] sm:$0xf]
        %v4306 = vld [vmem:[#allocation25 + $0x40] sm:$0xf]
        %v4307 = vld [vmem:[#allocation25 + $0x44] sm:$0xf]
        %v4308 = vld [vmem:[#allocation25 + $0x48] sm:$0xf]
        %v4309 = vld [vmem:[#allocation25 + $0x4c] sm:$0xf]
        %v4310 = vld [vmem:[#allocation25 + $0x50] sm:$0xf]
        %v4311 = vld [vmem:[#allocation25 + $0x54] sm:$0xf]
        %v4312 = vld [vmem:[#allocation25 + $0x58] sm:$0xf]
        %v4313 = vld [vmem:[#allocation25 + $0x5c] sm:$0xf]
        %v4314 = vld [vmem:[#allocation25 + $0x60] sm:$0xf]
        %v4315 = vld [vmem:[#allocation25 + $0x64] sm:$0xf]
        %v4316 = vld [vmem:[#allocation25 + $0x68] sm:$0xf]
        %v4317 = vld [vmem:[#allocation25 + $0x6c] sm:$0xf]
        %v4318 = vld [vmem:[#allocation25 + $0x70] sm:$0xf]
        %v4319 = vld [vmem:[#allocation25 + $0x74] sm:$0xf]
        %v4320 = vld [vmem:[#allocation25 + $0x78] sm:$0xf]
        %v4321 = vld [vmem:[#allocation25 + $0x7c] sm:$0xf]
        %v4338 = vunpack.c.l.b16 %v4274
        %v4339 = vunpack.c.h.b16 %v4274
        %v4340 = vunpack.c.l.b16 %v4275
        %v4341 = vunpack.c.h.b16 %v4275
        %v4342 = vunpack.c.l.b16 %v4276
        %v4343 = vunpack.c.h.b16 %v4276
        %v4344 = vunpack.c.l.b16 %v4277
        %v4345 = vunpack.c.h.b16 %v4277
        %v4346 = vunpack.c.l.b16 %v4278
        %v4347 = vunpack.c.h.b16 %v4278
        %v4348 = vunpack.c.l.b16 %v4279
        %v4349 = vunpack.c.h.b16 %v4279
        %v4350 = vunpack.c.l.b16 %v4280
        %v4351 = vunpack.c.h.b16 %v4280
        %v4352 = vunpack.c.l.b16 %v4281
        %v4353 = vunpack.c.h.b16 %v4281
        %v4354 = vunpack.c.l.b16 %v4282
        %v4355 = vunpack.c.h.b16 %v4282
        %v4356 = vunpack.c.l.b16 %v4283
        %v4357 = vunpack.c.h.b16 %v4283
        %v4358 = vunpack.c.l.b16 %v4284
        %v4359 = vunpack.c.h.b16 %v4284
        %v4360 = vunpack.c.l.b16 %v4285
        %v4361 = vunpack.c.h.b16 %v4285
        %v4362 = vunpack.c.l.b16 %v4286
        %v4363 = vunpack.c.h.b16 %v4286
        %v4364 = vunpack.c.l.b16 %v4287
        %v4365 = vunpack.c.h.b16 %v4287
        %v4366 = vunpack.c.l.b16 %v4288
        %v4367 = vunpack.c.h.b16 %v4288
        %v4368 = vunpack.c.l.b16 %v4289
        %v4369 = vunpack.c.h.b16 %v4289
        %v4370 = vpack.c.b16 %v4340, %v4338
        %v4371 = vpack.c.b16 %v4341, %v4339
        %v4372 = vpack.c.b16 %v4344, %v4342
        %v4373 = vpack.c.b16 %v4345, %v4343
        %v4374 = vpack.c.b16 %v4348, %v4346
        %v4375 = vpack.c.b16 %v4349, %v4347
        %v4376 = vpack.c.b16 %v4352, %v4350
        %v4377 = vpack.c.b16 %v4353, %v4351
        %v4378 = vpack.c.b16 %v4356, %v4354
        %v4379 = vpack.c.b16 %v4357, %v4355
        %v4380 = vpack.c.b16 %v4360, %v4358
        %v4381 = vpack.c.b16 %v4361, %v4359
        %v4382 = vpack.c.b16 %v4364, %v4362
        %v4383 = vpack.c.b16 %v4365, %v4363
        %v4384 = vpack.c.b16 %v4368, %v4366
        %v4385 = vpack.c.b16 %v4369, %v4367
        %v4434 = vunpack.c.l.b16 %v4290
        %v4435 = vunpack.c.l.b16 %v4291
        %v4436 = vunpack.c.l.b16 %v4292
        %v4437 = vunpack.c.l.b16 %v4293
        %v4438 = vunpack.c.l.b16 %v4294
        %v4439 = vunpack.c.l.b16 %v4295
        %v4440 = vunpack.c.l.b16 %v4296
        %v4441 = vunpack.c.l.b16 %v4297
        %v4442 = vunpack.c.l.b16 %v4298
        %v4443 = vunpack.c.l.b16 %v4299
        %v4444 = vunpack.c.l.b16 %v4300
        %v4445 = vunpack.c.l.b16 %v4301
        %v4446 = vunpack.c.l.b16 %v4302
        %v4447 = vunpack.c.l.b16 %v4303
        %v4448 = vunpack.c.l.b16 %v4304
        %v4449 = vunpack.c.l.b16 %v4305
        %v4450 = vunpack.c.l.b16 %v4306
        %v4451 = vunpack.c.l.b16 %v4307
        %v4452 = vunpack.c.l.b16 %v4308
        %v4453 = vunpack.c.l.b16 %v4309
        %v4454 = vunpack.c.l.b16 %v4310
        %v4455 = vunpack.c.l.b16 %v4311
        %v4456 = vunpack.c.l.b16 %v4312
        %v4457 = vunpack.c.l.b16 %v4313
        %v4458 = vunpack.c.l.b16 %v4314
        %v4459 = vunpack.c.l.b16 %v4315
        %v4460 = vunpack.c.l.b16 %v4316
        %v4461 = vunpack.c.l.b16 %v4317
        %v4462 = vunpack.c.l.b16 %v4318
        %v4463 = vunpack.c.l.b16 %v4319
        %v4464 = vunpack.c.l.b16 %v4320
        %v4465 = vunpack.c.l.b16 %v4321
        %v4466 = vpack.c.b16 %v4435, %v4434
        %v4467 = vpack.c.b16 %v4437, %v4436
        %v4468 = vpack.c.b16 %v4439, %v4438
        %v4469 = vpack.c.b16 %v4441, %v4440
        %v4470 = vpack.c.b16 %v4443, %v4442
        %v4471 = vpack.c.b16 %v4445, %v4444
        %v4472 = vpack.c.b16 %v4447, %v4446
        %v4473 = vpack.c.b16 %v4449, %v4448
        %v4474 = vpack.c.b16 %v4451, %v4450
        %v4475 = vpack.c.b16 %v4453, %v4452
        %v4476 = vpack.c.b16 %v4455, %v4454
        %v4477 = vpack.c.b16 %v4457, %v4456
        %v4478 = vpack.c.b16 %v4459, %v4458
        %v4479 = vpack.c.b16 %v4461, %v4460
        %v4480 = vpack.c.b16 %v4463, %v4462
        %v4481 = vpack.c.b16 %v4465, %v4464
        %4498 = vmatpush.bf16.msra.mxu0 %v4473
        %4499 = vmatpush.bf16.msra.mxu0 %v4472
        %4500 = vmatpush.bf16.msra.mxu0 %v4471
        %4501 = vmatpush.bf16.msra.mxu0 %v4470
        %4502 = vmatpush.bf16.msra.mxu0 %v4469
        %4503 = vmatpush.bf16.msra.mxu0 %v4468
        %4504 = vmatpush.bf16.msra.mxu0 %v4467
        %4505 = vmatpush.bf16.msra.mxu0 %v4466
        %4506 = vmatmul.bf16.gmra.mxu0 %v4370
        %v4507 = vpop.f32.mrf.mxu0
        %v4508 = vadd.f32 0.0, %v4507
        %v4509 = vpop.f32.mrf.mxu0
        %v4510 = vadd.f32 0.0, %v4509
        %4511 = vmatmul.bf16.gmra.mxu0 %v4372
        %v4512 = vpop.f32.mrf.mxu0
        %v4513 = vadd.f32 0.0, %v4512
        %v4514 = vpop.f32.mrf.mxu0
        %v4515 = vadd.f32 0.0, %v4514
        %4516 = vmatmul.bf16.gmra.mxu0 %v4374
        %v4517 = vpop.f32.mrf.mxu0
        %v4518 = vadd.f32 0.0, %v4517
        %v4519 = vpop.f32.mrf.mxu0
        %v4520 = vadd.f32 0.0, %v4519
        %4521 = vmatmul.bf16.gmra.mxu0 %v4376
        %v4522 = vpop.f32.mrf.mxu0
        %v4523 = vadd.f32 0.0, %v4522
        %v4524 = vpop.f32.mrf.mxu0
        %v4525 = vadd.f32 0.0, %v4524
        %4526 = vmatmul.bf16.gmra.mxu0 %v4378
        %v4527 = vpop.f32.mrf.mxu0
        %v4528 = vadd.f32 0.0, %v4527
        %v4529 = vpop.f32.mrf.mxu0
        %v4530 = vadd.f32 0.0, %v4529
        %4531 = vmatmul.bf16.gmra.mxu0 %v4380
        %v4532 = vpop.f32.mrf.mxu0
        %v4533 = vadd.f32 0.0, %v4532
        %v4534 = vpop.f32.mrf.mxu0
        %v4535 = vadd.f32 0.0, %v4534
        %4536 = vmatmul.bf16.gmra.mxu0 %v4382
        %v4537 = vpop.f32.mrf.mxu0
        %v4538 = vadd.f32 0.0, %v4537
        %v4539 = vpop.f32.mrf.mxu0
        %v4540 = vadd.f32 0.0, %v4539
        %4541 = vmatmul.bf16.gmra.mxu0 %v4384
        %v4542 = vpop.f32.mrf.mxu0
        %v4543 = vadd.f32 0.0, %v4542
        %v4544 = vpop.f32.mrf.mxu0
        %v4545 = vadd.f32 0.0, %v4544
        %4546 = vdwg.mxu0
        %4547 = vmatpush.bf16.msra.mxu0 %v4481
        %4548 = vmatpush.bf16.msra.mxu0 %v4480
        %4549 = vmatpush.bf16.msra.mxu0 %v4479
        %4550 = vmatpush.bf16.msra.mxu0 %v4478
        %4551 = vmatpush.bf16.msra.mxu0 %v4477
        %4552 = vmatpush.bf16.msra.mxu0 %v4476
        %4553 = vmatpush.bf16.msra.mxu0 %v4475
        %4554 = vmatpush.bf16.msra.mxu0 %v4474
        %4555 = vmatmul.bf16.gmra.mxu0 %v4371
        %v4556 = vpop.f32.mrf.mxu0
        %v4557 = vadd.f32 %v4508, %v4556
        %v4558 = vpop.f32.mrf.mxu0
        %v4559 = vadd.f32 %v4510, %v4558
        %4560 = vmatmul.bf16.gmra.mxu0 %v4373
        %v4561 = vpop.f32.mrf.mxu0
        %v4562 = vadd.f32 %v4513, %v4561
        %v4563 = vpop.f32.mrf.mxu0
        %v4564 = vadd.f32 %v4515, %v4563
        %4565 = vmatmul.bf16.gmra.mxu0 %v4375
        %v4566 = vpop.f32.mrf.mxu0
        %v4567 = vadd.f32 %v4518, %v4566
        %v4568 = vpop.f32.mrf.mxu0
        %v4569 = vadd.f32 %v4520, %v4568
        %4570 = vmatmul.bf16.gmra.mxu0 %v4377
        %v4571 = vpop.f32.mrf.mxu0
        %v4572 = vadd.f32 %v4523, %v4571
        %v4573 = vpop.f32.mrf.mxu0
        %v4574 = vadd.f32 %v4525, %v4573
        %4575 = vmatmul.bf16.gmra.mxu0 %v4379
        %v4576 = vpop.f32.mrf.mxu0
        %v4577 = vadd.f32 %v4528, %v4576
        %v4578 = vpop.f32.mrf.mxu0
        %v4579 = vadd.f32 %v4530, %v4578
        %4580 = vmatmul.bf16.gmra.mxu0 %v4381
        %v4581 = vpop.f32.mrf.mxu0
        %v4582 = vadd.f32 %v4533, %v4581
        %v4583 = vpop.f32.mrf.mxu0
        %v4584 = vadd.f32 %v4535, %v4583
        %4585 = vmatmul.bf16.gmra.mxu0 %v4383
        %v4586 = vpop.f32.mrf.mxu0
        %v4587 = vadd.f32 %v4538, %v4586
        %v4588 = vpop.f32.mrf.mxu0
        %v4589 = vadd.f32 %v4540, %v4588
        %4590 = vmatmul.bf16.gmra.mxu0 %v4385
        %v4591 = vpop.f32.mrf.mxu0
        %v4592 = vadd.f32 %v4543, %v4591
        %v4593 = vpop.f32.mrf.mxu0
        %v4594 = vadd.f32 %v4545, %v4593
        %4595 = vdwg.mxu0
        %v4596 = vtanh.pop %v4557
        %v4597 = vtanh.pop %v4559
        %v4598 = vtanh.pop %v4562
        %v4599 = vtanh.pop %v4564
        %v4600 = vtanh.pop %v4567
        %v4601 = vtanh.pop %v4569
        %v4602 = vtanh.pop %v4572
        %v4603 = vtanh.pop %v4574
        %v4604 = vtanh.pop %v4577
        %v4605 = vtanh.pop %v4579
        %v4606 = vtanh.pop %v4582
        %v4607 = vtanh.pop %v4584
        %v4608 = vtanh.pop %v4587
        %v4609 = vtanh.pop %v4589
        %v4610 = vtanh.pop %v4592
        %v4611 = vtanh.pop %v4594
        %v4612 = vpack.c.bf16 %v4597, %v4596
        %v4613 = vpack.c.bf16 %v4599, %v4598
        %v4614 = vpack.c.bf16 %v4601, %v4600
        %v4615 = vpack.c.bf16 %v4603, %v4602
        %v4616 = vpack.c.bf16 %v4605, %v4604
        %v4617 = vpack.c.bf16 %v4607, %v4606
        %v4618 = vpack.c.bf16 %v4609, %v4608
        %v4619 = vpack.c.bf16 %v4611, %v4610
        %v4620 = vld [vmem:[#allocation22] sm:$0xff]
        %v4621 = vld [vmem:[#allocation22 + $0x8] sm:$0xf]
        %v4622 = vld [vmem:[#allocation22 + $0xc] sm:$0xff]
        %v4623 = vld [vmem:[#allocation22 + $0x14] sm:$0xf]
        %v4624 = vld [vmem:[#allocation22 + $0x18] sm:$0xff]
        %v4625 = vld [vmem:[#allocation22 + $0x20] sm:$0xf]
        %v4626 = vld [vmem:[#allocation22 + $0x24] sm:$0xff]
        %v4627 = vld [vmem:[#allocation22 + $0x2c] sm:$0xf]
        %v4628 = vld [vmem:[#allocation22 + $0x30] sm:$0xff]
        %v4629 = vld [vmem:[#allocation22 + $0x38] sm:$0xf]
        %v4630 = vld [vmem:[#allocation22 + $0x3c] sm:$0xff]
        %v4631 = vld [vmem:[#allocation22 + $0x44] sm:$0xf]
        %v4632 = vld [vmem:[#allocation22 + $0x48] sm:$0xff]
        %v4633 = vld [vmem:[#allocation22 + $0x50] sm:$0xf]
        %v4634 = vld [vmem:[#allocation22 + $0x54] sm:$0xff]
        %v4635 = vld [vmem:[#allocation22 + $0x5c] sm:$0xf]
        %v4636 = vld [vmem:[#allocation22 + $0x60] sm:$0xff]
        %v4637 = vld [vmem:[#allocation22 + $0x68] sm:$0xf]
        %v4638 = vld [vmem:[#allocation22 + $0x6c] sm:$0xff]
        %v4639 = vld [vmem:[#allocation22 + $0x74] sm:$0xf]
        %v4640 = vld [vmem:[#allocation22 + $0x78] sm:$0xff]
        %v4641 = vld [vmem:[#allocation22 + $0x80] sm:$0xf]
        %v4642 = vld [vmem:[#allocation22 + $0x84] sm:$0xff]
        %v4643 = vld [vmem:[#allocation22 + $0x8c] sm:$0xf]
        %v4644 = vld [vmem:[#allocation22 + $0x90] sm:$0xff]
        %v4645 = vld [vmem:[#allocation22 + $0x98] sm:$0xf]
        %v4646 = vld [vmem:[#allocation22 + $0x9c] sm:$0xff]
        %v4647 = vld [vmem:[#allocation22 + $0xa4] sm:$0xf]
        %v4648 = vld [vmem:[#allocation22 + $0xa8] sm:$0xff]
        %v4649 = vld [vmem:[#allocation22 + $0xb0] sm:$0xf]
        %v4650 = vld [vmem:[#allocation22 + $0xb4] sm:$0xff]
        %v4651 = vld [vmem:[#allocation22 + $0xbc] sm:$0xf]
        %v4652 = vld [vmem:[%s12] sm:$0x7]
        %v4654 = vperm.slane %v4652, 0
        %v4655 = vperm.slane %v4652, 1
        %v4656 = vperm.slane %v4652, 2
        %v4692 = vunpack.c.l.b16 %v4620
        %v4693 = vunpack.c.h.b16 %v4620
        %v4694 = vunpack.c.l.b16 %v4621
        %v4695 = vunpack.c.l.b16 %v4622
        %v4696 = vunpack.c.h.b16 %v4622
        %v4697 = vunpack.c.l.b16 %v4623
        %v4698 = vunpack.c.l.b16 %v4624
        %v4699 = vunpack.c.h.b16 %v4624
        %v4700 = vunpack.c.l.b16 %v4625
        %v4701 = vunpack.c.l.b16 %v4626
        %v4702 = vunpack.c.h.b16 %v4626
        %v4703 = vunpack.c.l.b16 %v4627
        %v4704 = vunpack.c.l.b16 %v4628
        %v4705 = vunpack.c.h.b16 %v4628
        %v4706 = vunpack.c.l.b16 %v4629
        %v4707 = vunpack.c.l.b16 %v4630
        %v4708 = vunpack.c.h.b16 %v4630
        %v4709 = vunpack.c.l.b16 %v4631
        %v4710 = vunpack.c.l.b16 %v4632
        %v4711 = vunpack.c.h.b16 %v4632
        %v4712 = vunpack.c.l.b16 %v4633
        %v4713 = vunpack.c.l.b16 %v4634
        %v4714 = vunpack.c.h.b16 %v4634
        %v4715 = vunpack.c.l.b16 %v4635
        %v4716 = vunpack.c.l.b16 %v4636
        %v4717 = vunpack.c.h.b16 %v4636
        %v4718 = vunpack.c.l.b16 %v4637
        %v4719 = vunpack.c.l.b16 %v4638
        %v4720 = vunpack.c.h.b16 %v4638
        %v4721 = vunpack.c.l.b16 %v4639
        %v4722 = vunpack.c.l.b16 %v4640
        %v4723 = vunpack.c.h.b16 %v4640
        %v4724 = vunpack.c.l.b16 %v4641
        %v4725 = vunpack.c.l.b16 %v4642
        %v4726 = vunpack.c.h.b16 %v4642
        %v4727 = vunpack.c.l.b16 %v4643
        %v4728 = vunpack.c.l.b16 %v4644
        %v4729 = vunpack.c.h.b16 %v4644
        %v4730 = vunpack.c.l.b16 %v4645
        %v4731 = vunpack.c.l.b16 %v4646
        %v4732 = vunpack.c.h.b16 %v4646
        %v4733 = vunpack.c.l.b16 %v4647
        %v4734 = vunpack.c.l.b16 %v4648
        %v4735 = vunpack.c.h.b16 %v4648
        %v4736 = vunpack.c.l.b16 %v4649
        %v4737 = vunpack.c.l.b16 %v4650
        %v4738 = vunpack.c.h.b16 %v4650
        %v4739 = vunpack.c.l.b16 %v4651
        %v4740 = vpack.c.b16 %v4695, %v4692
        %v4741 = vpack.c.b16 %v4696, %v4693
        %v4742 = vpack.c.b16 %v4697, %v4694
        %v4743 = vpack.c.b16 %v4701, %v4698
        %v4744 = vpack.c.b16 %v4702, %v4699
        %v4745 = vpack.c.b16 %v4703, %v4700
        %v4746 = vpack.c.b16 %v4707, %v4704
        %v4747 = vpack.c.b16 %v4708, %v4705
        %v4748 = vpack.c.b16 %v4709, %v4706
        %v4749 = vpack.c.b16 %v4713, %v4710
        %v4750 = vpack.c.b16 %v4714, %v4711
        %v4751 = vpack.c.b16 %v4715, %v4712
        %v4752 = vpack.c.b16 %v4719, %v4716
        %v4753 = vpack.c.b16 %v4720, %v4717
        %v4754 = vpack.c.b16 %v4721, %v4718
        %v4755 = vpack.c.b16 %v4725, %v4722
        %v4756 = vpack.c.b16 %v4726, %v4723
        %v4757 = vpack.c.b16 %v4727, %v4724
        %v4758 = vpack.c.b16 %v4731, %v4728
        %v4759 = vpack.c.b16 %v4732, %v4729
        %v4760 = vpack.c.b16 %v4733, %v4730
        %v4761 = vpack.c.b16 %v4737, %v4734
        %v4762 = vpack.c.b16 %v4738, %v4735
        %v4763 = vpack.c.b16 %v4739, %v4736
        %4788 = vmatpush.bf16.msra.mxu0 %v4761
        %4789 = vmatpush.bf16.msra.mxu0 %v4758
        %4790 = vmatpush.bf16.msra.mxu0 %v4755
        %4791 = vmatpush.bf16.msra.mxu0 %v4752
        %4792 = vmatpush.bf16.msra.mxu0 %v4749
        %4793 = vmatpush.bf16.msra.mxu0 %v4746
        %4794 = vmatpush.bf16.msra.mxu0 %v4743
        %4795 = vmatpush.bf16.msra.mxu0 %v4740
        %4796 = vmatmul.bf16.gmra.mxu0 %v4612
        %v4797 = vpop.f32.mrf.mxu0
        %v4798 = vadd.f32 %v4654, %v4797
        %v4799 = vpop.f32.mrf.mxu0
        %v4800 = vadd.f32 %v4654, %v4799
        %4801 = vmatmul.bf16.gmra.mxu0 %v4613
        %v4802 = vpop.f32.mrf.mxu0
        %v4803 = vadd.f32 %v4654, %v4802
        %v4804 = vpop.f32.mrf.mxu0
        %v4805 = vadd.f32 %v4654, %v4804
        %4806 = vmatmul.bf16.gmra.mxu0 %v4614
        %v4807 = vpop.f32.mrf.mxu0
        %v4808 = vadd.f32 %v4654, %v4807
        %v4809 = vpop.f32.mrf.mxu0
        %v4810 = vadd.f32 %v4654, %v4809
        %4811 = vmatmul.bf16.gmra.mxu0 %v4615
        %v4812 = vpop.f32.mrf.mxu0
        %v4813 = vadd.f32 %v4654, %v4812
        %v4814 = vpop.f32.mrf.mxu0
        %v4815 = vadd.f32 %v4654, %v4814
        %4816 = vmatmul.bf16.gmra.mxu0 %v4616
        %v4817 = vpop.f32.mrf.mxu0
        %v4818 = vadd.f32 %v4654, %v4817
        %v4819 = vpop.f32.mrf.mxu0
        %v4820 = vadd.f32 %v4654, %v4819
        %4821 = vmatmul.bf16.gmra.mxu0 %v4617
        %v4822 = vpop.f32.mrf.mxu0
        %v4823 = vadd.f32 %v4654, %v4822
        %v4824 = vpop.f32.mrf.mxu0
        %v4825 = vadd.f32 %v4654, %v4824
        %4826 = vmatmul.bf16.gmra.mxu0 %v4618
        %v4827 = vpop.f32.mrf.mxu0
        %v4828 = vadd.f32 %v4654, %v4827
        %v4829 = vpop.f32.mrf.mxu0
        %v4830 = vadd.f32 %v4654, %v4829
        %4831 = vmatmul.bf16.gmra.mxu0 %v4619
        %v4832 = vpop.f32.mrf.mxu0
        %v4833 = vadd.f32 %v4654, %v4832
        %v4834 = vpop.f32.mrf.mxu0
        %v4835 = vadd.f32 %v4654, %v4834
        %4836 = vdwg.mxu0
        %4837 = vmatpush.bf16.msra.mxu0 %v4762
        %4838 = vmatpush.bf16.msra.mxu0 %v4759
        %4839 = vmatpush.bf16.msra.mxu0 %v4756
        %4840 = vmatpush.bf16.msra.mxu0 %v4753
        %4841 = vmatpush.bf16.msra.mxu0 %v4750
        %4842 = vmatpush.bf16.msra.mxu0 %v4747
        %4843 = vmatpush.bf16.msra.mxu0 %v4744
        %4844 = vmatpush.bf16.msra.mxu0 %v4741
        %4845 = vmatmul.bf16.gmra.mxu0 %v4612
        %v4846 = vpop.f32.mrf.mxu0
        %v4847 = vadd.f32 %v4655, %v4846
        %v4848 = vpop.f32.mrf.mxu0
        %v4849 = vadd.f32 %v4655, %v4848
        %4850 = vmatmul.bf16.gmra.mxu0 %v4613
        %v4851 = vpop.f32.mrf.mxu0
        %v4852 = vadd.f32 %v4655, %v4851
        %v4853 = vpop.f32.mrf.mxu0
        %v4854 = vadd.f32 %v4655, %v4853
        %4855 = vmatmul.bf16.gmra.mxu0 %v4614
        %v4856 = vpop.f32.mrf.mxu0
        %v4857 = vadd.f32 %v4655, %v4856
        %v4858 = vpop.f32.mrf.mxu0
        %v4859 = vadd.f32 %v4655, %v4858
        %4860 = vmatmul.bf16.gmra.mxu0 %v4615
        %v4861 = vpop.f32.mrf.mxu0
        %v4862 = vadd.f32 %v4655, %v4861
        %v4863 = vpop.f32.mrf.mxu0
        %v4864 = vadd.f32 %v4655, %v4863
        %4865 = vmatmul.bf16.gmra.mxu0 %v4616
        %v4866 = vpop.f32.mrf.mxu0
        %v4867 = vadd.f32 %v4655, %v4866
        %v4868 = vpop.f32.mrf.mxu0
        %v4869 = vadd.f32 %v4655, %v4868
        %4870 = vmatmul.bf16.gmra.mxu0 %v4617
        %v4871 = vpop.f32.mrf.mxu0
        %v4872 = vadd.f32 %v4655, %v4871
        %v4873 = vpop.f32.mrf.mxu0
        %v4874 = vadd.f32 %v4655, %v4873
        %4875 = vmatmul.bf16.gmra.mxu0 %v4618
        %v4876 = vpop.f32.mrf.mxu0
        %v4877 = vadd.f32 %v4655, %v4876
        %v4878 = vpop.f32.mrf.mxu0
        %v4879 = vadd.f32 %v4655, %v4878
        %4880 = vmatmul.bf16.gmra.mxu0 %v4619
        %v4881 = vpop.f32.mrf.mxu0
        %v4882 = vadd.f32 %v4655, %v4881
        %v4883 = vpop.f32.mrf.mxu0
        %v4884 = vadd.f32 %v4655, %v4883
        %4885 = vdwg.mxu0
        %4886 = vmatpush.bf16.msra.mxu0 %v4763
        %4887 = vmatpush.bf16.msra.mxu0 %v4760
        %4888 = vmatpush.bf16.msra.mxu0 %v4757
        %4889 = vmatpush.bf16.msra.mxu0 %v4754
        %4890 = vmatpush.bf16.msra.mxu0 %v4751
        %4891 = vmatpush.bf16.msra.mxu0 %v4748
        %4892 = vmatpush.bf16.msra.mxu0 %v4745
        %4893 = vmatpush.bf16.msra.mxu0 %v4742
        %4894 = vmatmul.bf16.gmra.mxu0 %v4612
        %v4895 = vpop.f32.mrf.mxu0
        %v4896 = vadd.f32 %v4656, %v4895
        %v4897 = vpop.f32.mrf.mxu0
        %v4898 = vadd.f32 %v4656, %v4897
        %4899 = vmatmul.bf16.gmra.mxu0 %v4613
        %v4900 = vpop.f32.mrf.mxu0
        %v4901 = vadd.f32 %v4656, %v4900
        %v4902 = vpop.f32.mrf.mxu0
        %v4903 = vadd.f32 %v4656, %v4902
        %4904 = vmatmul.bf16.gmra.mxu0 %v4614
        %v4905 = vpop.f32.mrf.mxu0
        %v4906 = vadd.f32 %v4656, %v4905
        %v4907 = vpop.f32.mrf.mxu0
        %v4908 = vadd.f32 %v4656, %v4907
        %4909 = vmatmul.bf16.gmra.mxu0 %v4615
        %v4910 = vpop.f32.mrf.mxu0
        %v4911 = vadd.f32 %v4656, %v4910
        %v4912 = vpop.f32.mrf.mxu0
        %v4913 = vadd.f32 %v4656, %v4912
        %4914 = vmatmul.bf16.gmra.mxu0 %v4616
        %v4915 = vpop.f32.mrf.mxu0
        %v4916 = vadd.f32 %v4656, %v4915
        %v4917 = vpop.f32.mrf.mxu0
        %v4918 = vadd.f32 %v4656, %v4917
        %4919 = vmatmul.bf16.gmra.mxu0 %v4617
        %v4920 = vpop.f32.mrf.mxu0
        %v4921 = vadd.f32 %v4656, %v4920
        %v4922 = vpop.f32.mrf.mxu0
        %v4923 = vadd.f32 %v4656, %v4922
        %4924 = vmatmul.bf16.gmra.mxu0 %v4618
        %v4925 = vpop.f32.mrf.mxu0
        %v4926 = vadd.f32 %v4656, %v4925
        %v4927 = vpop.f32.mrf.mxu0
        %v4928 = vadd.f32 %v4656, %v4927
        %4929 = vmatmul.bf16.gmra.mxu0 %v4619
        %v4930 = vpop.f32.mrf.mxu0
        %v4931 = vadd.f32 %v4656, %v4930
        %v4932 = vpop.f32.mrf.mxu0
        %v4933 = vadd.f32 %v4656, %v4932
        %4934 = vdwg.mxu0
        %v4935 = vld [vmem:[#allocation7] sm:$0xff]
        %v4936 = vld [vmem:[#allocation7 + $0x8] sm:$0xff]
        %v4937 = vld [vmem:[#allocation7 + $0x10] sm:$0xff]
        %v4938 = vld [vmem:[#allocation7 + $0x18] sm:$0xff]
        %v4939 = vld [vmem:[#allocation7 + $0x20] sm:$0xff]
        %v4940 = vld [vmem:[#allocation7 + $0x28] sm:$0xff]
        %v4941 = vld [vmem:[#allocation7 + $0x30] sm:$0xff]
        %v4942 = vld [vmem:[#allocation7 + $0x38] sm:$0xff]
        %v4943 = vld [vmem:[#allocation7 + $0x40] sm:$0xff]
        %v4944 = vld [vmem:[#allocation7 + $0x48] sm:$0xff]
        %v4945 = vld [vmem:[#allocation7 + $0x50] sm:$0xff]
        %v4946 = vld [vmem:[#allocation7 + $0x58] sm:$0xff]
        %v4947 = vld [vmem:[#allocation7 + $0x60] sm:$0xff]
        %v4948 = vld [vmem:[#allocation7 + $0x68] sm:$0xff]
        %v4949 = vld [vmem:[#allocation7 + $0x70] sm:$0xff]
        %v4950 = vld [vmem:[#allocation7 + $0x78] sm:$0xff]
        %v4951 = vld [vmem:[#allocation7 + $0x80] sm:$0xff]
        %v4952 = vld [vmem:[#allocation7 + $0x88] sm:$0xff]
        %v4953 = vld [vmem:[#allocation7 + $0x90] sm:$0xff]
        %v4954 = vld [vmem:[#allocation7 + $0x98] sm:$0xff]
        %v4955 = vld [vmem:[#allocation7 + $0xa0] sm:$0xff]
        %v4956 = vld [vmem:[#allocation7 + $0xa8] sm:$0xff]
        %v4957 = vld [vmem:[#allocation7 + $0xb0] sm:$0xff]
        %v4958 = vld [vmem:[#allocation7 + $0xb8] sm:$0xff]
        %v4959 = vld [vmem:[#allocation7 + $0xc0] sm:$0xff]
        %v4960 = vld [vmem:[#allocation7 + $0xc8] sm:$0xff]
        %v4961 = vld [vmem:[#allocation7 + $0xd0] sm:$0xff]
        %v4962 = vld [vmem:[#allocation7 + $0xd8] sm:$0xff]
        %v4963 = vld [vmem:[#allocation7 + $0xe0] sm:$0xff]
        %v4964 = vld [vmem:[#allocation7 + $0xe8] sm:$0xff]
        %v4965 = vld [vmem:[#allocation7 + $0xf0] sm:$0xff]
        %v4966 = vld [vmem:[#allocation7 + $0xf8] sm:$0xff]
        %v4967 = vld [vmem:[#allocation7 + $0x100] sm:$0xff]
        %v4968 = vld [vmem:[#allocation7 + $0x108] sm:$0xff]
        %v4969 = vld [vmem:[#allocation7 + $0x110] sm:$0xff]
        %v4970 = vld [vmem:[#allocation7 + $0x118] sm:$0xff]
        %v4971 = vld [vmem:[#allocation7 + $0x120] sm:$0xff]
        %v4972 = vld [vmem:[#allocation7 + $0x128] sm:$0xff]
        %v4973 = vld [vmem:[#allocation7 + $0x130] sm:$0xff]
        %v4974 = vld [vmem:[#allocation7 + $0x138] sm:$0xff]
        %v4975 = vld [vmem:[#allocation7 + $0x140] sm:$0xff]
        %v4976 = vld [vmem:[#allocation7 + $0x148] sm:$0xff]
        %v4977 = vld [vmem:[#allocation7 + $0x150] sm:$0xff]
        %v4978 = vld [vmem:[#allocation7 + $0x158] sm:$0xff]
        %v4979 = vld [vmem:[#allocation7 + $0x160] sm:$0xff]
        %v4980 = vld [vmem:[#allocation7 + $0x168] sm:$0xff]
        %v4981 = vld [vmem:[#allocation7 + $0x170] sm:$0xff]
        %v4982 = vld [vmem:[#allocation7 + $0x178] sm:$0xff]
        %v4983 = vadd.f32 %v4798, %v4935
        %v4984 = vadd.f32 %v4800, %v4938
        %v4985 = vadd.f32 %v4803, %v4941
        %v4986 = vadd.f32 %v4805, %v4944
        %v4987 = vadd.f32 %v4808, %v4947
        %v4988 = vadd.f32 %v4810, %v4950
        %v4989 = vadd.f32 %v4813, %v4953
        %v4990 = vadd.f32 %v4815, %v4956
        %v4991 = vadd.f32 %v4818, %v4959
        %v4992 = vadd.f32 %v4820, %v4962
        %v4993 = vadd.f32 %v4823, %v4965
        %v4994 = vadd.f32 %v4825, %v4968
        %v4995 = vadd.f32 %v4828, %v4971
        %v4996 = vadd.f32 %v4830, %v4974
        %v4997 = vadd.f32 %v4833, %v4977
        %v4998 = vadd.f32 %v4835, %v4980
        %v4999 = vxor.u32 %v4983, 2147483648
        %v5000 = vxor.u32 %v4984, 2147483648
        %v5001 = vxor.u32 %v4985, 2147483648
        %v5002 = vxor.u32 %v4986, 2147483648
        %v5003 = vxor.u32 %v4987, 2147483648
        %v5004 = vxor.u32 %v4988, 2147483648
        %v5005 = vxor.u32 %v4989, 2147483648
        %v5006 = vxor.u32 %v4990, 2147483648
        %v5007 = vxor.u32 %v4991, 2147483648
        %v5008 = vxor.u32 %v4992, 2147483648
        %v5009 = vxor.u32 %v4993, 2147483648
        %v5010 = vxor.u32 %v4994, 2147483648
        %v5011 = vxor.u32 %v4995, 2147483648
        %v5012 = vxor.u32 %v4996, 2147483648
        %v5013 = vxor.u32 %v4997, 2147483648
        %v5014 = vxor.u32 %v4998, 2147483648
        %v5015 = vmul.f32 %v4999, 1.442695
        %v5016 = vpow.pop %v5015
        %v5017 = vmul.f32 %v5000, 1.442695
        %v5018 = vpow.pop %v5017
        %v5019 = vmul.f32 %v5001, 1.442695
        %v5020 = vpow.pop %v5019
        %v5021 = vmul.f32 %v5002, 1.442695
        %v5022 = vpow.pop %v5021
        %v5023 = vmul.f32 %v5003, 1.442695
        %v5024 = vpow.pop %v5023
        %v5025 = vmul.f32 %v5004, 1.442695
        %v5026 = vpow.pop %v5025
        %v5027 = vmul.f32 %v5005, 1.442695
        %v5028 = vpow.pop %v5027
        %v5029 = vmul.f32 %v5006, 1.442695
        %v5030 = vpow.pop %v5029
        %v5031 = vmul.f32 %v5007, 1.442695
        %v5032 = vpow.pop %v5031
        %v5033 = vmul.f32 %v5008, 1.442695
        %v5034 = vpow.pop %v5033
        %v5035 = vmul.f32 %v5009, 1.442695
        %v5036 = vpow.pop %v5035
        %v5037 = vmul.f32 %v5010, 1.442695
        %v5038 = vpow.pop %v5037
        %v5039 = vmul.f32 %v5011, 1.442695
        %v5040 = vpow.pop %v5039
        %v5041 = vmul.f32 %v5012, 1.442695
        %v5042 = vpow.pop %v5041
        %v5043 = vmul.f32 %v5013, 1.442695
        %v5044 = vpow.pop %v5043
        %v5045 = vmul.f32 %v5014, 1.442695
        %v5046 = vpow.pop %v5045
        %v5047 = vadd.f32 %v5016, 1.0
        %v5048 = vadd.f32 %v5018, 1.0
        %v5049 = vadd.f32 %v5020, 1.0
        %v5050 = vadd.f32 %v5022, 1.0
        %v5051 = vadd.f32 %v5024, 1.0
        %v5052 = vadd.f32 %v5026, 1.0
        %v5053 = vadd.f32 %v5028, 1.0
        %v5054 = vadd.f32 %v5030, 1.0
        %v5055 = vadd.f32 %v5032, 1.0
        %v5056 = vadd.f32 %v5034, 1.0
        %v5057 = vadd.f32 %v5036, 1.0
        %v5058 = vadd.f32 %v5038, 1.0
        %v5059 = vadd.f32 %v5040, 1.0
        %v5060 = vadd.f32 %v5042, 1.0
        %v5061 = vadd.f32 %v5044, 1.0
        %v5062 = vadd.f32 %v5046, 1.0
        %v5063 = vrcp.pop %v5047
        %v5064 = vmul.f32 %v5047, %v5063
        %v5065 = vsub.f32 1.0, %v5064
        %v5066 = vmul.f32 %v5063, %v5065
        %v5067 = vadd.f32 %v5063, %v5066
        %vm5068 = vweird.f32 %v5047
        %vm5069 = vweird.f32 %v5063
        %vm5070 = vmor %vm5068, %vm5069
        %v5071 = vsel %vm5070, %v5063, %v5067
        %v5072 = vand.u32 2147483647, %v5047
        %vm5073 = vcmp.eq.f32.partialorder %v5072, 8.507059e+37
        %v5074 = vand.u32 %v5047, 2147483648
        %v5075 = vor.u32 1.1754944e-38, %v5074
        %v5076 = vsel %vm5073, %v5075, %v5071
        %v5077 = vmul.f32 1.0, %v5076
        %v5078 = vrcp.pop %v5048
        %v5079 = vmul.f32 %v5048, %v5078
        %v5080 = vsub.f32 1.0, %v5079
        %v5081 = vmul.f32 %v5078, %v5080
        %v5082 = vadd.f32 %v5078, %v5081
        %vm5083 = vweird.f32 %v5048
        %vm5084 = vweird.f32 %v5078
        %vm5085 = vmor %vm5083, %vm5084
        %v5086 = vsel %vm5085, %v5078, %v5082
        %v5087 = vand.u32 2147483647, %v5048
        %vm5088 = vcmp.eq.f32.partialorder %v5087, 8.507059e+37
        %v5089 = vand.u32 %v5048, 2147483648
        %v5090 = vor.u32 1.1754944e-38, %v5089
        %v5091 = vsel %vm5088, %v5090, %v5086
        %v5092 = vmul.f32 1.0, %v5091
        %v5093 = vrcp.pop %v5049
        %v5094 = vmul.f32 %v5049, %v5093
        %v5095 = vsub.f32 1.0, %v5094
        %v5096 = vmul.f32 %v5093, %v5095
        %v5097 = vadd.f32 %v5093, %v5096
        %vm5098 = vweird.f32 %v5049
        %vm5099 = vweird.f32 %v5093
        %vm5100 = vmor %vm5098, %vm5099
        %v5101 = vsel %vm5100, %v5093, %v5097
        %v5102 = vand.u32 2147483647, %v5049
        %vm5103 = vcmp.eq.f32.partialorder %v5102, 8.507059e+37
        %v5104 = vand.u32 %v5049, 2147483648
        %v5105 = vor.u32 1.1754944e-38, %v5104
        %v5106 = vsel %vm5103, %v5105, %v5101
        %v5107 = vmul.f32 1.0, %v5106
        %v5108 = vrcp.pop %v5050
        %v5109 = vmul.f32 %v5050, %v5108
        %v5110 = vsub.f32 1.0, %v5109
        %v5111 = vmul.f32 %v5108, %v5110
        %v5112 = vadd.f32 %v5108, %v5111
        %vm5113 = vweird.f32 %v5050
        %vm5114 = vweird.f32 %v5108
        %vm5115 = vmor %vm5113, %vm5114
        %v5116 = vsel %vm5115, %v5108, %v5112
        %v5117 = vand.u32 2147483647, %v5050
        %vm5118 = vcmp.eq.f32.partialorder %v5117, 8.507059e+37
        %v5119 = vand.u32 %v5050, 2147483648
        %v5120 = vor.u32 1.1754944e-38, %v5119
        %v5121 = vsel %vm5118, %v5120, %v5116
        %v5122 = vmul.f32 1.0, %v5121
        %v5123 = vrcp.pop %v5051
        %v5124 = vmul.f32 %v5051, %v5123
        %v5125 = vsub.f32 1.0, %v5124
        %v5126 = vmul.f32 %v5123, %v5125
        %v5127 = vadd.f32 %v5123, %v5126
        %vm5128 = vweird.f32 %v5051
        %vm5129 = vweird.f32 %v5123
        %vm5130 = vmor %vm5128, %vm5129
        %v5131 = vsel %vm5130, %v5123, %v5127
        %v5132 = vand.u32 2147483647, %v5051
        %vm5133 = vcmp.eq.f32.partialorder %v5132, 8.507059e+37
        %v5134 = vand.u32 %v5051, 2147483648
        %v5135 = vor.u32 1.1754944e-38, %v5134
        %v5136 = vsel %vm5133, %v5135, %v5131
        %v5137 = vmul.f32 1.0, %v5136
        %v5138 = vrcp.pop %v5052
        %v5139 = vmul.f32 %v5052, %v5138
        %v5140 = vsub.f32 1.0, %v5139
        %v5141 = vmul.f32 %v5138, %v5140
        %v5142 = vadd.f32 %v5138, %v5141
        %vm5143 = vweird.f32 %v5052
        %vm5144 = vweird.f32 %v5138
        %vm5145 = vmor %vm5143, %vm5144
        %v5146 = vsel %vm5145, %v5138, %v5142
        %v5147 = vand.u32 2147483647, %v5052
        %vm5148 = vcmp.eq.f32.partialorder %v5147, 8.507059e+37
        %v5149 = vand.u32 %v5052, 2147483648
        %v5150 = vor.u32 1.1754944e-38, %v5149
        %v5151 = vsel %vm5148, %v5150, %v5146
        %v5152 = vmul.f32 1.0, %v5151
        %v5153 = vrcp.pop %v5053
        %v5154 = vmul.f32 %v5053, %v5153
        %v5155 = vsub.f32 1.0, %v5154
        %v5156 = vmul.f32 %v5153, %v5155
        %v5157 = vadd.f32 %v5153, %v5156
        %vm5158 = vweird.f32 %v5053
        %vm5159 = vweird.f32 %v5153
        %vm5160 = vmor %vm5158, %vm5159
        %v5161 = vsel %vm5160, %v5153, %v5157
        %v5162 = vand.u32 2147483647, %v5053
        %vm5163 = vcmp.eq.f32.partialorder %v5162, 8.507059e+37
        %v5164 = vand.u32 %v5053, 2147483648
        %v5165 = vor.u32 1.1754944e-38, %v5164
        %v5166 = vsel %vm5163, %v5165, %v5161
        %v5167 = vmul.f32 1.0, %v5166
        %v5168 = vrcp.pop %v5054
        %v5169 = vmul.f32 %v5054, %v5168
        %v5170 = vsub.f32 1.0, %v5169
        %v5171 = vmul.f32 %v5168, %v5170
        %v5172 = vadd.f32 %v5168, %v5171
        %vm5173 = vweird.f32 %v5054
        %vm5174 = vweird.f32 %v5168
        %vm5175 = vmor %vm5173, %vm5174
        %v5176 = vsel %vm5175, %v5168, %v5172
        %v5177 = vand.u32 2147483647, %v5054
        %vm5178 = vcmp.eq.f32.partialorder %v5177, 8.507059e+37
        %v5179 = vand.u32 %v5054, 2147483648
        %v5180 = vor.u32 1.1754944e-38, %v5179
        %v5181 = vsel %vm5178, %v5180, %v5176
        %v5182 = vmul.f32 1.0, %v5181
        %v5183 = vrcp.pop %v5055
        %v5184 = vmul.f32 %v5055, %v5183
        %v5185 = vsub.f32 1.0, %v5184
        %v5186 = vmul.f32 %v5183, %v5185
        %v5187 = vadd.f32 %v5183, %v5186
        %vm5188 = vweird.f32 %v5055
        %vm5189 = vweird.f32 %v5183
        %vm5190 = vmor %vm5188, %vm5189
        %v5191 = vsel %vm5190, %v5183, %v5187
        %v5192 = vand.u32 2147483647, %v5055
        %vm5193 = vcmp.eq.f32.partialorder %v5192, 8.507059e+37
        %v5194 = vand.u32 %v5055, 2147483648
        %v5195 = vor.u32 1.1754944e-38, %v5194
        %v5196 = vsel %vm5193, %v5195, %v5191
        %v5197 = vmul.f32 1.0, %v5196
        %v5198 = vrcp.pop %v5056
        %v5199 = vmul.f32 %v5056, %v5198
        %v5200 = vsub.f32 1.0, %v5199
        %v5201 = vmul.f32 %v5198, %v5200
        %v5202 = vadd.f32 %v5198, %v5201
        %vm5203 = vweird.f32 %v5056
        %vm5204 = vweird.f32 %v5198
        %vm5205 = vmor %vm5203, %vm5204
        %v5206 = vsel %vm5205, %v5198, %v5202
        %v5207 = vand.u32 2147483647, %v5056
        %vm5208 = vcmp.eq.f32.partialorder %v5207, 8.507059e+37
        %v5209 = vand.u32 %v5056, 2147483648
        %v5210 = vor.u32 1.1754944e-38, %v5209
        %v5211 = vsel %vm5208, %v5210, %v5206
        %v5212 = vmul.f32 1.0, %v5211
        %v5213 = vrcp.pop %v5057
        %v5214 = vmul.f32 %v5057, %v5213
        %v5215 = vsub.f32 1.0, %v5214
        %v5216 = vmul.f32 %v5213, %v5215
        %v5217 = vadd.f32 %v5213, %v5216
        %vm5218 = vweird.f32 %v5057
        %vm5219 = vweird.f32 %v5213
        %vm5220 = vmor %vm5218, %vm5219
        %v5221 = vsel %vm5220, %v5213, %v5217
        %v5222 = vand.u32 2147483647, %v5057
        %vm5223 = vcmp.eq.f32.partialorder %v5222, 8.507059e+37
        %v5224 = vand.u32 %v5057, 2147483648
        %v5225 = vor.u32 1.1754944e-38, %v5224
        %v5226 = vsel %vm5223, %v5225, %v5221
        %v5227 = vmul.f32 1.0, %v5226
        %v5228 = vrcp.pop %v5058
        %v5229 = vmul.f32 %v5058, %v5228
        %v5230 = vsub.f32 1.0, %v5229
        %v5231 = vmul.f32 %v5228, %v5230
        %v5232 = vadd.f32 %v5228, %v5231
        %vm5233 = vweird.f32 %v5058
        %vm5234 = vweird.f32 %v5228
        %vm5235 = vmor %vm5233, %vm5234
        %v5236 = vsel %vm5235, %v5228, %v5232
        %v5237 = vand.u32 2147483647, %v5058
        %vm5238 = vcmp.eq.f32.partialorder %v5237, 8.507059e+37
        %v5239 = vand.u32 %v5058, 2147483648
        %v5240 = vor.u32 1.1754944e-38, %v5239
        %v5241 = vsel %vm5238, %v5240, %v5236
        %v5242 = vmul.f32 1.0, %v5241
        %v5243 = vrcp.pop %v5059
        %v5244 = vmul.f32 %v5059, %v5243
        %v5245 = vsub.f32 1.0, %v5244
        %v5246 = vmul.f32 %v5243, %v5245
        %v5247 = vadd.f32 %v5243, %v5246
        %vm5248 = vweird.f32 %v5059
        %vm5249 = vweird.f32 %v5243
        %vm5250 = vmor %vm5248, %vm5249
        %v5251 = vsel %vm5250, %v5243, %v5247
        %v5252 = vand.u32 2147483647, %v5059
        %vm5253 = vcmp.eq.f32.partialorder %v5252, 8.507059e+37
        %v5254 = vand.u32 %v5059, 2147483648
        %v5255 = vor.u32 1.1754944e-38, %v5254
        %v5256 = vsel %vm5253, %v5255, %v5251
        %v5257 = vmul.f32 1.0, %v5256
        %v5258 = vrcp.pop %v5060
        %v5259 = vmul.f32 %v5060, %v5258
        %v5260 = vsub.f32 1.0, %v5259
        %v5261 = vmul.f32 %v5258, %v5260
        %v5262 = vadd.f32 %v5258, %v5261
        %vm5263 = vweird.f32 %v5060
        %vm5264 = vweird.f32 %v5258
        %vm5265 = vmor %vm5263, %vm5264
        %v5266 = vsel %vm5265, %v5258, %v5262
        %v5267 = vand.u32 2147483647, %v5060
        %vm5268 = vcmp.eq.f32.partialorder %v5267, 8.507059e+37
        %v5269 = vand.u32 %v5060, 2147483648
        %v5270 = vor.u32 1.1754944e-38, %v5269
        %v5271 = vsel %vm5268, %v5270, %v5266
        %v5272 = vmul.f32 1.0, %v5271
        %v5273 = vrcp.pop %v5061
        %v5274 = vmul.f32 %v5061, %v5273
        %v5275 = vsub.f32 1.0, %v5274
        %v5276 = vmul.f32 %v5273, %v5275
        %v5277 = vadd.f32 %v5273, %v5276
        %vm5278 = vweird.f32 %v5061
        %vm5279 = vweird.f32 %v5273
        %vm5280 = vmor %vm5278, %vm5279
        %v5281 = vsel %vm5280, %v5273, %v5277
        %v5282 = vand.u32 2147483647, %v5061
        %vm5283 = vcmp.eq.f32.partialorder %v5282, 8.507059e+37
        %v5284 = vand.u32 %v5061, 2147483648
        %v5285 = vor.u32 1.1754944e-38, %v5284
        %v5286 = vsel %vm5283, %v5285, %v5281
        %v5287 = vmul.f32 1.0, %v5286
        %v5288 = vrcp.pop %v5062
        %v5289 = vmul.f32 %v5062, %v5288
        %v5290 = vsub.f32 1.0, %v5289
        %v5291 = vmul.f32 %v5288, %v5290
        %v5292 = vadd.f32 %v5288, %v5291
        %vm5293 = vweird.f32 %v5062
        %vm5294 = vweird.f32 %v5288
        %vm5295 = vmor %vm5293, %vm5294
        %v5296 = vsel %vm5295, %v5288, %v5292
        %v5297 = vand.u32 2147483647, %v5062
        %vm5298 = vcmp.eq.f32.partialorder %v5297, 8.507059e+37
        %v5299 = vand.u32 %v5062, 2147483648
        %v5300 = vor.u32 1.1754944e-38, %v5299
        %v5301 = vsel %vm5298, %v5300, %v5296
        %v5302 = vmul.f32 1.0, %v5301
        %v5303 = vadd.f32 %v4847, %v4936
        %v5304 = vadd.f32 %v4849, %v4939
        %v5305 = vadd.f32 %v4852, %v4942
        %v5306 = vadd.f32 %v4854, %v4945
        %v5307 = vadd.f32 %v4857, %v4948
        %v5308 = vadd.f32 %v4859, %v4951
        %v5309 = vadd.f32 %v4862, %v4954
        %v5310 = vadd.f32 %v4864, %v4957
        %v5311 = vadd.f32 %v4867, %v4960
        %v5312 = vadd.f32 %v4869, %v4963
        %v5313 = vadd.f32 %v4872, %v4966
        %v5314 = vadd.f32 %v4874, %v4969
        %v5315 = vadd.f32 %v4877, %v4972
        %v5316 = vadd.f32 %v4879, %v4975
        %v5317 = vadd.f32 %v4882, %v4978
        %v5318 = vadd.f32 %v4884, %v4981
        %v5319 = vxor.u32 %v5303, 2147483648
        %v5320 = vxor.u32 %v5304, 2147483648
        %v5321 = vxor.u32 %v5305, 2147483648
        %v5322 = vxor.u32 %v5306, 2147483648
        %v5323 = vxor.u32 %v5307, 2147483648
        %v5324 = vxor.u32 %v5308, 2147483648
        %v5325 = vxor.u32 %v5309, 2147483648
        %v5326 = vxor.u32 %v5310, 2147483648
        %v5327 = vxor.u32 %v5311, 2147483648
        %v5328 = vxor.u32 %v5312, 2147483648
        %v5329 = vxor.u32 %v5313, 2147483648
        %v5330 = vxor.u32 %v5314, 2147483648
        %v5331 = vxor.u32 %v5315, 2147483648
        %v5332 = vxor.u32 %v5316, 2147483648
        %v5333 = vxor.u32 %v5317, 2147483648
        %v5334 = vxor.u32 %v5318, 2147483648
        %v5335 = vmul.f32 %v5319, 1.442695
        %v5336 = vpow.pop %v5335
        %v5337 = vmul.f32 %v5320, 1.442695
        %v5338 = vpow.pop %v5337
        %v5339 = vmul.f32 %v5321, 1.442695
        %v5340 = vpow.pop %v5339
        %v5341 = vmul.f32 %v5322, 1.442695
        %v5342 = vpow.pop %v5341
        %v5343 = vmul.f32 %v5323, 1.442695
        %v5344 = vpow.pop %v5343
        %v5345 = vmul.f32 %v5324, 1.442695
        %v5346 = vpow.pop %v5345
        %v5347 = vmul.f32 %v5325, 1.442695
        %v5348 = vpow.pop %v5347
        %v5349 = vmul.f32 %v5326, 1.442695
        %v5350 = vpow.pop %v5349
        %v5351 = vmul.f32 %v5327, 1.442695
        %v5352 = vpow.pop %v5351
        %v5353 = vmul.f32 %v5328, 1.442695
        %v5354 = vpow.pop %v5353
        %v5355 = vmul.f32 %v5329, 1.442695
        %v5356 = vpow.pop %v5355
        %v5357 = vmul.f32 %v5330, 1.442695
        %v5358 = vpow.pop %v5357
        %v5359 = vmul.f32 %v5331, 1.442695
        %v5360 = vpow.pop %v5359
        %v5361 = vmul.f32 %v5332, 1.442695
        %v5362 = vpow.pop %v5361
        %v5363 = vmul.f32 %v5333, 1.442695
        %v5364 = vpow.pop %v5363
        %v5365 = vmul.f32 %v5334, 1.442695
        %v5366 = vpow.pop %v5365
        %v5367 = vadd.f32 %v5336, 1.0
        %v5368 = vadd.f32 %v5338, 1.0
        %v5369 = vadd.f32 %v5340, 1.0
        %v5370 = vadd.f32 %v5342, 1.0
        %v5371 = vadd.f32 %v5344, 1.0
        %v5372 = vadd.f32 %v5346, 1.0
        %v5373 = vadd.f32 %v5348, 1.0
        %v5374 = vadd.f32 %v5350, 1.0
        %v5375 = vadd.f32 %v5352, 1.0
        %v5376 = vadd.f32 %v5354, 1.0
        %v5377 = vadd.f32 %v5356, 1.0
        %v5378 = vadd.f32 %v5358, 1.0
        %v5379 = vadd.f32 %v5360, 1.0
        %v5380 = vadd.f32 %v5362, 1.0
        %v5381 = vadd.f32 %v5364, 1.0
        %v5382 = vadd.f32 %v5366, 1.0
        %v5383 = vrcp.pop %v5367
        %v5384 = vmul.f32 %v5367, %v5383
        %v5385 = vsub.f32 1.0, %v5384
        %v5386 = vmul.f32 %v5383, %v5385
        %v5387 = vadd.f32 %v5383, %v5386
        %vm5388 = vweird.f32 %v5367
        %vm5389 = vweird.f32 %v5383
        %vm5390 = vmor %vm5388, %vm5389
        %v5391 = vsel %vm5390, %v5383, %v5387
        %v5392 = vand.u32 2147483647, %v5367
        %vm5393 = vcmp.eq.f32.partialorder %v5392, 8.507059e+37
        %v5394 = vand.u32 %v5367, 2147483648
        %v5395 = vor.u32 1.1754944e-38, %v5394
        %v5396 = vsel %vm5393, %v5395, %v5391
        %v5397 = vmul.f32 1.0, %v5396
        %v5398 = vrcp.pop %v5368
        %v5399 = vmul.f32 %v5368, %v5398
        %v5400 = vsub.f32 1.0, %v5399
        %v5401 = vmul.f32 %v5398, %v5400
        %v5402 = vadd.f32 %v5398, %v5401
        %vm5403 = vweird.f32 %v5368
        %vm5404 = vweird.f32 %v5398
        %vm5405 = vmor %vm5403, %vm5404
        %v5406 = vsel %vm5405, %v5398, %v5402
        %v5407 = vand.u32 2147483647, %v5368
        %vm5408 = vcmp.eq.f32.partialorder %v5407, 8.507059e+37
        %v5409 = vand.u32 %v5368, 2147483648
        %v5410 = vor.u32 1.1754944e-38, %v5409
        %v5411 = vsel %vm5408, %v5410, %v5406
        %v5412 = vmul.f32 1.0, %v5411
        %v5413 = vrcp.pop %v5369
        %v5414 = vmul.f32 %v5369, %v5413
        %v5415 = vsub.f32 1.0, %v5414
        %v5416 = vmul.f32 %v5413, %v5415
        %v5417 = vadd.f32 %v5413, %v5416
        %vm5418 = vweird.f32 %v5369
        %vm5419 = vweird.f32 %v5413
        %vm5420 = vmor %vm5418, %vm5419
        %v5421 = vsel %vm5420, %v5413, %v5417
        %v5422 = vand.u32 2147483647, %v5369
        %vm5423 = vcmp.eq.f32.partialorder %v5422, 8.507059e+37
        %v5424 = vand.u32 %v5369, 2147483648
        %v5425 = vor.u32 1.1754944e-38, %v5424
        %v5426 = vsel %vm5423, %v5425, %v5421
        %v5427 = vmul.f32 1.0, %v5426
        %v5428 = vrcp.pop %v5370
        %v5429 = vmul.f32 %v5370, %v5428
        %v5430 = vsub.f32 1.0, %v5429
        %v5431 = vmul.f32 %v5428, %v5430
        %v5432 = vadd.f32 %v5428, %v5431
        %vm5433 = vweird.f32 %v5370
        %vm5434 = vweird.f32 %v5428
        %vm5435 = vmor %vm5433, %vm5434
        %v5436 = vsel %vm5435, %v5428, %v5432
        %v5437 = vand.u32 2147483647, %v5370
        %vm5438 = vcmp.eq.f32.partialorder %v5437, 8.507059e+37
        %v5439 = vand.u32 %v5370, 2147483648
        %v5440 = vor.u32 1.1754944e-38, %v5439
        %v5441 = vsel %vm5438, %v5440, %v5436
        %v5442 = vmul.f32 1.0, %v5441
        %v5443 = vrcp.pop %v5371
        %v5444 = vmul.f32 %v5371, %v5443
        %v5445 = vsub.f32 1.0, %v5444
        %v5446 = vmul.f32 %v5443, %v5445
        %v5447 = vadd.f32 %v5443, %v5446
        %vm5448 = vweird.f32 %v5371
        %vm5449 = vweird.f32 %v5443
        %vm5450 = vmor %vm5448, %vm5449
        %v5451 = vsel %vm5450, %v5443, %v5447
        %v5452 = vand.u32 2147483647, %v5371
        %vm5453 = vcmp.eq.f32.partialorder %v5452, 8.507059e+37
        %v5454 = vand.u32 %v5371, 2147483648
        %v5455 = vor.u32 1.1754944e-38, %v5454
        %v5456 = vsel %vm5453, %v5455, %v5451
        %v5457 = vmul.f32 1.0, %v5456
        %v5458 = vrcp.pop %v5372
        %v5459 = vmul.f32 %v5372, %v5458
        %v5460 = vsub.f32 1.0, %v5459
        %v5461 = vmul.f32 %v5458, %v5460
        %v5462 = vadd.f32 %v5458, %v5461
        %vm5463 = vweird.f32 %v5372
        %vm5464 = vweird.f32 %v5458
        %vm5465 = vmor %vm5463, %vm5464
        %v5466 = vsel %vm5465, %v5458, %v5462
        %v5467 = vand.u32 2147483647, %v5372
        %vm5468 = vcmp.eq.f32.partialorder %v5467, 8.507059e+37
        %v5469 = vand.u32 %v5372, 2147483648
        %v5470 = vor.u32 1.1754944e-38, %v5469
        %v5471 = vsel %vm5468, %v5470, %v5466
        %v5472 = vmul.f32 1.0, %v5471
        %v5473 = vrcp.pop %v5373
        %v5474 = vmul.f32 %v5373, %v5473
        %v5475 = vsub.f32 1.0, %v5474
        %v5476 = vmul.f32 %v5473, %v5475
        %v5477 = vadd.f32 %v5473, %v5476
        %vm5478 = vweird.f32 %v5373
        %vm5479 = vweird.f32 %v5473
        %vm5480 = vmor %vm5478, %vm5479
        %v5481 = vsel %vm5480, %v5473, %v5477
        %v5482 = vand.u32 2147483647, %v5373
        %vm5483 = vcmp.eq.f32.partialorder %v5482, 8.507059e+37
        %v5484 = vand.u32 %v5373, 2147483648
        %v5485 = vor.u32 1.1754944e-38, %v5484
        %v5486 = vsel %vm5483, %v5485, %v5481
        %v5487 = vmul.f32 1.0, %v5486
        %v5488 = vrcp.pop %v5374
        %v5489 = vmul.f32 %v5374, %v5488
        %v5490 = vsub.f32 1.0, %v5489
        %v5491 = vmul.f32 %v5488, %v5490
        %v5492 = vadd.f32 %v5488, %v5491
        %vm5493 = vweird.f32 %v5374
        %vm5494 = vweird.f32 %v5488
        %vm5495 = vmor %vm5493, %vm5494
        %v5496 = vsel %vm5495, %v5488, %v5492
        %v5497 = vand.u32 2147483647, %v5374
        %vm5498 = vcmp.eq.f32.partialorder %v5497, 8.507059e+37
        %v5499 = vand.u32 %v5374, 2147483648
        %v5500 = vor.u32 1.1754944e-38, %v5499
        %v5501 = vsel %vm5498, %v5500, %v5496
        %v5502 = vmul.f32 1.0, %v5501
        %v5503 = vrcp.pop %v5375
        %v5504 = vmul.f32 %v5375, %v5503
        %v5505 = vsub.f32 1.0, %v5504
        %v5506 = vmul.f32 %v5503, %v5505
        %v5507 = vadd.f32 %v5503, %v5506
        %vm5508 = vweird.f32 %v5375
        %vm5509 = vweird.f32 %v5503
        %vm5510 = vmor %vm5508, %vm5509
        %v5511 = vsel %vm5510, %v5503, %v5507
        %v5512 = vand.u32 2147483647, %v5375
        %vm5513 = vcmp.eq.f32.partialorder %v5512, 8.507059e+37
        %v5514 = vand.u32 %v5375, 2147483648
        %v5515 = vor.u32 1.1754944e-38, %v5514
        %v5516 = vsel %vm5513, %v5515, %v5511
        %v5517 = vmul.f32 1.0, %v5516
        %v5518 = vrcp.pop %v5376
        %v5519 = vmul.f32 %v5376, %v5518
        %v5520 = vsub.f32 1.0, %v5519
        %v5521 = vmul.f32 %v5518, %v5520
        %v5522 = vadd.f32 %v5518, %v5521
        %vm5523 = vweird.f32 %v5376
        %vm5524 = vweird.f32 %v5518
        %vm5525 = vmor %vm5523, %vm5524
        %v5526 = vsel %vm5525, %v5518, %v5522
        %v5527 = vand.u32 2147483647, %v5376
        %vm5528 = vcmp.eq.f32.partialorder %v5527, 8.507059e+37
        %v5529 = vand.u32 %v5376, 2147483648
        %v5530 = vor.u32 1.1754944e-38, %v5529
        %v5531 = vsel %vm5528, %v5530, %v5526
        %v5532 = vmul.f32 1.0, %v5531
        %v5533 = vrcp.pop %v5377
        %v5534 = vmul.f32 %v5377, %v5533
        %v5535 = vsub.f32 1.0, %v5534
        %v5536 = vmul.f32 %v5533, %v5535
        %v5537 = vadd.f32 %v5533, %v5536
        %vm5538 = vweird.f32 %v5377
        %vm5539 = vweird.f32 %v5533
        %vm5540 = vmor %vm5538, %vm5539
        %v5541 = vsel %vm5540, %v5533, %v5537
        %v5542 = vand.u32 2147483647, %v5377
        %vm5543 = vcmp.eq.f32.partialorder %v5542, 8.507059e+37
        %v5544 = vand.u32 %v5377, 2147483648
        %v5545 = vor.u32 1.1754944e-38, %v5544
        %v5546 = vsel %vm5543, %v5545, %v5541
        %v5547 = vmul.f32 1.0, %v5546
        %v5548 = vrcp.pop %v5378
        %v5549 = vmul.f32 %v5378, %v5548
        %v5550 = vsub.f32 1.0, %v5549
        %v5551 = vmul.f32 %v5548, %v5550
        %v5552 = vadd.f32 %v5548, %v5551
        %vm5553 = vweird.f32 %v5378
        %vm5554 = vweird.f32 %v5548
        %vm5555 = vmor %vm5553, %vm5554
        %v5556 = vsel %vm5555, %v5548, %v5552
        %v5557 = vand.u32 2147483647, %v5378
        %vm5558 = vcmp.eq.f32.partialorder %v5557, 8.507059e+37
        %v5559 = vand.u32 %v5378, 2147483648
        %v5560 = vor.u32 1.1754944e-38, %v5559
        %v5561 = vsel %vm5558, %v5560, %v5556
        %v5562 = vmul.f32 1.0, %v5561
        %v5563 = vrcp.pop %v5379
        %v5564 = vmul.f32 %v5379, %v5563
        %v5565 = vsub.f32 1.0, %v5564
        %v5566 = vmul.f32 %v5563, %v5565
        %v5567 = vadd.f32 %v5563, %v5566
        %vm5568 = vweird.f32 %v5379
        %vm5569 = vweird.f32 %v5563
        %vm5570 = vmor %vm5568, %vm5569
        %v5571 = vsel %vm5570, %v5563, %v5567
        %v5572 = vand.u32 2147483647, %v5379
        %vm5573 = vcmp.eq.f32.partialorder %v5572, 8.507059e+37
        %v5574 = vand.u32 %v5379, 2147483648
        %v5575 = vor.u32 1.1754944e-38, %v5574
        %v5576 = vsel %vm5573, %v5575, %v5571
        %v5577 = vmul.f32 1.0, %v5576
        %v5578 = vrcp.pop %v5380
        %v5579 = vmul.f32 %v5380, %v5578
        %v5580 = vsub.f32 1.0, %v5579
        %v5581 = vmul.f32 %v5578, %v5580
        %v5582 = vadd.f32 %v5578, %v5581
        %vm5583 = vweird.f32 %v5380
        %vm5584 = vweird.f32 %v5578
        %vm5585 = vmor %vm5583, %vm5584
        %v5586 = vsel %vm5585, %v5578, %v5582
        %v5587 = vand.u32 2147483647, %v5380
        %vm5588 = vcmp.eq.f32.partialorder %v5587, 8.507059e+37
        %v5589 = vand.u32 %v5380, 2147483648
        %v5590 = vor.u32 1.1754944e-38, %v5589
        %v5591 = vsel %vm5588, %v5590, %v5586
        %v5592 = vmul.f32 1.0, %v5591
        %v5593 = vrcp.pop %v5381
        %v5594 = vmul.f32 %v5381, %v5593
        %v5595 = vsub.f32 1.0, %v5594
        %v5596 = vmul.f32 %v5593, %v5595
        %v5597 = vadd.f32 %v5593, %v5596
        %vm5598 = vweird.f32 %v5381
        %vm5599 = vweird.f32 %v5593
        %vm5600 = vmor %vm5598, %vm5599
        %v5601 = vsel %vm5600, %v5593, %v5597
        %v5602 = vand.u32 2147483647, %v5381
        %vm5603 = vcmp.eq.f32.partialorder %v5602, 8.507059e+37
        %v5604 = vand.u32 %v5381, 2147483648
        %v5605 = vor.u32 1.1754944e-38, %v5604
        %v5606 = vsel %vm5603, %v5605, %v5601
        %v5607 = vmul.f32 1.0, %v5606
        %v5608 = vrcp.pop %v5382
        %v5609 = vmul.f32 %v5382, %v5608
        %v5610 = vsub.f32 1.0, %v5609
        %v5611 = vmul.f32 %v5608, %v5610
        %v5612 = vadd.f32 %v5608, %v5611
        %vm5613 = vweird.f32 %v5382
        %vm5614 = vweird.f32 %v5608
        %vm5615 = vmor %vm5613, %vm5614
        %v5616 = vsel %vm5615, %v5608, %v5612
        %v5617 = vand.u32 2147483647, %v5382
        %vm5618 = vcmp.eq.f32.partialorder %v5617, 8.507059e+37
        %v5619 = vand.u32 %v5382, 2147483648
        %v5620 = vor.u32 1.1754944e-38, %v5619
        %v5621 = vsel %vm5618, %v5620, %v5616
        %v5622 = vmul.f32 1.0, %v5621
        %v5623 = vmul.f32 %v5077, %v4937
        %v5624 = vmul.f32 %v5092, %v4940
        %v5625 = vmul.f32 %v5107, %v4943
        %v5626 = vmul.f32 %v5122, %v4946
        %v5627 = vmul.f32 %v5137, %v4949
        %v5628 = vmul.f32 %v5152, %v4952
        %v5629 = vmul.f32 %v5167, %v4955
        %v5630 = vmul.f32 %v5182, %v4958
        %v5631 = vmul.f32 %v5197, %v4961
        %v5632 = vmul.f32 %v5212, %v4964
        %v5633 = vmul.f32 %v5227, %v4967
        %v5634 = vmul.f32 %v5242, %v4970
        %v5635 = vmul.f32 %v5257, %v4973
        %v5636 = vmul.f32 %v5272, %v4976
        %v5637 = vmul.f32 %v5287, %v4979
        %v5638 = vmul.f32 %v5302, %v4982
        %v5639 = vadd.f32 %v4896, %v5623
        %v5640 = vadd.f32 %v4898, %v5624
        %v5641 = vadd.f32 %v4901, %v5625
        %v5642 = vadd.f32 %v4903, %v5626
        %v5643 = vadd.f32 %v4906, %v5627
        %v5644 = vadd.f32 %v4908, %v5628
        %v5645 = vadd.f32 %v4911, %v5629
        %v5646 = vadd.f32 %v4913, %v5630
        %v5647 = vadd.f32 %v4916, %v5631
        %v5648 = vadd.f32 %v4918, %v5632
        %v5649 = vadd.f32 %v4921, %v5633
        %v5650 = vadd.f32 %v4923, %v5634
        %v5651 = vadd.f32 %v4926, %v5635
        %v5652 = vadd.f32 %v4928, %v5636
        %v5653 = vadd.f32 %v4931, %v5637
        %v5654 = vadd.f32 %v4933, %v5638
        %v5655 = vtanh.pop %v5639
        %v5656 = vtanh.pop %v5640
        %v5657 = vtanh.pop %v5641
        %v5658 = vtanh.pop %v5642
        %v5659 = vtanh.pop %v5643
        %v5660 = vtanh.pop %v5644
        %v5661 = vtanh.pop %v5645
        %v5662 = vtanh.pop %v5646
        %v5663 = vtanh.pop %v5647
        %v5664 = vtanh.pop %v5648
        %v5665 = vtanh.pop %v5649
        %v5666 = vtanh.pop %v5650
        %v5667 = vtanh.pop %v5651
        %v5668 = vtanh.pop %v5652
        %v5669 = vtanh.pop %v5653
        %v5670 = vtanh.pop %v5654
        %v5671 = vsub.f32 1.0, %v5397
        %v5672 = vsub.f32 1.0, %v5412
        %v5673 = vsub.f32 1.0, %v5427
        %v5674 = vsub.f32 1.0, %v5442
        %v5675 = vsub.f32 1.0, %v5457
        %v5676 = vsub.f32 1.0, %v5472
        %v5677 = vsub.f32 1.0, %v5487
        %v5678 = vsub.f32 1.0, %v5502
        %v5679 = vsub.f32 1.0, %v5517
        %v5680 = vsub.f32 1.0, %v5532
        %v5681 = vsub.f32 1.0, %v5547
        %v5682 = vsub.f32 1.0, %v5562
        %v5683 = vsub.f32 1.0, %v5577
        %v5684 = vsub.f32 1.0, %v5592
        %v5685 = vsub.f32 1.0, %v5607
        %v5686 = vsub.f32 1.0, %v5622
        %v5687 = vmul.f32 %v5671, %v5655
        %v5688 = vmul.f32 %v5672, %v5656
        %v5689 = vmul.f32 %v5673, %v5657
        %v5690 = vmul.f32 %v5674, %v5658
        %v5691 = vmul.f32 %v5675, %v5659
        %v5692 = vmul.f32 %v5676, %v5660
        %v5693 = vmul.f32 %v5677, %v5661
        %v5694 = vmul.f32 %v5678, %v5662
        %v5695 = vmul.f32 %v5679, %v5663
        %v5696 = vmul.f32 %v5680, %v5664
        %v5697 = vmul.f32 %v5681, %v5665
        %v5698 = vmul.f32 %v5682, %v5666
        %v5699 = vmul.f32 %v5683, %v5667
        %v5700 = vmul.f32 %v5684, %v5668
        %v5701 = vmul.f32 %v5685, %v5669
        %v5702 = vmul.f32 %v5686, %v5670
        %v5703 = vmul.f32 %v5397, %v1977
        %v5704 = vmul.f32 %v5412, %v1978
        %v5705 = vmul.f32 %v5427, %v1979
        %v5706 = vmul.f32 %v5442, %v1980
        %v5707 = vmul.f32 %v5457, %v1981
        %v5708 = vmul.f32 %v5472, %v1982
        %v5709 = vmul.f32 %v5487, %v1983
        %v5710 = vmul.f32 %v5502, %v1984
        %v5711 = vmul.f32 %v5517, %v1985
        %v5712 = vmul.f32 %v5532, %v1986
        %v5713 = vmul.f32 %v5547, %v1987
        %v5714 = vmul.f32 %v5562, %v1988
        %v5715 = vmul.f32 %v5577, %v1989
        %v5716 = vmul.f32 %v5592, %v1990
        %v5717 = vmul.f32 %v5607, %v1991
        %v5718 = vmul.f32 %v5622, %v1992
        %v5719 = vadd.f32 %v5687, %v5703
        %v5720 = vadd.f32 %v5688, %v5704
        %v5721 = vadd.f32 %v5689, %v5705
        %v5722 = vadd.f32 %v5690, %v5706
        %v5723 = vadd.f32 %v5691, %v5707
        %v5724 = vadd.f32 %v5692, %v5708
        %v5725 = vadd.f32 %v5693, %v5709
        %v5726 = vadd.f32 %v5694, %v5710
        %v5727 = vadd.f32 %v5695, %v5711
        %v5728 = vadd.f32 %v5696, %v5712
        %v5729 = vadd.f32 %v5697, %v5713
        %v5730 = vadd.f32 %v5698, %v5714
        %v5731 = vadd.f32 %v5699, %v5715
        %v5732 = vadd.f32 %v5700, %v5716
        %v5733 = vadd.f32 %v5701, %v5717
        %v5734 = vadd.f32 %v5702, %v5718
        %v5735 = vpack.c.bf16 %v5719, %v5719
        %v5736 = vpack.c.bf16 %v5720, %v5720
        %v5737 = vpack.c.bf16 %v5721, %v5721
        %v5738 = vpack.c.bf16 %v5722, %v5722
        %v5739 = vpack.c.bf16 %v5723, %v5723
        %v5740 = vpack.c.bf16 %v5724, %v5724
        %v5741 = vpack.c.bf16 %v5725, %v5725
        %v5742 = vpack.c.bf16 %v5726, %v5726
        %v5743 = vpack.c.bf16 %v5727, %v5727
        %v5744 = vpack.c.bf16 %v5728, %v5728
        %v5745 = vpack.c.bf16 %v5729, %v5729
        %v5746 = vpack.c.bf16 %v5730, %v5730
        %v5747 = vpack.c.bf16 %v5731, %v5731
        %v5748 = vpack.c.bf16 %v5732, %v5732
        %v5749 = vpack.c.bf16 %v5733, %v5733
        %v5750 = vpack.c.bf16 %v5734, %v5734
        %5751 = vst [vmem:[#allocation2 + $0x4] sm:$0xf] %v5735
        %5752 = vst [vmem:[#allocation2 + $0xc] sm:$0xf] %v5736
        %5753 = vst [vmem:[#allocation2 + $0x14] sm:$0xf] %v5737
        %5754 = vst [vmem:[#allocation2 + $0x1c] sm:$0xf] %v5738
        %5755 = vst [vmem:[#allocation2 + $0x24] sm:$0xf] %v5739
        %5756 = vst [vmem:[#allocation2 + $0x2c] sm:$0xf] %v5740
        %5757 = vst [vmem:[#allocation2 + $0x34] sm:$0xf] %v5741
        %5758 = vst [vmem:[#allocation2 + $0x3c] sm:$0xf] %v5742
        %5759 = vst [vmem:[#allocation2 + $0x44] sm:$0xf] %v5743
        %5760 = vst [vmem:[#allocation2 + $0x4c] sm:$0xf] %v5744
        %5761 = vst [vmem:[#allocation2 + $0x54] sm:$0xf] %v5745
        %5762 = vst [vmem:[#allocation2 + $0x5c] sm:$0xf] %v5746
        %5763 = vst [vmem:[#allocation2 + $0x64] sm:$0xf] %v5747
        %5764 = vst [vmem:[#allocation2 + $0x6c] sm:$0xf] %v5748
        %5765 = vst [vmem:[#allocation2 + $0x74] sm:$0xf] %v5749
        %5766 = vst [vmem:[#allocation2 + $0x7c] sm:$0xf] %v5750
        %5767 = vst [vmem:[%s738] sm:$0xf] %v5735
        %5768 = vst [vmem:[%s738 + $0x4] sm:$0xf] %v5736
        %5769 = vst [vmem:[%s738 + $0x8] sm:$0xf] %v5737
        %5770 = vst [vmem:[%s738 + $0xc] sm:$0xf] %v5738
        %5771 = vst [vmem:[%s738 + $0x10] sm:$0xf] %v5739
        %5772 = vst [vmem:[%s738 + $0x14] sm:$0xf] %v5740
        %5773 = vst [vmem:[%s738 + $0x18] sm:$0xf] %v5741
        %5774 = vst [vmem:[%s738 + $0x1c] sm:$0xf] %v5742
        %5775 = vst [vmem:[%s738 + $0x20] sm:$0xf] %v5743
        %5776 = vst [vmem:[%s738 + $0x24] sm:$0xf] %v5744
        %5777 = vst [vmem:[%s738 + $0x28] sm:$0xf] %v5745
        %5778 = vst [vmem:[%s738 + $0x2c] sm:$0xf] %v5746
        %5779 = vst [vmem:[%s738 + $0x30] sm:$0xf] %v5747
        %5780 = vst [vmem:[%s738 + $0x34] sm:$0xf] %v5748
        %5781 = vst [vmem:[%s738 + $0x38] sm:$0xf] %v5749
        %5782 = vst [vmem:[%s738 + $0x3c] sm:$0xf] %v5750
        %s5783 = sand.u32 %s385, 1
        %s5784 = scalar_lea.sflag [#allocation10], %s5783
        %s5785 = sand.u32 %s385, 1
        %s5786 = smul.addr %s5785, 64
        %s5787 = scalar_lea.vmem [#allocation26], %s5786
        // Predicated region
        $region129: #{tpu_custom_call.1} parent=79 // pred_check
          %p5788 = pneg %p395
        $region130: #{tpu_custom_call.1} parent=79 // pred_check_branch
          %5790 = sbr.rel (%p5788) target = $region132
        $region131: #{tpu_custom_call.1} parent=79 // pred_region
          %s5791 = ssub.s32 2, %s39
          %5793 = vsyncadd %s5784, 0
          %s5794 = smul.addr %s5791, 16
          %s5795 = smul.addr %s5794, 4
          %s5796 = scalar_lea.hbm %s15, %s5795
          %s5797 = sshll.u32 %s5787, 4
          %s5798 = int_to_ptr.vmem [resolvable:$true] %s5797
          %s5799 = sshll.u32 %s5796, 4
          %s5800 = int_to_ptr.hbm [resolvable:$true] %s5799
          %5805 = dma.vmem_to_hbm [thread:$0]  %s5798, 1024, %s5800, %s5784, 64, 64, 4
        $region132: #{tpu_custom_call.1} parent=79 // pred_fallthru
          _
      $region80: #{tpu_custom_call.1} parent=5 // pred_fallthru
        _
      %p5806 = scmp.le.s32.totalorder 2, %s34
      // Predicated region
      $region133: #{tpu_custom_call.1} parent=5 // pred_check
        %p5807 = pneg %p5806
      $region134: #{tpu_custom_call.1} parent=5 // pred_check_branch
        %5809 = sbr.rel (%p5807) target = $region136
      $region135: #{tpu_custom_call.1} parent=5 // pred_region
        %s5810 = ssub.s32 %s34, 2
        // Predicated region
        $region137: #{tpu_custom_call.1} parent=135 // pred_check
          %p5811 = pneg %p401
        $region138: #{tpu_custom_call.1} parent=135 // pred_check_branch
          %5813 = sbr.rel (%p5811) target = $region140
        $region139: #{tpu_custom_call.1} parent=135 // pred_region
          %s5814 = sand.u32 %s386, 1
          %s5815 = scalar_lea.sflag [#allocation10], %s5814
          %s5816 = sand.u32 %s386, 1
          %s5817 = smul.addr %s5816, 64
          %s5818 = scalar_lea.vmem [#allocation26], %s5817
          %5820 = dma.done %s5815, 1024
        $region140: #{tpu_custom_call.1} parent=135 // pred_fallthru
          _
      $region136: #{tpu_custom_call.1} parent=5 // pred_fallthru
        _
    $region6: #{tpu_custom_call.1} parent=1 // loop_footer
      %s38 = sadd.s32 1, %s34
    $region7: #{tpu_custom_call.1} parent=1 // loop_footer_branch
      %33 = sbr.rel target = $region3
    $region8: #{tpu_custom_call.1} parent=1 // loop_exit
      _
    %5821 = vsyncpa [#allocation9], 1
    %s5822 = scalar_lea.sflag [#allocation9], 1
    %5823 = vsyncpa %s5822, 1
    %5824 = vsyncpa [#allocation12], 1
    %s5825 = scalar_lea.sflag [#allocation12], 1
    %5826 = vsyncpa %s5825, 1
    %5827 = vsyncpa [#allocation15], 1
    %5828 = vsyncpa [#allocation18], 1
    %5829 = vsyncpa [#allocation21], 1
    %5830 = vsyncpa [#allocation24], 1
    %5831 = vsyncpa [#allocation10], 1
    %s5832 = scalar_lea.sflag [#allocation10], 1
    %5833 = vsyncpa %s5832, 1

</llo_original>
